<compile_context>
chip_gen: v5e
topology: v5e:2x2
jax: 0.10.0
libtpu: 0.0.40
codegen_flags: <defaults>
</compile_context>

<pallas_src>
import functools

import jax
import jax.numpy as jnp
import numpy as np
from jax.experimental import pallas as pl
from jax.experimental.pallas import tpu as pltpu


LAYER_SIZES = [4096, 2048, 1024, 512, 256, 128, 64, 32, 16, 8, 6]

# 48 MiB scoped-VMEM cap: below v7x's 64 MiB physical VMEM, plenty on v5e/v6e.
_VMEM_LIMIT_BYTES = 48 * 1024 * 1024


# -----------------------------------------------------------------------------
# Kernel A: first layer  y = relu(x @ W1 + b1),  x:(B,4096), W1:(4096,2048)
# grid = (N/tn [parallel], K/tk [arbitrary]); accumulate directly into o_ref.
# -----------------------------------------------------------------------------
def _layer1_kernel(x_ref, w_ref, b_ref, o_ref, *, nsteps):
    k = pl.program_id(1)

    @pl.when(k == 0)
    def _():
        o_ref[...] = jnp.zeros_like(o_ref)

    o_ref[...] += jnp.dot(
        x_ref[...], w_ref[...], preferred_element_type=jnp.float32
    )

    @pl.when(k == nsteps - 1)
    def _():
        o_ref[...] = jnp.maximum(o_ref[...] + b_ref[...], 0.0)


def layer1_forward(x, w, b, *, tn=1024, tk=2048):
    """relu(x @ w + b) with x:(B,K), w:(K,N), b:(1,N); K,N multiples of tk,tn."""
    B, K = x.shape
    Kw, N = w.shape
    assert K == Kw and b.shape == (1, N)
    assert N % tn == 0 and K % tk == 0
    nj, nk = N // tn, K // tk

    kernel = functools.partial(_layer1_kernel, nsteps=nk)
    return pl.pallas_call(
        kernel,
        out_shape=jax.ShapeDtypeStruct((B, N), jnp.float32),
        grid_spec=pltpu.PrefetchScalarGridSpec(
            num_scalar_prefetch=0,
            grid=(nj, nk),
            in_specs=[
                pl.BlockSpec((B, tk), lambda j, k: (0, k)),
                pl.BlockSpec((tk, tn), lambda j, k: (k, j)),
                pl.BlockSpec((1, tn), lambda j, k: (0, j)),
            ],
            out_specs=pl.BlockSpec((B, tn), lambda j, k: (0, j)),
        ),
        compiler_params=pltpu.CompilerParams(
            dimension_semantics=("parallel", "arbitrary"),
            vmem_limit_bytes=_VMEM_LIMIT_BYTES,
        ),
    )(x, w, b)


# -----------------------------------------------------------------------------
# Kernel B: layers 2..10 fused.  All weights (~10.7 MiB f32) resident in VMEM;
# a single kernel invocation runs the nine matmuls back-to-back.
# -----------------------------------------------------------------------------
def _tail_kernel(*refs):
    h_ref = refs[0]
    o_ref = refs[-1]
    wb_refs = refs[1:-1]
    n_layers = len(wb_refs) // 2

    h = h_ref[...]
    for i in range(n_layers):
        w = wb_refs[2 * i][...]
        b = wb_refs[2 * i + 1][...]
        h = jnp.dot(h, w, preferred_element_type=jnp.float32) + b
        if i < n_layers - 1:
            h = jnp.maximum(h, 0.0)
    o_ref[...] = h.astype(o_ref.dtype)


def tail_forward(h, tail_params):
    """Run layers 2..10 (list of (w,b) pairs) in one fused pallas_call."""
    B = h.shape[0]
    n_out = tail_params[-1][0].shape[1]
    flat = []
    for w, b in tail_params:
        flat.extend((w, b))
    return pl.pallas_call(
        _tail_kernel,
        out_shape=jax.ShapeDtypeStruct((B, n_out), jnp.float32),
        compiler_params=pltpu.CompilerParams(
            vmem_limit_bytes=_VMEM_LIMIT_BYTES,
        ),
    )(h, *flat)


def mlp_reflection_coeff(x, params):
    """Forward pass of MLP_reflectionCoeff using two Pallas kernels."""
    (w1, b1) = params[0]
    h = layer1_forward(x, w1, b1)
    return tail_forward(h, params[1:])


# -----------------------------------------------------------------------------
# Params / reference / test harness
# -----------------------------------------------------------------------------
def init_params(key):
    """Deterministic init mimicking nn.Linear's U(-1/sqrt(in), 1/sqrt(in))."""
    params = []
    for i in range(len(LAYER_SIZES) - 1):
        fan_in, fan_out = LAYER_SIZES[i], LAYER_SIZES[i + 1]
        key, kw, kb = jax.random.split(key, 3)
        bound = 1.0 / np.sqrt(fan_in)
        w = jax.random.uniform(
            kw, (fan_in, fan_out), jnp.float32, minval=-bound, maxval=bound
        )
        b = jax.random.uniform(
            kb, (1, fan_out), jnp.float32, minval=-bound, maxval=bound
        )
        params.append((w, b))
    return params


def mlp_reference(x, params):
    """Pure-JAX reference for correctness checking."""
    n_layers = len(params)
    h = x
    for i, (w, b) in enumerate(params):
        h = h @ w + b
        if i < n_layers - 1:
            h = jnp.maximum(h, 0.0)
    return h


if __name__ == "__main__":
    key = jax.random.PRNGKey(0)
    key, kx = jax.random.split(key)

    batch = 2
    x = jax.random.normal(kx, (batch, 4096), dtype=jnp.float32)
    params = init_params(key)

    out = mlp_reflection_coeff(x, params)
    out = jax.block_until_ready(out)

    ref = mlp_reference(x, params)
    assert out.shape == (batch, 6), out.shape
    assert np.allclose(np.asarray(out), np.asarray(ref), rtol=1e-4, atol=1e-4)

    print("KERNEL_OK")
</pallas_src>

<mosaic_0001>
module attributes {stable_mosaic.version = 11 : i64} {
  func.func @_layer1_kernel(%arg0: i32, %arg1: i32, %arg2: memref<2x2048xf32, #tpu.memory_space<vmem>>, %arg3: memref<2048x1024xf32, #tpu.memory_space<vmem>>, %arg4: memref<1x1024xf32, #tpu.memory_space<vmem>>, %arg5: memref<2x1024xf32, #tpu.memory_space<vmem>>) attributes {dimension_semantics = [#tpu.dimension_semantics<parallel>, #tpu.dimension_semantics<arbitrary>], iteration_bounds = array<i64: 2, 2>, scalar_prefetch = 0 : i64, scratch_operands = 0 : i64, tpu.core_type = #tpu.core_type<tc>, window_params = [{transform_indices = @transform_0, window_bounds = array<i64: 2, 2048>}, {transform_indices = @transform_1, window_bounds = array<i64: 2048, 1024>}, {transform_indices = @transform_2, window_bounds = array<i64: 1, 1024>}, {transform_indices = @transform_3, window_bounds = array<i64: 2, 1024>}]} {
    %c0_i32 = arith.constant 0 : i32
    %0 = arith.cmpi eq, %arg1, %c0_i32 : i32
    %1 = arith.extui %0 : i1 to i32
    %c0_i32_0 = arith.constant 0 : i32
    %2 = arith.cmpi ne, %1, %c0_i32_0 : i32
    scf.if %2 {
      %cst_9 = arith.constant 0.000000e+00 : f32
      %12 = vector.broadcast %cst_9 : f32 to vector<2x1024xf32>
      %c0_10 = arith.constant 0 : index
      %c0_11 = arith.constant 0 : index
      %13 = vector.load %arg5[%c0_10, %c0_11] : memref<2x1024xf32, #tpu.memory_space<vmem>>, vector<2x1024xf32>
      tpu.vector_store %arg5[%c0_10, %c0_11], %12 {strides = array<i32>} : memref<2x1024xf32, #tpu.memory_space<vmem>>, vector<2x1024xf32>,
    } else {
    }
    %c0 = arith.constant 0 : index
    %c0_1 = arith.constant 0 : index
    %3 = vector.load %arg5[%c0, %c0_1] : memref<2x1024xf32, #tpu.memory_space<vmem>>, vector<2x1024xf32>
    %c0_2 = arith.constant 0 : index
    %c0_3 = arith.constant 0 : index
    %4 = vector.load %arg2[%c0_2, %c0_3] : memref<2x2048xf32, #tpu.memory_space<vmem>>, vector<2x2048xf32>
    %c0_4 = arith.constant 0 : index
    %c0_5 = arith.constant 0 : index
    %5 = vector.load %arg3[%c0_4, %c0_5] : memref<2048x1024xf32, #tpu.memory_space<vmem>>, vector<2048x1024xf32>
    %cst = arith.constant dense<0.000000e+00> : vector<2x1024xf32>
    %6 = tpu.matmul %4, %5, %cst {dimension_numbers = #tpu.dot_dimension_numbers<[1], [0], [0], [1], [0, 0, 1, 1], [], []>} : vector<2x2048xf32>, vector<2048x1024xf32>, vector<2x1024xf32> -> vector<2x1024xf32>
    %7 = arith.addf %3, %6 : vector<2x1024xf32>
    %c0_6 = arith.constant 0 : index
    %c0_7 = arith.constant 0 : index
    %8 = vector.load %arg5[%c0_6, %c0_7] : memref<2x1024xf32, #tpu.memory_space<vmem>>, vector<2x1024xf32>
    tpu.vector_store %arg5[%c0_6, %c0_7], %7 {strides = array<i32>} : memref<2x1024xf32, #tpu.memory_space<vmem>>, vector<2x1024xf32>,
    %c1_i32 = arith.constant 1 : i32
    %9 = arith.cmpi eq, %arg1, %c1_i32 : i32
    %10 = arith.extui %9 : i1 to i32
    %c0_i32_8 = arith.constant 0 : i32
    %11 = arith.cmpi ne, %10, %c0_i32_8 : i32
    scf.if %11 {
      %c0_9 = arith.constant 0 : index
      %c0_10 = arith.constant 0 : index
      %12 = vector.load %arg5[%c0_9, %c0_10] : memref<2x1024xf32, #tpu.memory_space<vmem>>, vector<2x1024xf32>
      %c0_11 = arith.constant 0 : index
      %c0_12 = arith.constant 0 : index
      %13 = vector.load %arg4[%c0_11, %c0_12] : memref<1x1024xf32, #tpu.memory_space<vmem>>, vector<1x1024xf32>
      %14 = vector.broadcast %13 : vector<1x1024xf32> to vector<2x1024xf32>
      %15 = arith.addf %12, %14 : vector<2x1024xf32>
      %cst_13 = arith.constant 0.000000e+00 : f32
      %16 = vector.broadcast %cst_13 : f32 to vector<2x1024xf32>
      %17 = arith.maximumf %15, %16 : vector<2x1024xf32>
      %c0_14 = arith.constant 0 : index
      %c0_15 = arith.constant 0 : index
      %18 = vector.load %arg5[%c0_14, %c0_15] : memref<2x1024xf32, #tpu.memory_space<vmem>>, vector<2x1024xf32>
      tpu.vector_store %arg5[%c0_14, %c0_15], %17 {strides = array<i32>} : memref<2x1024xf32, #tpu.memory_space<vmem>>, vector<2x1024xf32>,
    } else {
    }
    return
  }
  func.func @transform_0(%arg0: i32, %arg1: i32) -> (i32, i32) {
    %c0_i32 = arith.constant 0 : i32
    %c0_i32_0 = arith.constant 0 : i32
    return %c0_i32, %arg1 : i32, i32
  }
  func.func @transform_1(%arg0: i32, %arg1: i32) -> (i32, i32) {
    %c0_i32 = arith.constant 0 : i32
    return %arg1, %arg0 : i32, i32
  }
  func.func @transform_2(%arg0: i32, %arg1: i32) -> (i32, i32) {
    %c0_i32 = arith.constant 0 : i32
    %c0_i32_0 = arith.constant 0 : i32
    return %c0_i32, %arg0 : i32, i32
  }
  func.func @transform_3(%arg0: i32, %arg1: i32) -> (i32, i32) {
    %c0_i32 = arith.constant 0 : i32
    %c0_i32_0 = arith.constant 0 : i32
    return %c0_i32, %arg0 : i32, i32
  }
}

</mosaic_0001>

<llo_original>
// kernel: tpu_custom_call.1
$region0: #{tpu_custom_call.1}
  #allocation0 [shape = 'u32[]', space=smem, size = 0x4, offset = 0x4, fixed_abs, tag = 'smem constant byte address 0x4 - core index']
  #allocation1 [shape = 'u32[72,128]{1,0:T(1,128)}', space=vmem, size = 0x9000, scoped, tag = 'internal scratch']
  %s0 = inlined_call_operand.hbm [shape: f32[2,4096], index: 0, kind: input, shape index: {}]
  %s1 = inlined_call_operand.hbm [shape: f32[4096,2048], index: 1, kind: input, shape index: {}]
  %s2 = inlined_call_operand.hbm [shape: f32[1,2048], index: 2, kind: input, shape index: {}]
  %s3 = inlined_call_operand.hbm [shape: f32[2,2048], index: 3, kind: output, shape index: {}]
  %s4 = sld [smem:[#allocation0]]
  $region65: #{tpu_custom_call.1} parent=0
    _
  %s6 = ssub.s32 1, %s4
  %s7 = scalar_select 0, %s6, %s4
  $region1: #{tpu_custom_call.1} parent=0
    #allocation2 [shape = 'u8[32768]{0}', space=vmem, size = 0x8000, scoped, tag = 'input window, operand 0']
    #allocation3 [shape = 's32[2]{0}', space=sflag, size = 0x8, scoped, tag = 'scoped memory for tpu_custom_call.1']
    #allocation4 [shape = 's32[2]{0}', space=sflag, size = 0x8, scoped, tag = 'scoped memory for tpu_custom_call.1']
    #allocation5 [shape = 'u8[16777216]{0}', space=vmem, size = 0x1000000, scoped, tag = 'input window, operand 1']
    #allocation6 [shape = 's32[2]{0}', space=sflag, size = 0x8, scoped, tag = 'scoped memory for tpu_custom_call.1']
    #allocation7 [shape = 'u8[8192]{0}', space=vmem, size = 0x2000, scoped, tag = 'input window, operand 2']
    #allocation8 [shape = 'u8[16384]{0}', space=vmem, size = 0x4000, scoped, tag = 'output window, operand 0']
    %8 = vsyncpa [#allocation3], 0
    %s9 = scalar_lea.sflag [#allocation3], 1
    %10 = vsyncpa %s9, 0
    %11 = vsyncpa [#allocation6], 0
    %s12 = scalar_lea.sflag [#allocation6], 1
    %13 = vsyncpa %s12, 0
    %14 = vsyncpa [#allocation4], 0
    %s15 = scalar_lea.sflag [#allocation4], 1
    %16 = vsyncpa %s15, 0
    loop: start=0, step=1, limit=6
    $region2: #{tpu_custom_call.1} parent=1 // loop_pre_header
      _
    $region3: #{tpu_custom_call.1} parent=1 // loop_header
      %s18 = sphi 0, %s22
      %p19 = scmp.ge.s32.totalorder %s18, 6
      %s25 = sphi 0, %s37
      %s26 = sphi 0, %s33
      %s27 = sphi 0, %s25
      %s28 = sphi 0, %s26
      %s29 = sphi 0, %s27
      %s30 = sphi 0, %s28
      %s40 = sphi 0, %s42
      %s43 = sphi 0, %s40
      %s44 = sphi 0, %s43
      %s60 = sphi 0, %s44
      %s68 = sphi 0, %s70
      %s71 = sphi 0, %s68
      %s72 = sphi 0, %s71
      %s88 = sphi 0, %s72
      %s94 = sphi 0, %s96
      %s97 = sphi 0, %s94
      %s98 = sphi 0, %s97
      %s114 = sphi 0, %s98
      %s120 = sphi 0, %s122
      %s123 = sphi 0, %s120
      %s124 = sphi 0, %s123
      %s140 = sphi 0, %s124
    $region4: #{tpu_custom_call.1} parent=1 // loop_header_branch
      %21 = sbr.rel (%p19) target = $region8
    $region5: #{tpu_custom_call.1} parent=1 // loop_body
      %s23 = ssub.s32 %s18, 1
      %s24 = ssub.s32 %s18, 2
      %s31 = sadd.s32 1, %s26
      %p32 = scmp.ge.s32.totalorder %s31, 2
      %s33 = scalar_select %p32, 0, %s31
      %s34 = sadd.s32 1, %s25
      %s35 = scalar_select %p32, %s34, %s25
      %p36 = scmp.ge.s32.totalorder %s35, 2
      %s37 = scalar_select %p36, 0, %s35
      %s38 = ssub.s32 %s26, %s33
      %p39 = scmp.eq.s32.totalorder %s38, 0
      %s41 = sadd.s32 %s40, 1
      %s42 = scalar_select %p39, %s40, %s41
      %p45 = pneg %p39
      %p46 = scmp.eq.s32.totalorder %s18, 3
      %p47 = por %p45, %p46
      %p48 = scmp.ne.s32.totalorder %s40, %s43
      %p49 = scmp.eq.s32.totalorder %s18, 0
      %p50 = por %p48, %p49
      %p51 = scmp.ne.s32.totalorder %s40, %s43
      %p52 = scmp.eq.s32.totalorder %s23, 3
      %p53 = por %p51, %p52
      %p54 = scmp.ne.s32.totalorder %s43, %s44
      %p55 = scmp.eq.s32.totalorder %s23, 0
      %p56 = por %p54, %p55
      %p57 = scmp.ne.s32.totalorder %s43, %s44
      %p58 = scmp.eq.s32.totalorder %s24, 3
      %p59 = por %p57, %p58
      %p61 = scmp.ne.s32.totalorder %s44, %s60
      %p62 = scmp.eq.s32.totalorder %s24, 0
      %p63 = por %p61, %p62
      %s64 = ssub.s32 %s26, %s33
      %s65 = ssub.s32 %s25, %s37
      %s66 = sor.u32 %s64, %s65
      %p67 = scmp.eq.s32.totalorder %s66, 0
      %s69 = sadd.s32 %s68, 1
      %s70 = scalar_select %p67, %s68, %s69
      %p73 = pneg %p67
      %p74 = scmp.eq.s32.totalorder %s18, 3
      %p75 = por %p73, %p74
      %p76 = scmp.ne.s32.totalorder %s68, %s71
      %p77 = scmp.eq.s32.totalorder %s18, 0
      %p78 = por %p76, %p77
      %p79 = scmp.ne.s32.totalorder %s68, %s71
      %p80 = scmp.eq.s32.totalorder %s23, 3
      %p81 = por %p79, %p80
      %p82 = scmp.ne.s32.totalorder %s71, %s72
      %p83 = scmp.eq.s32.totalorder %s23, 0
      %p84 = por %p82, %p83
      %p85 = scmp.ne.s32.totalorder %s71, %s72
      %p86 = scmp.eq.s32.totalorder %s24, 3
      %p87 = por %p85, %p86
      %p89 = scmp.ne.s32.totalorder %s72, %s88
      %p90 = scmp.eq.s32.totalorder %s24, 0
      %p91 = por %p89, %p90
      %s92 = ssub.s32 %s25, %s37
      %p93 = scmp.eq.s32.totalorder %s92, 0
      %s95 = sadd.s32 %s94, 1
      %s96 = scalar_select %p93, %s94, %s95
      %p99 = pneg %p93
      %p100 = scmp.eq.s32.totalorder %s18, 3
      %p101 = por %p99, %p100
      %p102 = scmp.ne.s32.totalorder %s94, %s97
      %p103 = scmp.eq.s32.totalorder %s18, 0
      %p104 = por %p102, %p103
      %p105 = scmp.ne.s32.totalorder %s94, %s97
      %p106 = scmp.eq.s32.totalorder %s23, 3
      %p107 = por %p105, %p106
      %p108 = scmp.ne.s32.totalorder %s97, %s98
      %p109 = scmp.eq.s32.totalorder %s23, 0
      %p110 = por %p108, %p109
      %p111 = scmp.ne.s32.totalorder %s97, %s98
      %p112 = scmp.eq.s32.totalorder %s24, 3
      %p113 = por %p111, %p112
      %p115 = scmp.ne.s32.totalorder %s98, %s114
      %p116 = scmp.eq.s32.totalorder %s24, 0
      %p117 = por %p115, %p116
      %s118 = ssub.s32 %s25, %s37
      %p119 = scmp.eq.s32.totalorder %s118, 0
      %s121 = sadd.s32 %s120, 1
      %s122 = scalar_select %p119, %s120, %s121
      %p125 = pneg %p119
      %p126 = scmp.eq.s32.totalorder %s18, 3
      %p127 = por %p125, %p126
      %p128 = scmp.ne.s32.totalorder %s120, %s123
      %p129 = scmp.eq.s32.totalorder %s18, 0
      %p130 = por %p128, %p129
      %p131 = scmp.ne.s32.totalorder %s120, %s123
      %p132 = scmp.eq.s32.totalorder %s23, 3
      %p133 = por %p131, %p132
      %p134 = scmp.ne.s32.totalorder %s123, %s124
      %p135 = scmp.eq.s32.totalorder %s23, 0
      %p136 = por %p134, %p135
      %p137 = scmp.ne.s32.totalorder %s123, %s124
      %p138 = scmp.eq.s32.totalorder %s24, 3
      %p139 = por %p137, %p138
      %p141 = scmp.ne.s32.totalorder %s124, %s140
      %p142 = scmp.eq.s32.totalorder %s24, 0
      %p143 = por %p141, %p142
      %p144 = scmp.le.s32.totalorder 1, %s18
      %p145 = scmp.lt.s32.totalorder %s18, 5
      %p146 = pnand %p144, %p145
      %p147 = pneg %p146
      // Predicated region
      $region9: #{tpu_custom_call.1} parent=5 // pred_check
        _
      $region10: #{tpu_custom_call.1} parent=5 // pred_check_branch
        %149 = sbr.rel (%p146) target = $region12
      $region11: #{tpu_custom_call.1} parent=5 // pred_region
        %s150 = ssub.s32 %s18, 1
      $region12: #{tpu_custom_call.1} parent=5 // pred_fallthru
        _
      %p151 = scmp.lt.s32.totalorder %s18, 4
      // Predicated region
      $region13: #{tpu_custom_call.1} parent=5 // pred_check
        %p152 = pneg %p151
      $region14: #{tpu_custom_call.1} parent=5 // pred_check_branch
        %154 = sbr.rel (%p152) target = $region16
      $region15: #{tpu_custom_call.1} parent=5 // pred_region
        // Predicated region
        $region17: #{tpu_custom_call.1} parent=15 // pred_check
          %p155 = pneg %p50
        $region18: #{tpu_custom_call.1} parent=15 // pred_check_branch
          %157 = sbr.rel (%p155) target = $region20
        $region19: #{tpu_custom_call.1} parent=15 // pred_region
          %s158 = sand.u32 %s40, 1
          %s159 = scalar_lea.sflag [#allocation3], %s158
          %s160 = sand.u32 %s40, 1
          %s161 = smul.addr %s160, 32
          %s162 = scalar_lea.vmem [#allocation2], %s161
          %s163 = smul.u32 16, %s26
          %165 = vsyncadd %s159, 0
          %s166 = smul.addr %s163, 2
          %s167 = scalar_lea.hbm %s0, %s166
          %s169 = sshll.u32 %s167, 4
          %s170 = int_to_ptr.hbm [resolvable:$true] %s169
          %s171 = sshll.u32 %s162, 4
          %s172 = int_to_ptr.vmem [resolvable:$true] %s171
          %174 = dma.hbm_to_vmem [thread:$0]  %s170, 512, %s172, %s159
        $region20: #{tpu_custom_call.1} parent=15 // pred_fallthru
          _
        // Predicated region
        $region21: #{tpu_custom_call.1} parent=15 // pred_check
          %p175 = pneg %p78
        $region22: #{tpu_custom_call.1} parent=15 // pred_check_branch
          %177 = sbr.rel (%p175) target = $region24
        $region23: #{tpu_custom_call.1} parent=15 // pred_region
          %s178 = sand.u32 %s18, 1
          %s179 = scalar_lea.sflag [#allocation6], %s178
          %s180 = sand.u32 %s68, 1
          %s181 = smul.addr %s180, 16384
          %s182 = scalar_lea.vmem [#allocation5], %s181
          %s183 = smul.u32 256, %s26
          %s184 = smul.u32 8, %s25
          %186 = vsyncadd %s179, 0
          %s187 = smul.addr %s183, 16
          %s188 = sadd.s32 %s184, %s187
          %s189 = smul.addr %s188, 8
          %s190 = scalar_lea.hbm %s1, %s189
          %s191 = sshll.u32 %s190, 4
          %s192 = int_to_ptr.hbm [resolvable:$true] %s191
          %s193 = sshll.u32 %s182, 4
          %s194 = int_to_ptr.vmem [resolvable:$true] %s193
          %199 = dma.hbm_to_vmem [thread:$0]  %s192, 262144, %s194, %s179, 2048, 1024, 64
        $region24: #{tpu_custom_call.1} parent=15 // pred_fallthru
          _
        // Predicated region
        $region25: #{tpu_custom_call.1} parent=15 // pred_check
          %p200 = pneg %p104
        $region26: #{tpu_custom_call.1} parent=15 // pred_check_branch
          %202 = sbr.rel (%p200) target = $region28
        $region27: #{tpu_custom_call.1} parent=15 // pred_region
          %s203 = sand.u32 %s18, 1
          %s204 = scalar_lea.sflag [#allocation6], %s203
          %s205 = sand.u32 %s94, 1
          %s206 = smul.addr %s205, 8
          %s207 = scalar_lea.vmem [#allocation7], %s206
          %s208 = smul.u32 8, %s25
          %210 = vsyncadd %s204, 0
          %s211 = scalar_lea.hbm %s2, %s208
          %s213 = sshll.u32 %s211, 4
          %s214 = int_to_ptr.hbm [resolvable:$true] %s213
          %s215 = sshll.u32 %s207, 4
          %s216 = int_to_ptr.vmem [resolvable:$true] %s215
          %218 = dma.hbm_to_vmem [thread:$0]  %s214, 128, %s216, %s204
        $region28: #{tpu_custom_call.1} parent=15 // pred_fallthru
          _
      $region16: #{tpu_custom_call.1} parent=5 // pred_fallthru
        _
      %p219 = scmp.le.s32.totalorder 1, %s18
      %p220 = scmp.lt.s32.totalorder %s18, 5
      %p221 = pnand %p219, %p220
      %p222 = pneg %p221
      // Predicated region
      $region29: #{tpu_custom_call.1} parent=5 // pred_check
        _
      $region30: #{tpu_custom_call.1} parent=5 // pred_check_branch
        %224 = sbr.rel (%p221) target = $region32
      $region31: #{tpu_custom_call.1} parent=5 // pred_region
        %s225 = ssub.s32 %s18, 1
        %s226 = sand.u32 %s43, 1
        %s227 = scalar_lea.sflag [#allocation3], %s226
        %s228 = sand.u32 %s43, 1
        %s229 = smul.addr %s228, 32
        %s230 = scalar_lea.vmem [#allocation2], %s229
        // Predicated region
        $region33: #{tpu_custom_call.1} parent=31 // pred_check
          %p231 = pneg %p56
        $region34: #{tpu_custom_call.1} parent=31 // pred_check_branch
          %233 = sbr.rel (%p231) target = $region36
        $region35: #{tpu_custom_call.1} parent=31 // pred_region
          %235 = dma.done %s227, 512
        $region36: #{tpu_custom_call.1} parent=31 // pred_fallthru
          _
        %s236 = sand.u32 %s23, 1
        %s237 = scalar_lea.sflag [#allocation6], %s236
        %s238 = sand.u32 %s71, 1
        %s239 = smul.addr %s238, 16384
        %s240 = scalar_lea.vmem [#allocation5], %s239
        // Predicated region
        $region37: #{tpu_custom_call.1} parent=31 // pred_check
          %p241 = pneg %p84
        $region38: #{tpu_custom_call.1} parent=31 // pred_check_branch
          %243 = sbr.rel (%p241) target = $region40
        $region39: #{tpu_custom_call.1} parent=31 // pred_region
          %245 = dma.done %s237, 262144
        $region40: #{tpu_custom_call.1} parent=31 // pred_fallthru
          _
        %s246 = sand.u32 %s23, 1
        %s247 = scalar_lea.sflag [#allocation6], %s246
        %s248 = sand.u32 %s97, 1
        %s249 = smul.addr %s248, 8
        %s250 = scalar_lea.vmem [#allocation7], %s249
        // Predicated region
        $region41: #{tpu_custom_call.1} parent=31 // pred_check
          %p251 = pneg %p110
        $region42: #{tpu_custom_call.1} parent=31 // pred_check_branch
          %253 = sbr.rel (%p251) target = $region44
        $region43: #{tpu_custom_call.1} parent=31 // pred_region
          %255 = dma.done %s247, 128
        $region44: #{tpu_custom_call.1} parent=31 // pred_fallthru
          _
        %s256 = sand.u32 %s43, 1
        %s257 = scalar_lea.sflag [#allocation3], %s256
        %s258 = sand.u32 %s43, 1
        %s259 = smul.addr %s258, 32
        %s260 = scalar_lea.vmem [#allocation2], %s259
        %p261 = pneg %p56
        %p262 = pneg %p53
        %s263 = sand.u32 %s23, 1
        %s264 = scalar_lea.sflag [#allocation6], %s263
        %s265 = sand.u32 %s71, 1
        %s266 = smul.addr %s265, 16384
        %s267 = scalar_lea.vmem [#allocation5], %s266
        %p268 = pneg %p84
        %p269 = pneg %p81
        %s270 = sand.u32 %s23, 1
        %s271 = scalar_lea.sflag [#allocation6], %s270
        %s272 = sand.u32 %s97, 1
        %s273 = smul.addr %s272, 8
        %s274 = scalar_lea.vmem [#allocation7], %s273
        %p275 = pneg %p110
        %p276 = pneg %p107
        %p277 = pneg %p136
        %p278 = pneg %p133
        %s279 = sand.u32 %s123, 1
        %s280 = scalar_lea.sflag [#allocation4], %s279
        %s281 = sand.u32 %s123, 1
        %s282 = smul.addr %s281, 16
        %s283 = scalar_lea.vmem [#allocation8], %s282
        %s284 = smul.u32 16, %s28
        %s285 = smul.u32 256, %s28
        %s286 = smul.u32 8, %s27
        %s287 = smul.u32 8, %s27
        %s288 = smul.u32 8, %s27
        %p289 = scmp.eq.s32.totalorder %s28, 0
        // Predicated region
        $region45: #{tpu_custom_call.1} parent=31 // pred_check
          %p290 = pneg %p289
        $region46: #{tpu_custom_call.1} parent=31 // pred_check_branch
          %292 = sbr.rel (%p290) target = $region48
        $region47: #{tpu_custom_call.1} parent=31 // pred_region
          %293 = vst [vmem:[%s283] sm:$0xff] 0.0
          %294 = vst [vmem:[%s283 + $0x8] sm:$0xff] 0.0
        $region48: #{tpu_custom_call.1} parent=31 // pred_fallthru
          _
        %v295 = vld [vmem:[%s283] sm:$0xff]
        %v296 = vld [vmem:[%s283 + $0x8] sm:$0xff]
        %v297 = vld [vmem:[%s230] sm:$0xff]
        %v298 = vld [vmem:[%s230 + $0x8] sm:$0xff]
        %v299 = vld [vmem:[%s230 + $0x10] sm:$0xff]
        %v300 = vld [vmem:[%s230 + $0x18] sm:$0xff]
        %v301 = vld [vmem:[%s240] sm:$0xff]
        %v302 = vld [vmem:[%s240 + $0x8] sm:$0xff]
        %v303 = vld [vmem:[%s240 + $0x10] sm:$0xff]
        %v304 = vld [vmem:[%s240 + $0x18] sm:$0xff]
        %v305 = vld [vmem:[%s240 + $0x20] sm:$0xff]
        %v306 = vld [vmem:[%s240 + $0x28] sm:$0xff]
        %v307 = vld [vmem:[%s240 + $0x30] sm:$0xff]
        %v308 = vld [vmem:[%s240 + $0x38] sm:$0xff]
        %v309 = vld [vmem:[%s240 + $0x40] sm:$0xff]
        %v310 = vld [vmem:[%s240 + $0x48] sm:$0xff]
        %v311 = vld [vmem:[%s240 + $0x50] sm:$0xff]
        %v312 = vld [vmem:[%s240 + $0x58] sm:$0xff]
        %v313 = vld [vmem:[%s240 + $0x60] sm:$0xff]
        %v314 = vld [vmem:[%s240 + $0x68] sm:$0xff]
        %v315 = vld [vmem:[%s240 + $0x70] sm:$0xff]
        %v316 = vld [vmem:[%s240 + $0x78] sm:$0xff]
        %v317 = vld [vmem:[%s240 + $0x80] sm:$0xff]
        %v318 = vld [vmem:[%s240 + $0x88] sm:$0xff]
        %v319 = vld [vmem:[%s240 + $0x90] sm:$0xff]
        %v320 = vld [vmem:[%s240 + $0x98] sm:$0xff]
        %v321 = vld [vmem:[%s240 + $0xa0] sm:$0xff]
        %v322 = vld [vmem:[%s240 + $0xa8] sm:$0xff]
        %v323 = vld [vmem:[%s240 + $0xb0] sm:$0xff]
        %v324 = vld [vmem:[%s240 + $0xb8] sm:$0xff]
        %v325 = vld [vmem:[%s240 + $0xc0] sm:$0xff]
        %v326 = vld [vmem:[%s240 + $0xc8] sm:$0xff]
        %v327 = vld [vmem:[%s240 + $0xd0] sm:$0xff]
        %v328 = vld [vmem:[%s240 + $0xd8] sm:$0xff]
        %v329 = vld [vmem:[%s240 + $0xe0] sm:$0xff]
        %v330 = vld [vmem:[%s240 + $0xe8] sm:$0xff]
        %v331 = vld [vmem:[%s240 + $0xf0] sm:$0xff]
        %v332 = vld [vmem:[%s240 + $0xf8] sm:$0xff]
        %v333 = vld [vmem:[%s240 + $0x100] sm:$0xff]
        %v334 = vld [vmem:[%s240 + $0x108] sm:$0xff]
        %v335 = vld [vmem:[%s240 + $0x110] sm:$0xff]
        %v336 = vld [vmem:[%s240 + $0x118] sm:$0xff]
        %v337 = vld [vmem:[%s240 + $0x120] sm:$0xff]
        %v338 = vld [vmem:[%s240 + $0x128] sm:$0xff]
        %v339 = vld [vmem:[%s240 + $0x130] sm:$0xff]
        %v340 = vld [vmem:[%s240 + $0x138] sm:$0xff]
        %v341 = vld [vmem:[%s240 + $0x140] sm:$0xff]
        %v342 = vld [vmem:[%s240 + $0x148] sm:$0xff]
        %v343 = vld [vmem:[%s240 + $0x150] sm:$0xff]
        %v344 = vld [vmem:[%s240 + $0x158] sm:$0xff]
        %v345 = vld [vmem:[%s240 + $0x160] sm:$0xff]
        %v346 = vld [vmem:[%s240 + $0x168] sm:$0xff]
        %v347 = vld [vmem:[%s240 + $0x170] sm:$0xff]
        %v348 = vld [vmem:[%s240 + $0x178] sm:$0xff]
        %v349 = vld [vmem:[%s240 + $0x180] sm:$0xff]
        %v350 = vld [vmem:[%s240 + $0x188] sm:$0xff]
        %v351 = vld [vmem:[%s240 + $0x190] sm:$0xff]
        %v352 = vld [vmem:[%s240 + $0x198] sm:$0xff]
        %v353 = vld [vmem:[%s240 + $0x1a0] sm:$0xff]
        %v354 = vld [vmem:[%s240 + $0x1a8] sm:$0xff]
        %v355 = vld [vmem:[%s240 + $0x1b0] sm:$0xff]
        %v356 = vld [vmem:[%s240 + $0x1b8] sm:$0xff]
        %v357 = vld [vmem:[%s240 + $0x1c0] sm:$0xff]
        %v358 = vld [vmem:[%s240 + $0x1c8] sm:$0xff]
        %v359 = vld [vmem:[%s240 + $0x1d0] sm:$0xff]
        %v360 = vld [vmem:[%s240 + $0x1d8] sm:$0xff]
        %v361 = vld [vmem:[%s240 + $0x1e0] sm:$0xff]
        %v362 = vld [vmem:[%s240 + $0x1e8] sm:$0xff]
        %v363 = vld [vmem:[%s240 + $0x1f0] sm:$0xff]
        %v364 = vld [vmem:[%s240 + $0x1f8] sm:$0xff]
        %v365 = vld [vmem:[%s240 + $0x200] sm:$0xff]
        %v366 = vld [vmem:[%s240 + $0x208] sm:$0xff]
        %v367 = vld [vmem:[%s240 + $0x210] sm:$0xff]
        %v368 = vld [vmem:[%s240 + $0x218] sm:$0xff]
        %v369 = vld [vmem:[%s240 + $0x220] sm:$0xff]
        %v370 = vld [vmem:[%s240 + $0x228] sm:$0xff]
        %v371 = vld [vmem:[%s240 + $0x230] sm:$0xff]
        %v372 = vld [vmem:[%s240 + $0x238] sm:$0xff]
        %v373 = vld [vmem:[%s240 + $0x240] sm:$0xff]
        %v374 = vld [vmem:[%s240 + $0x248] sm:$0xff]
        %v375 = vld [vmem:[%s240 + $0x250] sm:$0xff]
        %v376 = vld [vmem:[%s240 + $0x258] sm:$0xff]
        %v377 = vld [vmem:[%s240 + $0x260] sm:$0xff]
        %v378 = vld [vmem:[%s240 + $0x268] sm:$0xff]
        %v379 = vld [vmem:[%s240 + $0x270] sm:$0xff]
        %v380 = vld [vmem:[%s240 + $0x278] sm:$0xff]
        %v381 = vld [vmem:[%s240 + $0x280] sm:$0xff]
        %v382 = vld [vmem:[%s240 + $0x288] sm:$0xff]
        %v383 = vld [vmem:[%s240 + $0x290] sm:$0xff]
        %v384 = vld [vmem:[%s240 + $0x298] sm:$0xff]
        %v385 = vld [vmem:[%s240 + $0x2a0] sm:$0xff]
        %v386 = vld [vmem:[%s240 + $0x2a8] sm:$0xff]
        %v387 = vld [vmem:[%s240 + $0x2b0] sm:$0xff]
        %v388 = vld [vmem:[%s240 + $0x2b8] sm:$0xff]
        %v389 = vld [vmem:[%s240 + $0x2c0] sm:$0xff]
        %v390 = vld [vmem:[%s240 + $0x2c8] sm:$0xff]
        %v391 = vld [vmem:[%s240 + $0x2d0] sm:$0xff]
        %v392 = vld [vmem:[%s240 + $0x2d8] sm:$0xff]
        %v393 = vld [vmem:[%s240 + $0x2e0] sm:$0xff]
        %v394 = vld [vmem:[%s240 + $0x2e8] sm:$0xff]
        %v395 = vld [vmem:[%s240 + $0x2f0] sm:$0xff]
        %v396 = vld [vmem:[%s240 + $0x2f8] sm:$0xff]
        %v397 = vld [vmem:[%s240 + $0x300] sm:$0xff]
        %v398 = vld [vmem:[%s240 + $0x308] sm:$0xff]
        %v399 = vld [vmem:[%s240 + $0x310] sm:$0xff]
        %v400 = vld [vmem:[%s240 + $0x318] sm:$0xff]
        %v401 = vld [vmem:[%s240 + $0x320] sm:$0xff]
        %v402 = vld [vmem:[%s240 + $0x328] sm:$0xff]
        %v403 = vld [vmem:[%s240 + $0x330] sm:$0xff]
        %v404 = vld [vmem:[%s240 + $0x338] sm:$0xff]
        %v405 = vld [vmem:[%s240 + $0x340] sm:$0xff]
        %v406 = vld [vmem:[%s240 + $0x348] sm:$0xff]
        %v407 = vld [vmem:[%s240 + $0x350] sm:$0xff]
        %v408 = vld [vmem:[%s240 + $0x358] sm:$0xff]
        %v409 = vld [vmem:[%s240 + $0x360] sm:$0xff]
        %v410 = vld [vmem:[%s240 + $0x368] sm:$0xff]
        %v411 = vld [vmem:[%s240 + $0x370] sm:$0xff]
        %v412 = vld [vmem:[%s240 + $0x378] sm:$0xff]
        %v413 = vld [vmem:[%s240 + $0x380] sm:$0xff]
        %v414 = vld [vmem:[%s240 + $0x388] sm:$0xff]
        %v415 = vld [vmem:[%s240 + $0x390] sm:$0xff]
        %v416 = vld [vmem:[%s240 + $0x398] sm:$0xff]
        %v417 = vld [vmem:[%s240 + $0x3a0] sm:$0xff]
        %v418 = vld [vmem:[%s240 + $0x3a8] sm:$0xff]
        %v419 = vld [vmem:[%s240 + $0x3b0] sm:$0xff]
        %v420 = vld [vmem:[%s240 + $0x3b8] sm:$0xff]
        %v421 = vld [vmem:[%s240 + $0x3c0] sm:$0xff]
        %v422 = vld [vmem:[%s240 + $0x3c8] sm:$0xff]
        %v423 = vld [vmem:[%s240 + $0x3d0] sm:$0xff]
        %v424 = vld [vmem:[%s240 + $0x3d8] sm:$0xff]
        %v425 = vld [vmem:[%s240 + $0x3e0] sm:$0xff]
        %v426 = vld [vmem:[%s240 + $0x3e8] sm:$0xff]
        %v427 = vld [vmem:[%s240 + $0x3f0] sm:$0xff]
        %v428 = vld [vmem:[%s240 + $0x3f8] sm:$0xff]
        %v429 = vld [vmem:[%s240 + $0x400] sm:$0xff]
        %v430 = vld [vmem:[%s240 + $0x408] sm:$0xff]
        %v431 = vld [vmem:[%s240 + $0x410] sm:$0xff]
        %v432 = vld [vmem:[%s240 + $0x418] sm:$0xff]
        %v433 = vld [vmem:[%s240 + $0x420] sm:$0xff]
        %v434 = vld [vmem:[%s240 + $0x428] sm:$0xff]
        %v435 = vld [vmem:[%s240 + $0x430] sm:$0xff]
        %v436 = vld [vmem:[%s240 + $0x438] sm:$0xff]
        %v437 = vld [vmem:[%s240 + $0x440] sm:$0xff]
        %v438 = vld [vmem:[%s240 + $0x448] sm:$0xff]
        %v439 = vld [vmem:[%s240 + $0x450] sm:$0xff]
        %v440 = vld [vmem:[%s240 + $0x458] sm:$0xff]
        %v441 = vld [vmem:[%s240 + $0x460] sm:$0xff]
        %v442 = vld [vmem:[%s240 + $0x468] sm:$0xff]
        %v443 = vld [vmem:[%s240 + $0x470] sm:$0xff]
        %v444 = vld [vmem:[%s240 + $0x478] sm:$0xff]
        %v445 = vld [vmem:[%s240 + $0x480] sm:$0xff]
        %v446 = vld [vmem:[%s240 + $0x488] sm:$0xff]
        %v447 = vld [vmem:[%s240 + $0x490] sm:$0xff]
        %v448 = vld [vmem:[%s240 + $0x498] sm:$0xff]
        %v449 = vld [vmem:[%s240 + $0x4a0] sm:$0xff]
        %v450 = vld [vmem:[%s240 + $0x4a8] sm:$0xff]
        %v451 = vld [vmem:[%s240 + $0x4b0] sm:$0xff]
        %v452 = vld [vmem:[%s240 + $0x4b8] sm:$0xff]
        %v453 = vld [vmem:[%s240 + $0x4c0] sm:$0xff]
        %v454 = vld [vmem:[%s240 + $0x4c8] sm:$0xff]
        %v455 = vld [vmem:[%s240 + $0x4d0] sm:$0xff]
        %v456 = vld [vmem:[%s240 + $0x4d8] sm:$0xff]
        %v457 = vld [vmem:[%s240 + $0x4e0] sm:$0xff]
        %v458 = vld [vmem:[%s240 + $0x4e8] sm:$0xff]
        %v459 = vld [vmem:[%s240 + $0x4f0] sm:$0xff]
        %v460 = vld [vmem:[%s240 + $0x4f8] sm:$0xff]
        %v461 = vld [vmem:[%s240 + $0x500] sm:$0xff]
        %v462 = vld [vmem:[%s240 + $0x508] sm:$0xff]
        %v463 = vld [vmem:[%s240 + $0x510] sm:$0xff]
        %v464 = vld [vmem:[%s240 + $0x518] sm:$0xff]
        %v465 = vld [vmem:[%s240 + $0x520] sm:$0xff]
        %v466 = vld [vmem:[%s240 + $0x528] sm:$0xff]
        %v467 = vld [vmem:[%s240 + $0x530] sm:$0xff]
        %v468 = vld [vmem:[%s240 + $0x538] sm:$0xff]
        %v469 = vld [vmem:[%s240 + $0x540] sm:$0xff]
        %v470 = vld [vmem:[%s240 + $0x548] sm:$0xff]
        %v471 = vld [vmem:[%s240 + $0x550] sm:$0xff]
        %v472 = vld [vmem:[%s240 + $0x558] sm:$0xff]
        %v473 = vld [vmem:[%s240 + $0x560] sm:$0xff]
        %v474 = vld [vmem:[%s240 + $0x568] sm:$0xff]
        %v475 = vld [vmem:[%s240 + $0x570] sm:$0xff]
        %v476 = vld [vmem:[%s240 + $0x578] sm:$0xff]
        %v477 = vld [vmem:[%s240 + $0x580] sm:$0xff]
        %v478 = vld [vmem:[%s240 + $0x588] sm:$0xff]
        %v479 = vld [vmem:[%s240 + $0x590] sm:$0xff]
        %v480 = vld [vmem:[%s240 + $0x598] sm:$0xff]
        %v481 = vld [vmem:[%s240 + $0x5a0] sm:$0xff]
        %v482 = vld [vmem:[%s240 + $0x5a8] sm:$0xff]
        %v483 = vld [vmem:[%s240 + $0x5b0] sm:$0xff]
        %v484 = vld [vmem:[%s240 + $0x5b8] sm:$0xff]
        %v485 = vld [vmem:[%s240 + $0x5c0] sm:$0xff]
        %v486 = vld [vmem:[%s240 + $0x5c8] sm:$0xff]
        %v487 = vld [vmem:[%s240 + $0x5d0] sm:$0xff]
        %v488 = vld [vmem:[%s240 + $0x5d8] sm:$0xff]
        %v489 = vld [vmem:[%s240 + $0x5e0] sm:$0xff]
        %v490 = vld [vmem:[%s240 + $0x5e8] sm:$0xff]
        %v491 = vld [vmem:[%s240 + $0x5f0] sm:$0xff]
        %v492 = vld [vmem:[%s240 + $0x5f8] sm:$0xff]
        %v493 = vld [vmem:[%s240 + $0x600] sm:$0xff]
        %v494 = vld [vmem:[%s240 + $0x608] sm:$0xff]
        %v495 = vld [vmem:[%s240 + $0x610] sm:$0xff]
        %v496 = vld [vmem:[%s240 + $0x618] sm:$0xff]
        %v497 = vld [vmem:[%s240 + $0x620] sm:$0xff]
        %v498 = vld [vmem:[%s240 + $0x628] sm:$0xff]
        %v499 = vld [vmem:[%s240 + $0x630] sm:$0xff]
        %v500 = vld [vmem:[%s240 + $0x638] sm:$0xff]
        %v501 = vld [vmem:[%s240 + $0x640] sm:$0xff]
        %v502 = vld [vmem:[%s240 + $0x648] sm:$0xff]
        %v503 = vld [vmem:[%s240 + $0x650] sm:$0xff]
        %v504 = vld [vmem:[%s240 + $0x658] sm:$0xff]
        %v505 = vld [vmem:[%s240 + $0x660] sm:$0xff]
        %v506 = vld [vmem:[%s240 + $0x668] sm:$0xff]
        %v507 = vld [vmem:[%s240 + $0x670] sm:$0xff]
        %v508 = vld [vmem:[%s240 + $0x678] sm:$0xff]
        %v509 = vld [vmem:[%s240 + $0x680] sm:$0xff]
        %v510 = vld [vmem:[%s240 + $0x688] sm:$0xff]
        %v511 = vld [vmem:[%s240 + $0x690] sm:$0xff]
        %v512 = vld [vmem:[%s240 + $0x698] sm:$0xff]
        %v513 = vld [vmem:[%s240 + $0x6a0] sm:$0xff]
        %v514 = vld [vmem:[%s240 + $0x6a8] sm:$0xff]
        %v515 = vld [vmem:[%s240 + $0x6b0] sm:$0xff]
        %v516 = vld [vmem:[%s240 + $0x6b8] sm:$0xff]
        %v517 = vld [vmem:[%s240 + $0x6c0] sm:$0xff]
        %v518 = vld [vmem:[%s240 + $0x6c8] sm:$0xff]
        %v519 = vld [vmem:[%s240 + $0x6d0] sm:$0xff]
        %v520 = vld [vmem:[%s240 + $0x6d8] sm:$0xff]
        %v521 = vld [vmem:[%s240 + $0x6e0] sm:$0xff]
        %v522 = vld [vmem:[%s240 + $0x6e8] sm:$0xff]
        %v523 = vld [vmem:[%s240 + $0x6f0] sm:$0xff]
        %v524 = vld [vmem:[%s240 + $0x6f8] sm:$0xff]
        %v525 = vld [vmem:[%s240 + $0x700] sm:$0xff]
        %v526 = vld [vmem:[%s240 + $0x708] sm:$0xff]
        %v527 = vld [vmem:[%s240 + $0x710] sm:$0xff]
        %v528 = vld [vmem:[%s240 + $0x718] sm:$0xff]
        %v529 = vld [vmem:[%s240 + $0x720] sm:$0xff]
        %v530 = vld [vmem:[%s240 + $0x728] sm:$0xff]
        %v531 = vld [vmem:[%s240 + $0x730] sm:$0xff]
        %v532 = vld [vmem:[%s240 + $0x738] sm:$0xff]
        %v533 = vld [vmem:[%s240 + $0x740] sm:$0xff]
        %v534 = vld [vmem:[%s240 + $0x748] sm:$0xff]
        %v535 = vld [vmem:[%s240 + $0x750] sm:$0xff]
        %v536 = vld [vmem:[%s240 + $0x758] sm:$0xff]
        %v537 = vld [vmem:[%s240 + $0x760] sm:$0xff]
        %v538 = vld [vmem:[%s240 + $0x768] sm:$0xff]
        %v539 = vld [vmem:[%s240 + $0x770] sm:$0xff]
        %v540 = vld [vmem:[%s240 + $0x778] sm:$0xff]
        %v541 = vld [vmem:[%s240 + $0x780] sm:$0xff]
        %v542 = vld [vmem:[%s240 + $0x788] sm:$0xff]
        %v543 = vld [vmem:[%s240 + $0x790] sm:$0xff]
        %v544 = vld [vmem:[%s240 + $0x798] sm:$0xff]
        %v545 = vld [vmem:[%s240 + $0x7a0] sm:$0xff]
        %v546 = vld [vmem:[%s240 + $0x7a8] sm:$0xff]
        %v547 = vld [vmem:[%s240 + $0x7b0] sm:$0xff]
        %v548 = vld [vmem:[%s240 + $0x7b8] sm:$0xff]
        %v549 = vld [vmem:[%s240 + $0x7c0] sm:$0xff]
        %v550 = vld [vmem:[%s240 + $0x7c8] sm:$0xff]
        %v551 = vld [vmem:[%s240 + $0x7d0] sm:$0xff]
        %v552 = vld [vmem:[%s240 + $0x7d8] sm:$0xff]
        %v553 = vld [vmem:[%s240 + $0x7e0] sm:$0xff]
        %v554 = vld [vmem:[%s240 + $0x7e8] sm:$0xff]
        %v555 = vld [vmem:[%s240 + $0x7f0] sm:$0xff]
        %v556 = vld [vmem:[%s240 + $0x7f8] sm:$0xff]
        %v557 = vld [vmem:[%s240 + $0x800] sm:$0xff]
        %v558 = vld [vmem:[%s240 + $0x808] sm:$0xff]
        %v559 = vld [vmem:[%s240 + $0x810] sm:$0xff]
        %v560 = vld [vmem:[%s240 + $0x818] sm:$0xff]
        %v561 = vld [vmem:[%s240 + $0x820] sm:$0xff]
        %v562 = vld [vmem:[%s240 + $0x828] sm:$0xff]
        %v563 = vld [vmem:[%s240 + $0x830] sm:$0xff]
        %v564 = vld [vmem:[%s240 + $0x838] sm:$0xff]
        %v565 = vld [vmem:[%s240 + $0x840] sm:$0xff]
        %v566 = vld [vmem:[%s240 + $0x848] sm:$0xff]
        %v567 = vld [vmem:[%s240 + $0x850] sm:$0xff]
        %v568 = vld [vmem:[%s240 + $0x858] sm:$0xff]
        %v569 = vld [vmem:[%s240 + $0x860] sm:$0xff]
        %v570 = vld [vmem:[%s240 + $0x868] sm:$0xff]
        %v571 = vld [vmem:[%s240 + $0x870] sm:$0xff]
        %v572 = vld [vmem:[%s240 + $0x878] sm:$0xff]
        %v573 = vld [vmem:[%s240 + $0x880] sm:$0xff]
        %v574 = vld [vmem:[%s240 + $0x888] sm:$0xff]
        %v575 = vld [vmem:[%s240 + $0x890] sm:$0xff]
        %v576 = vld [vmem:[%s240 + $0x898] sm:$0xff]
        %v577 = vld [vmem:[%s240 + $0x8a0] sm:$0xff]
        %v578 = vld [vmem:[%s240 + $0x8a8] sm:$0xff]
        %v579 = vld [vmem:[%s240 + $0x8b0] sm:$0xff]
        %v580 = vld [vmem:[%s240 + $0x8b8] sm:$0xff]
        %v581 = vld [vmem:[%s240 + $0x8c0] sm:$0xff]
        %v582 = vld [vmem:[%s240 + $0x8c8] sm:$0xff]
        %v583 = vld [vmem:[%s240 + $0x8d0] sm:$0xff]
        %v584 = vld [vmem:[%s240 + $0x8d8] sm:$0xff]
        %v585 = vld [vmem:[%s240 + $0x8e0] sm:$0xff]
        %v586 = vld [vmem:[%s240 + $0x8e8] sm:$0xff]
        %v587 = vld [vmem:[%s240 + $0x8f0] sm:$0xff]
        %v588 = vld [vmem:[%s240 + $0x8f8] sm:$0xff]
        %v589 = vld [vmem:[%s240 + $0x900] sm:$0xff]
        %v590 = vld [vmem:[%s240 + $0x908] sm:$0xff]
        %v591 = vld [vmem:[%s240 + $0x910] sm:$0xff]
        %v592 = vld [vmem:[%s240 + $0x918] sm:$0xff]
        %v593 = vld [vmem:[%s240 + $0x920] sm:$0xff]
        %v594 = vld [vmem:[%s240 + $0x928] sm:$0xff]
        %v595 = vld [vmem:[%s240 + $0x930] sm:$0xff]
        %v596 = vld [vmem:[%s240 + $0x938] sm:$0xff]
        %v597 = vld [vmem:[%s240 + $0x940] sm:$0xff]
        %v598 = vld [vmem:[%s240 + $0x948] sm:$0xff]
        %v599 = vld [vmem:[%s240 + $0x950] sm:$0xff]
        %v600 = vld [vmem:[%s240 + $0x958] sm:$0xff]
        %v601 = vld [vmem:[%s240 + $0x960] sm:$0xff]
        %v602 = vld [vmem:[%s240 + $0x968] sm:$0xff]
        %v603 = vld [vmem:[%s240 + $0x970] sm:$0xff]
        %v604 = vld [vmem:[%s240 + $0x978] sm:$0xff]
        %v605 = vld [vmem:[%s240 + $0x980] sm:$0xff]
        %v606 = vld [vmem:[%s240 + $0x988] sm:$0xff]
        %v607 = vld [vmem:[%s240 + $0x990] sm:$0xff]
        %v608 = vld [vmem:[%s240 + $0x998] sm:$0xff]
        %v609 = vld [vmem:[%s240 + $0x9a0] sm:$0xff]
        %v610 = vld [vmem:[%s240 + $0x9a8] sm:$0xff]
        %v611 = vld [vmem:[%s240 + $0x9b0] sm:$0xff]
        %v612 = vld [vmem:[%s240 + $0x9b8] sm:$0xff]
        %v613 = vld [vmem:[%s240 + $0x9c0] sm:$0xff]
        %v614 = vld [vmem:[%s240 + $0x9c8] sm:$0xff]
        %v615 = vld [vmem:[%s240 + $0x9d0] sm:$0xff]
        %v616 = vld [vmem:[%s240 + $0x9d8] sm:$0xff]
        %v617 = vld [vmem:[%s240 + $0x9e0] sm:$0xff]
        %v618 = vld [vmem:[%s240 + $0x9e8] sm:$0xff]
        %v619 = vld [vmem:[%s240 + $0x9f0] sm:$0xff]
        %v620 = vld [vmem:[%s240 + $0x9f8] sm:$0xff]
        %v621 = vld [vmem:[%s240 + $0xa00] sm:$0xff]
        %v622 = vld [vmem:[%s240 + $0xa08] sm:$0xff]
        %v623 = vld [vmem:[%s240 + $0xa10] sm:$0xff]
        %v624 = vld [vmem:[%s240 + $0xa18] sm:$0xff]
        %v625 = vld [vmem:[%s240 + $0xa20] sm:$0xff]
        %v626 = vld [vmem:[%s240 + $0xa28] sm:$0xff]
        %v627 = vld [vmem:[%s240 + $0xa30] sm:$0xff]
        %v628 = vld [vmem:[%s240 + $0xa38] sm:$0xff]
        %v629 = vld [vmem:[%s240 + $0xa40] sm:$0xff]
        %v630 = vld [vmem:[%s240 + $0xa48] sm:$0xff]
        %v631 = vld [vmem:[%s240 + $0xa50] sm:$0xff]
        %v632 = vld [vmem:[%s240 + $0xa58] sm:$0xff]
        %v633 = vld [vmem:[%s240 + $0xa60] sm:$0xff]
        %v634 = vld [vmem:[%s240 + $0xa68] sm:$0xff]
        %v635 = vld [vmem:[%s240 + $0xa70] sm:$0xff]
        %v636 = vld [vmem:[%s240 + $0xa78] sm:$0xff]
        %v637 = vld [vmem:[%s240 + $0xa80] sm:$0xff]
        %v638 = vld [vmem:[%s240 + $0xa88] sm:$0xff]
        %v639 = vld [vmem:[%s240 + $0xa90] sm:$0xff]
        %v640 = vld [vmem:[%s240 + $0xa98] sm:$0xff]
        %v641 = vld [vmem:[%s240 + $0xaa0] sm:$0xff]
        %v642 = vld [vmem:[%s240 + $0xaa8] sm:$0xff]
        %v643 = vld [vmem:[%s240 + $0xab0] sm:$0xff]
        %v644 = vld [vmem:[%s240 + $0xab8] sm:$0xff]
        %v645 = vld [vmem:[%s240 + $0xac0] sm:$0xff]
        %v646 = vld [vmem:[%s240 + $0xac8] sm:$0xff]
        %v647 = vld [vmem:[%s240 + $0xad0] sm:$0xff]
        %v648 = vld [vmem:[%s240 + $0xad8] sm:$0xff]
        %v649 = vld [vmem:[%s240 + $0xae0] sm:$0xff]
        %v650 = vld [vmem:[%s240 + $0xae8] sm:$0xff]
        %v651 = vld [vmem:[%s240 + $0xaf0] sm:$0xff]
        %v652 = vld [vmem:[%s240 + $0xaf8] sm:$0xff]
        %v653 = vld [vmem:[%s240 + $0xb00] sm:$0xff]
        %v654 = vld [vmem:[%s240 + $0xb08] sm:$0xff]
        %v655 = vld [vmem:[%s240 + $0xb10] sm:$0xff]
        %v656 = vld [vmem:[%s240 + $0xb18] sm:$0xff]
        %v657 = vld [vmem:[%s240 + $0xb20] sm:$0xff]
        %v658 = vld [vmem:[%s240 + $0xb28] sm:$0xff]
        %v659 = vld [vmem:[%s240 + $0xb30] sm:$0xff]
        %v660 = vld [vmem:[%s240 + $0xb38] sm:$0xff]
        %v661 = vld [vmem:[%s240 + $0xb40] sm:$0xff]
        %v662 = vld [vmem:[%s240 + $0xb48] sm:$0xff]
        %v663 = vld [vmem:[%s240 + $0xb50] sm:$0xff]
        %v664 = vld [vmem:[%s240 + $0xb58] sm:$0xff]
        %v665 = vld [vmem:[%s240 + $0xb60] sm:$0xff]
        %v666 = vld [vmem:[%s240 + $0xb68] sm:$0xff]
        %v667 = vld [vmem:[%s240 + $0xb70] sm:$0xff]
        %v668 = vld [vmem:[%s240 + $0xb78] sm:$0xff]
        %v669 = vld [vmem:[%s240 + $0xb80] sm:$0xff]
        %v670 = vld [vmem:[%s240 + $0xb88] sm:$0xff]
        %v671 = vld [vmem:[%s240 + $0xb90] sm:$0xff]
        %v672 = vld [vmem:[%s240 + $0xb98] sm:$0xff]
        %v673 = vld [vmem:[%s240 + $0xba0] sm:$0xff]
        %v674 = vld [vmem:[%s240 + $0xba8] sm:$0xff]
        %v675 = vld [vmem:[%s240 + $0xbb0] sm:$0xff]
        %v676 = vld [vmem:[%s240 + $0xbb8] sm:$0xff]
        %v677 = vld [vmem:[%s240 + $0xbc0] sm:$0xff]
        %v678 = vld [vmem:[%s240 + $0xbc8] sm:$0xff]
        %v679 = vld [vmem:[%s240 + $0xbd0] sm:$0xff]
        %v680 = vld [vmem:[%s240 + $0xbd8] sm:$0xff]
        %v681 = vld [vmem:[%s240 + $0xbe0] sm:$0xff]
        %v682 = vld [vmem:[%s240 + $0xbe8] sm:$0xff]
        %v683 = vld [vmem:[%s240 + $0xbf0] sm:$0xff]
        %v684 = vld [vmem:[%s240 + $0xbf8] sm:$0xff]
        %v685 = vld [vmem:[%s240 + $0xc00] sm:$0xff]
        %v686 = vld [vmem:[%s240 + $0xc08] sm:$0xff]
        %v687 = vld [vmem:[%s240 + $0xc10] sm:$0xff]
        %v688 = vld [vmem:[%s240 + $0xc18] sm:$0xff]
        %v689 = vld [vmem:[%s240 + $0xc20] sm:$0xff]
        %v690 = vld [vmem:[%s240 + $0xc28] sm:$0xff]
        %v691 = vld [vmem:[%s240 + $0xc30] sm:$0xff]
        %v692 = vld [vmem:[%s240 + $0xc38] sm:$0xff]
        %v693 = vld [vmem:[%s240 + $0xc40] sm:$0xff]
        %v694 = vld [vmem:[%s240 + $0xc48] sm:$0xff]
        %v695 = vld [vmem:[%s240 + $0xc50] sm:$0xff]
        %v696 = vld [vmem:[%s240 + $0xc58] sm:$0xff]
        %v697 = vld [vmem:[%s240 + $0xc60] sm:$0xff]
        %v698 = vld [vmem:[%s240 + $0xc68] sm:$0xff]
        %v699 = vld [vmem:[%s240 + $0xc70] sm:$0xff]
        %v700 = vld [vmem:[%s240 + $0xc78] sm:$0xff]
        %v701 = vld [vmem:[%s240 + $0xc80] sm:$0xff]
        %v702 = vld [vmem:[%s240 + $0xc88] sm:$0xff]
        %v703 = vld [vmem:[%s240 + $0xc90] sm:$0xff]
        %v704 = vld [vmem:[%s240 + $0xc98] sm:$0xff]
        %v705 = vld [vmem:[%s240 + $0xca0] sm:$0xff]
        %v706 = vld [vmem:[%s240 + $0xca8] sm:$0xff]
        %v707 = vld [vmem:[%s240 + $0xcb0] sm:$0xff]
        %v708 = vld [vmem:[%s240 + $0xcb8] sm:$0xff]
        %v709 = vld [vmem:[%s240 + $0xcc0] sm:$0xff]
        %v710 = vld [vmem:[%s240 + $0xcc8] sm:$0xff]
        %v711 = vld [vmem:[%s240 + $0xcd0] sm:$0xff]
        %v712 = vld [vmem:[%s240 + $0xcd8] sm:$0xff]
        %v713 = vld [vmem:[%s240 + $0xce0] sm:$0xff]
        %v714 = vld [vmem:[%s240 + $0xce8] sm:$0xff]
        %v715 = vld [vmem:[%s240 + $0xcf0] sm:$0xff]
        %v716 = vld [vmem:[%s240 + $0xcf8] sm:$0xff]
        %v717 = vld [vmem:[%s240 + $0xd00] sm:$0xff]
        %v718 = vld [vmem:[%s240 + $0xd08] sm:$0xff]
        %v719 = vld [vmem:[%s240 + $0xd10] sm:$0xff]
        %v720 = vld [vmem:[%s240 + $0xd18] sm:$0xff]
        %v721 = vld [vmem:[%s240 + $0xd20] sm:$0xff]
        %v722 = vld [vmem:[%s240 + $0xd28] sm:$0xff]
        %v723 = vld [vmem:[%s240 + $0xd30] sm:$0xff]
        %v724 = vld [vmem:[%s240 + $0xd38] sm:$0xff]
        %v725 = vld [vmem:[%s240 + $0xd40] sm:$0xff]
        %v726 = vld [vmem:[%s240 + $0xd48] sm:$0xff]
        %v727 = vld [vmem:[%s240 + $0xd50] sm:$0xff]
        %v728 = vld [vmem:[%s240 + $0xd58] sm:$0xff]
        %v729 = vld [vmem:[%s240 + $0xd60] sm:$0xff]
        %v730 = vld [vmem:[%s240 + $0xd68] sm:$0xff]
        %v731 = vld [vmem:[%s240 + $0xd70] sm:$0xff]
        %v732 = vld [vmem:[%s240 + $0xd78] sm:$0xff]
        %v733 = vld [vmem:[%s240 + $0xd80] sm:$0xff]
        %v734 = vld [vmem:[%s240 + $0xd88] sm:$0xff]
        %v735 = vld [vmem:[%s240 + $0xd90] sm:$0xff]
        %v736 = vld [vmem:[%s240 + $0xd98] sm:$0xff]
        %v737 = vld [vmem:[%s240 + $0xda0] sm:$0xff]
        %v738 = vld [vmem:[%s240 + $0xda8] sm:$0xff]
        %v739 = vld [vmem:[%s240 + $0xdb0] sm:$0xff]
        %v740 = vld [vmem:[%s240 + $0xdb8] sm:$0xff]
        %v741 = vld [vmem:[%s240 + $0xdc0] sm:$0xff]
        %v742 = vld [vmem:[%s240 + $0xdc8] sm:$0xff]
        %v743 = vld [vmem:[%s240 + $0xdd0] sm:$0xff]
        %v744 = vld [vmem:[%s240 + $0xdd8] sm:$0xff]
        %v745 = vld [vmem:[%s240 + $0xde0] sm:$0xff]
        %v746 = vld [vmem:[%s240 + $0xde8] sm:$0xff]
        %v747 = vld [vmem:[%s240 + $0xdf0] sm:$0xff]
        %v748 = vld [vmem:[%s240 + $0xdf8] sm:$0xff]
        %v749 = vld [vmem:[%s240 + $0xe00] sm:$0xff]
        %v750 = vld [vmem:[%s240 + $0xe08] sm:$0xff]
        %v751 = vld [vmem:[%s240 + $0xe10] sm:$0xff]
        %v752 = vld [vmem:[%s240 + $0xe18] sm:$0xff]
        %v753 = vld [vmem:[%s240 + $0xe20] sm:$0xff]
        %v754 = vld [vmem:[%s240 + $0xe28] sm:$0xff]
        %v755 = vld [vmem:[%s240 + $0xe30] sm:$0xff]
        %v756 = vld [vmem:[%s240 + $0xe38] sm:$0xff]
        %v757 = vld [vmem:[%s240 + $0xe40] sm:$0xff]
        %v758 = vld [vmem:[%s240 + $0xe48] sm:$0xff]
        %v759 = vld [vmem:[%s240 + $0xe50] sm:$0xff]
        %v760 = vld [vmem:[%s240 + $0xe58] sm:$0xff]
        %v761 = vld [vmem:[%s240 + $0xe60] sm:$0xff]
        %v762 = vld [vmem:[%s240 + $0xe68] sm:$0xff]
        %v763 = vld [vmem:[%s240 + $0xe70] sm:$0xff]
        %v764 = vld [vmem:[%s240 + $0xe78] sm:$0xff]
        %v765 = vld [vmem:[%s240 + $0xe80] sm:$0xff]
        %v766 = vld [vmem:[%s240 + $0xe88] sm:$0xff]
        %v767 = vld [vmem:[%s240 + $0xe90] sm:$0xff]
        %v768 = vld [vmem:[%s240 + $0xe98] sm:$0xff]
        %v769 = vld [vmem:[%s240 + $0xea0] sm:$0xff]
        %v770 = vld [vmem:[%s240 + $0xea8] sm:$0xff]
        %v771 = vld [vmem:[%s240 + $0xeb0] sm:$0xff]
        %v772 = vld [vmem:[%s240 + $0xeb8] sm:$0xff]
        %v773 = vld [vmem:[%s240 + $0xec0] sm:$0xff]
        %v774 = vld [vmem:[%s240 + $0xec8] sm:$0xff]
        %v775 = vld [vmem:[%s240 + $0xed0] sm:$0xff]
        %v776 = vld [vmem:[%s240 + $0xed8] sm:$0xff]
        %v777 = vld [vmem:[%s240 + $0xee0] sm:$0xff]
        %v778 = vld [vmem:[%s240 + $0xee8] sm:$0xff]
        %v779 = vld [vmem:[%s240 + $0xef0] sm:$0xff]
        %v780 = vld [vmem:[%s240 + $0xef8] sm:$0xff]
        %v781 = vld [vmem:[%s240 + $0xf00] sm:$0xff]
        %v782 = vld [vmem:[%s240 + $0xf08] sm:$0xff]
        %v783 = vld [vmem:[%s240 + $0xf10] sm:$0xff]
        %v784 = vld [vmem:[%s240 + $0xf18] sm:$0xff]
        %v785 = vld [vmem:[%s240 + $0xf20] sm:$0xff]
        %v786 = vld [vmem:[%s240 + $0xf28] sm:$0xff]
        %v787 = vld [vmem:[%s240 + $0xf30] sm:$0xff]
        %v788 = vld [vmem:[%s240 + $0xf38] sm:$0xff]
        %v789 = vld [vmem:[%s240 + $0xf40] sm:$0xff]
        %v790 = vld [vmem:[%s240 + $0xf48] sm:$0xff]
        %v791 = vld [vmem:[%s240 + $0xf50] sm:$0xff]
        %v792 = vld [vmem:[%s240 + $0xf58] sm:$0xff]
        %v793 = vld [vmem:[%s240 + $0xf60] sm:$0xff]
        %v794 = vld [vmem:[%s240 + $0xf68] sm:$0xff]
        %v795 = vld [vmem:[%s240 + $0xf70] sm:$0xff]
        %v796 = vld [vmem:[%s240 + $0xf78] sm:$0xff]
        %v797 = vld [vmem:[%s240 + $0xf80] sm:$0xff]
        %v798 = vld [vmem:[%s240 + $0xf88] sm:$0xff]
        %v799 = vld [vmem:[%s240 + $0xf90] sm:$0xff]
        %v800 = vld [vmem:[%s240 + $0xf98] sm:$0xff]
        %v801 = vld [vmem:[%s240 + $0xfa0] sm:$0xff]
        %v802 = vld [vmem:[%s240 + $0xfa8] sm:$0xff]
        %v803 = vld [vmem:[%s240 + $0xfb0] sm:$0xff]
        %v804 = vld [vmem:[%s240 + $0xfb8] sm:$0xff]
        %v805 = vld [vmem:[%s240 + $0xfc0] sm:$0xff]
        %v806 = vld [vmem:[%s240 + $0xfc8] sm:$0xff]
        %v807 = vld [vmem:[%s240 + $0xfd0] sm:$0xff]
        %v808 = vld [vmem:[%s240 + $0xfd8] sm:$0xff]
        %v809 = vld [vmem:[%s240 + $0xfe0] sm:$0xff]
        %v810 = vld [vmem:[%s240 + $0xfe8] sm:$0xff]
        %v811 = vld [vmem:[%s240 + $0xff0] sm:$0xff]
        %v812 = vld [vmem:[%s240 + $0xff8] sm:$0xff]
        %v813 = vld [vmem:[%s240 + $0x1000] sm:$0xff]
        %v814 = vld [vmem:[%s240 + $0x1008] sm:$0xff]
        %v815 = vld [vmem:[%s240 + $0x1010] sm:$0xff]
        %v816 = vld [vmem:[%s240 + $0x1018] sm:$0xff]
        %v817 = vld [vmem:[%s240 + $0x1020] sm:$0xff]
        %v818 = vld [vmem:[%s240 + $0x1028] sm:$0xff]
        %v819 = vld [vmem:[%s240 + $0x1030] sm:$0xff]
        %v820 = vld [vmem:[%s240 + $0x1038] sm:$0xff]
        %v821 = vld [vmem:[%s240 + $0x1040] sm:$0xff]
        %v822 = vld [vmem:[%s240 + $0x1048] sm:$0xff]
        %v823 = vld [vmem:[%s240 + $0x1050] sm:$0xff]
        %v824 = vld [vmem:[%s240 + $0x1058] sm:$0xff]
        %v825 = vld [vmem:[%s240 + $0x1060] sm:$0xff]
        %v826 = vld [vmem:[%s240 + $0x1068] sm:$0xff]
        %v827 = vld [vmem:[%s240 + $0x1070] sm:$0xff]
        %v828 = vld [vmem:[%s240 + $0x1078] sm:$0xff]
        %v829 = vld [vmem:[%s240 + $0x1080] sm:$0xff]
        %v830 = vld [vmem:[%s240 + $0x1088] sm:$0xff]
        %v831 = vld [vmem:[%s240 + $0x1090] sm:$0xff]
        %v832 = vld [vmem:[%s240 + $0x1098] sm:$0xff]
        %v833 = vld [vmem:[%s240 + $0x10a0] sm:$0xff]
        %v834 = vld [vmem:[%s240 + $0x10a8] sm:$0xff]
        %v835 = vld [vmem:[%s240 + $0x10b0] sm:$0xff]
        %v836 = vld [vmem:[%s240 + $0x10b8] sm:$0xff]
        %v837 = vld [vmem:[%s240 + $0x10c0] sm:$0xff]
        %v838 = vld [vmem:[%s240 + $0x10c8] sm:$0xff]
        %v839 = vld [vmem:[%s240 + $0x10d0] sm:$0xff]
        %v840 = vld [vmem:[%s240 + $0x10d8] sm:$0xff]
        %v841 = vld [vmem:[%s240 + $0x10e0] sm:$0xff]
        %v842 = vld [vmem:[%s240 + $0x10e8] sm:$0xff]
        %v843 = vld [vmem:[%s240 + $0x10f0] sm:$0xff]
        %v844 = vld [vmem:[%s240 + $0x10f8] sm:$0xff]
        %v845 = vld [vmem:[%s240 + $0x1100] sm:$0xff]
        %v846 = vld [vmem:[%s240 + $0x1108] sm:$0xff]
        %v847 = vld [vmem:[%s240 + $0x1110] sm:$0xff]
        %v848 = vld [vmem:[%s240 + $0x1118] sm:$0xff]
        %v849 = vld [vmem:[%s240 + $0x1120] sm:$0xff]
        %v850 = vld [vmem:[%s240 + $0x1128] sm:$0xff]
        %v851 = vld [vmem:[%s240 + $0x1130] sm:$0xff]
        %v852 = vld [vmem:[%s240 + $0x1138] sm:$0xff]
        %v853 = vld [vmem:[%s240 + $0x1140] sm:$0xff]
        %v854 = vld [vmem:[%s240 + $0x1148] sm:$0xff]
        %v855 = vld [vmem:[%s240 + $0x1150] sm:$0xff]
        %v856 = vld [vmem:[%s240 + $0x1158] sm:$0xff]
        %v857 = vld [vmem:[%s240 + $0x1160] sm:$0xff]
        %v858 = vld [vmem:[%s240 + $0x1168] sm:$0xff]
        %v859 = vld [vmem:[%s240 + $0x1170] sm:$0xff]
        %v860 = vld [vmem:[%s240 + $0x1178] sm:$0xff]
        %v861 = vld [vmem:[%s240 + $0x1180] sm:$0xff]
        %v862 = vld [vmem:[%s240 + $0x1188] sm:$0xff]
        %v863 = vld [vmem:[%s240 + $0x1190] sm:$0xff]
        %v864 = vld [vmem:[%s240 + $0x1198] sm:$0xff]
        %v865 = vld [vmem:[%s240 + $0x11a0] sm:$0xff]
        %v866 = vld [vmem:[%s240 + $0x11a8] sm:$0xff]
        %v867 = vld [vmem:[%s240 + $0x11b0] sm:$0xff]
        %v868 = vld [vmem:[%s240 + $0x11b8] sm:$0xff]
        %v869 = vld [vmem:[%s240 + $0x11c0] sm:$0xff]
        %v870 = vld [vmem:[%s240 + $0x11c8] sm:$0xff]
        %v871 = vld [vmem:[%s240 + $0x11d0] sm:$0xff]
        %v872 = vld [vmem:[%s240 + $0x11d8] sm:$0xff]
        %v873 = vld [vmem:[%s240 + $0x11e0] sm:$0xff]
        %v874 = vld [vmem:[%s240 + $0x11e8] sm:$0xff]
        %v875 = vld [vmem:[%s240 + $0x11f0] sm:$0xff]
        %v876 = vld [vmem:[%s240 + $0x11f8] sm:$0xff]
        %v877 = vld [vmem:[%s240 + $0x1200] sm:$0xff]
        %v878 = vld [vmem:[%s240 + $0x1208] sm:$0xff]
        %v879 = vld [vmem:[%s240 + $0x1210] sm:$0xff]
        %v880 = vld [vmem:[%s240 + $0x1218] sm:$0xff]
        %v881 = vld [vmem:[%s240 + $0x1220] sm:$0xff]
        %v882 = vld [vmem:[%s240 + $0x1228] sm:$0xff]
        %v883 = vld [vmem:[%s240 + $0x1230] sm:$0xff]
        %v884 = vld [vmem:[%s240 + $0x1238] sm:$0xff]
        %v885 = vld [vmem:[%s240 + $0x1240] sm:$0xff]
        %v886 = vld [vmem:[%s240 + $0x1248] sm:$0xff]
        %v887 = vld [vmem:[%s240 + $0x1250] sm:$0xff]
        %v888 = vld [vmem:[%s240 + $0x1258] sm:$0xff]
        %v889 = vld [vmem:[%s240 + $0x1260] sm:$0xff]
        %v890 = vld [vmem:[%s240 + $0x1268] sm:$0xff]
        %v891 = vld [vmem:[%s240 + $0x1270] sm:$0xff]
        %v892 = vld [vmem:[%s240 + $0x1278] sm:$0xff]
        %v893 = vld [vmem:[%s240 + $0x1280] sm:$0xff]
        %v894 = vld [vmem:[%s240 + $0x1288] sm:$0xff]
        %v895 = vld [vmem:[%s240 + $0x1290] sm:$0xff]
        %v896 = vld [vmem:[%s240 + $0x1298] sm:$0xff]
        %v897 = vld [vmem:[%s240 + $0x12a0] sm:$0xff]
        %v898 = vld [vmem:[%s240 + $0x12a8] sm:$0xff]
        %v899 = vld [vmem:[%s240 + $0x12b0] sm:$0xff]
        %v900 = vld [vmem:[%s240 + $0x12b8] sm:$0xff]
        %v901 = vld [vmem:[%s240 + $0x12c0] sm:$0xff]
        %v902 = vld [vmem:[%s240 + $0x12c8] sm:$0xff]
        %v903 = vld [vmem:[%s240 + $0x12d0] sm:$0xff]
        %v904 = vld [vmem:[%s240 + $0x12d8] sm:$0xff]
        %v905 = vld [vmem:[%s240 + $0x12e0] sm:$0xff]
        %v906 = vld [vmem:[%s240 + $0x12e8] sm:$0xff]
        %v907 = vld [vmem:[%s240 + $0x12f0] sm:$0xff]
        %v908 = vld [vmem:[%s240 + $0x12f8] sm:$0xff]
        %v909 = vld [vmem:[%s240 + $0x1300] sm:$0xff]
        %v910 = vld [vmem:[%s240 + $0x1308] sm:$0xff]
        %v911 = vld [vmem:[%s240 + $0x1310] sm:$0xff]
        %v912 = vld [vmem:[%s240 + $0x1318] sm:$0xff]
        %v913 = vld [vmem:[%s240 + $0x1320] sm:$0xff]
        %v914 = vld [vmem:[%s240 + $0x1328] sm:$0xff]
        %v915 = vld [vmem:[%s240 + $0x1330] sm:$0xff]
        %v916 = vld [vmem:[%s240 + $0x1338] sm:$0xff]
        %v917 = vld [vmem:[%s240 + $0x1340] sm:$0xff]
        %v918 = vld [vmem:[%s240 + $0x1348] sm:$0xff]
        %v919 = vld [vmem:[%s240 + $0x1350] sm:$0xff]
        %v920 = vld [vmem:[%s240 + $0x1358] sm:$0xff]
        %v921 = vld [vmem:[%s240 + $0x1360] sm:$0xff]
        %v922 = vld [vmem:[%s240 + $0x1368] sm:$0xff]
        %v923 = vld [vmem:[%s240 + $0x1370] sm:$0xff]
        %v924 = vld [vmem:[%s240 + $0x1378] sm:$0xff]
        %v925 = vld [vmem:[%s240 + $0x1380] sm:$0xff]
        %v926 = vld [vmem:[%s240 + $0x1388] sm:$0xff]
        %v927 = vld [vmem:[%s240 + $0x1390] sm:$0xff]
        %v928 = vld [vmem:[%s240 + $0x1398] sm:$0xff]
        %v929 = vld [vmem:[%s240 + $0x13a0] sm:$0xff]
        %v930 = vld [vmem:[%s240 + $0x13a8] sm:$0xff]
        %v931 = vld [vmem:[%s240 + $0x13b0] sm:$0xff]
        %v932 = vld [vmem:[%s240 + $0x13b8] sm:$0xff]
        %v933 = vld [vmem:[%s240 + $0x13c0] sm:$0xff]
        %v934 = vld [vmem:[%s240 + $0x13c8] sm:$0xff]
        %v935 = vld [vmem:[%s240 + $0x13d0] sm:$0xff]
        %v936 = vld [vmem:[%s240 + $0x13d8] sm:$0xff]
        %v937 = vld [vmem:[%s240 + $0x13e0] sm:$0xff]
        %v938 = vld [vmem:[%s240 + $0x13e8] sm:$0xff]
        %v939 = vld [vmem:[%s240 + $0x13f0] sm:$0xff]
        %v940 = vld [vmem:[%s240 + $0x13f8] sm:$0xff]
        %v941 = vld [vmem:[%s240 + $0x1400] sm:$0xff]
        %v942 = vld [vmem:[%s240 + $0x1408] sm:$0xff]
        %v943 = vld [vmem:[%s240 + $0x1410] sm:$0xff]
        %v944 = vld [vmem:[%s240 + $0x1418] sm:$0xff]
        %v945 = vld [vmem:[%s240 + $0x1420] sm:$0xff]
        %v946 = vld [vmem:[%s240 + $0x1428] sm:$0xff]
        %v947 = vld [vmem:[%s240 + $0x1430] sm:$0xff]
        %v948 = vld [vmem:[%s240 + $0x1438] sm:$0xff]
        %v949 = vld [vmem:[%s240 + $0x1440] sm:$0xff]
        %v950 = vld [vmem:[%s240 + $0x1448] sm:$0xff]
        %v951 = vld [vmem:[%s240 + $0x1450] sm:$0xff]
        %v952 = vld [vmem:[%s240 + $0x1458] sm:$0xff]
        %v953 = vld [vmem:[%s240 + $0x1460] sm:$0xff]
        %v954 = vld [vmem:[%s240 + $0x1468] sm:$0xff]
        %v955 = vld [vmem:[%s240 + $0x1470] sm:$0xff]
        %v956 = vld [vmem:[%s240 + $0x1478] sm:$0xff]
        %v957 = vld [vmem:[%s240 + $0x1480] sm:$0xff]
        %v958 = vld [vmem:[%s240 + $0x1488] sm:$0xff]
        %v959 = vld [vmem:[%s240 + $0x1490] sm:$0xff]
        %v960 = vld [vmem:[%s240 + $0x1498] sm:$0xff]
        %v961 = vld [vmem:[%s240 + $0x14a0] sm:$0xff]
        %v962 = vld [vmem:[%s240 + $0x14a8] sm:$0xff]
        %v963 = vld [vmem:[%s240 + $0x14b0] sm:$0xff]
        %v964 = vld [vmem:[%s240 + $0x14b8] sm:$0xff]
        %v965 = vld [vmem:[%s240 + $0x14c0] sm:$0xff]
        %v966 = vld [vmem:[%s240 + $0x14c8] sm:$0xff]
        %v967 = vld [vmem:[%s240 + $0x14d0] sm:$0xff]
        %v968 = vld [vmem:[%s240 + $0x14d8] sm:$0xff]
        %v969 = vld [vmem:[%s240 + $0x14e0] sm:$0xff]
        %v970 = vld [vmem:[%s240 + $0x14e8] sm:$0xff]
        %v971 = vld [vmem:[%s240 + $0x14f0] sm:$0xff]
        %v972 = vld [vmem:[%s240 + $0x14f8] sm:$0xff]
        %v973 = vld [vmem:[%s240 + $0x1500] sm:$0xff]
        %v974 = vld [vmem:[%s240 + $0x1508] sm:$0xff]
        %v975 = vld [vmem:[%s240 + $0x1510] sm:$0xff]
        %v976 = vld [vmem:[%s240 + $0x1518] sm:$0xff]
        %v977 = vld [vmem:[%s240 + $0x1520] sm:$0xff]
        %v978 = vld [vmem:[%s240 + $0x1528] sm:$0xff]
        %v979 = vld [vmem:[%s240 + $0x1530] sm:$0xff]
        %v980 = vld [vmem:[%s240 + $0x1538] sm:$0xff]
        %v981 = vld [vmem:[%s240 + $0x1540] sm:$0xff]
        %v982 = vld [vmem:[%s240 + $0x1548] sm:$0xff]
        %v983 = vld [vmem:[%s240 + $0x1550] sm:$0xff]
        %v984 = vld [vmem:[%s240 + $0x1558] sm:$0xff]
        %v985 = vld [vmem:[%s240 + $0x1560] sm:$0xff]
        %v986 = vld [vmem:[%s240 + $0x1568] sm:$0xff]
        %v987 = vld [vmem:[%s240 + $0x1570] sm:$0xff]
        %v988 = vld [vmem:[%s240 + $0x1578] sm:$0xff]
        %v989 = vld [vmem:[%s240 + $0x1580] sm:$0xff]
        %v990 = vld [vmem:[%s240 + $0x1588] sm:$0xff]
        %v991 = vld [vmem:[%s240 + $0x1590] sm:$0xff]
        %v992 = vld [vmem:[%s240 + $0x1598] sm:$0xff]
        %v993 = vld [vmem:[%s240 + $0x15a0] sm:$0xff]
        %v994 = vld [vmem:[%s240 + $0x15a8] sm:$0xff]
        %v995 = vld [vmem:[%s240 + $0x15b0] sm:$0xff]
        %v996 = vld [vmem:[%s240 + $0x15b8] sm:$0xff]
        %v997 = vld [vmem:[%s240 + $0x15c0] sm:$0xff]
        %v998 = vld [vmem:[%s240 + $0x15c8] sm:$0xff]
        %v999 = vld [vmem:[%s240 + $0x15d0] sm:$0xff]
        %v1000 = vld [vmem:[%s240 + $0x15d8] sm:$0xff]
        %v1001 = vld [vmem:[%s240 + $0x15e0] sm:$0xff]
        %v1002 = vld [vmem:[%s240 + $0x15e8] sm:$0xff]
        %v1003 = vld [vmem:[%s240 + $0x15f0] sm:$0xff]
        %v1004 = vld [vmem:[%s240 + $0x15f8] sm:$0xff]
        %v1005 = vld [vmem:[%s240 + $0x1600] sm:$0xff]
        %v1006 = vld [vmem:[%s240 + $0x1608] sm:$0xff]
        %v1007 = vld [vmem:[%s240 + $0x1610] sm:$0xff]
        %v1008 = vld [vmem:[%s240 + $0x1618] sm:$0xff]
        %v1009 = vld [vmem:[%s240 + $0x1620] sm:$0xff]
        %v1010 = vld [vmem:[%s240 + $0x1628] sm:$0xff]
        %v1011 = vld [vmem:[%s240 + $0x1630] sm:$0xff]
        %v1012 = vld [vmem:[%s240 + $0x1638] sm:$0xff]
        %v1013 = vld [vmem:[%s240 + $0x1640] sm:$0xff]
        %v1014 = vld [vmem:[%s240 + $0x1648] sm:$0xff]
        %v1015 = vld [vmem:[%s240 + $0x1650] sm:$0xff]
        %v1016 = vld [vmem:[%s240 + $0x1658] sm:$0xff]
        %v1017 = vld [vmem:[%s240 + $0x1660] sm:$0xff]
        %v1018 = vld [vmem:[%s240 + $0x1668] sm:$0xff]
        %v1019 = vld [vmem:[%s240 + $0x1670] sm:$0xff]
        %v1020 = vld [vmem:[%s240 + $0x1678] sm:$0xff]
        %v1021 = vld [vmem:[%s240 + $0x1680] sm:$0xff]
        %v1022 = vld [vmem:[%s240 + $0x1688] sm:$0xff]
        %v1023 = vld [vmem:[%s240 + $0x1690] sm:$0xff]
        %v1024 = vld [vmem:[%s240 + $0x1698] sm:$0xff]
        %v1025 = vld [vmem:[%s240 + $0x16a0] sm:$0xff]
        %v1026 = vld [vmem:[%s240 + $0x16a8] sm:$0xff]
        %v1027 = vld [vmem:[%s240 + $0x16b0] sm:$0xff]
        %v1028 = vld [vmem:[%s240 + $0x16b8] sm:$0xff]
        %v1029 = vld [vmem:[%s240 + $0x16c0] sm:$0xff]
        %v1030 = vld [vmem:[%s240 + $0x16c8] sm:$0xff]
        %v1031 = vld [vmem:[%s240 + $0x16d0] sm:$0xff]
        %v1032 = vld [vmem:[%s240 + $0x16d8] sm:$0xff]
        %v1033 = vld [vmem:[%s240 + $0x16e0] sm:$0xff]
        %v1034 = vld [vmem:[%s240 + $0x16e8] sm:$0xff]
        %v1035 = vld [vmem:[%s240 + $0x16f0] sm:$0xff]
        %v1036 = vld [vmem:[%s240 + $0x16f8] sm:$0xff]
        %v1037 = vld [vmem:[%s240 + $0x1700] sm:$0xff]
        %v1038 = vld [vmem:[%s240 + $0x1708] sm:$0xff]
        %v1039 = vld [vmem:[%s240 + $0x1710] sm:$0xff]
        %v1040 = vld [vmem:[%s240 + $0x1718] sm:$0xff]
        %v1041 = vld [vmem:[%s240 + $0x1720] sm:$0xff]
        %v1042 = vld [vmem:[%s240 + $0x1728] sm:$0xff]
        %v1043 = vld [vmem:[%s240 + $0x1730] sm:$0xff]
        %v1044 = vld [vmem:[%s240 + $0x1738] sm:$0xff]
        %v1045 = vld [vmem:[%s240 + $0x1740] sm:$0xff]
        %v1046 = vld [vmem:[%s240 + $0x1748] sm:$0xff]
        %v1047 = vld [vmem:[%s240 + $0x1750] sm:$0xff]
        %v1048 = vld [vmem:[%s240 + $0x1758] sm:$0xff]
        %v1049 = vld [vmem:[%s240 + $0x1760] sm:$0xff]
        %v1050 = vld [vmem:[%s240 + $0x1768] sm:$0xff]
        %v1051 = vld [vmem:[%s240 + $0x1770] sm:$0xff]
        %v1052 = vld [vmem:[%s240 + $0x1778] sm:$0xff]
        %v1053 = vld [vmem:[%s240 + $0x1780] sm:$0xff]
        %v1054 = vld [vmem:[%s240 + $0x1788] sm:$0xff]
        %v1055 = vld [vmem:[%s240 + $0x1790] sm:$0xff]
        %v1056 = vld [vmem:[%s240 + $0x1798] sm:$0xff]
        %v1057 = vld [vmem:[%s240 + $0x17a0] sm:$0xff]
        %v1058 = vld [vmem:[%s240 + $0x17a8] sm:$0xff]
        %v1059 = vld [vmem:[%s240 + $0x17b0] sm:$0xff]
        %v1060 = vld [vmem:[%s240 + $0x17b8] sm:$0xff]
        %v1061 = vld [vmem:[%s240 + $0x17c0] sm:$0xff]
        %v1062 = vld [vmem:[%s240 + $0x17c8] sm:$0xff]
        %v1063 = vld [vmem:[%s240 + $0x17d0] sm:$0xff]
        %v1064 = vld [vmem:[%s240 + $0x17d8] sm:$0xff]
        %v1065 = vld [vmem:[%s240 + $0x17e0] sm:$0xff]
        %v1066 = vld [vmem:[%s240 + $0x17e8] sm:$0xff]
        %v1067 = vld [vmem:[%s240 + $0x17f0] sm:$0xff]
        %v1068 = vld [vmem:[%s240 + $0x17f8] sm:$0xff]
        %v1069 = vld [vmem:[%s240 + $0x1800] sm:$0xff]
        %v1070 = vld [vmem:[%s240 + $0x1808] sm:$0xff]
        %v1071 = vld [vmem:[%s240 + $0x1810] sm:$0xff]
        %v1072 = vld [vmem:[%s240 + $0x1818] sm:$0xff]
        %v1073 = vld [vmem:[%s240 + $0x1820] sm:$0xff]
        %v1074 = vld [vmem:[%s240 + $0x1828] sm:$0xff]
        %v1075 = vld [vmem:[%s240 + $0x1830] sm:$0xff]
        %v1076 = vld [vmem:[%s240 + $0x1838] sm:$0xff]
        %v1077 = vld [vmem:[%s240 + $0x1840] sm:$0xff]
        %v1078 = vld [vmem:[%s240 + $0x1848] sm:$0xff]
        %v1079 = vld [vmem:[%s240 + $0x1850] sm:$0xff]
        %v1080 = vld [vmem:[%s240 + $0x1858] sm:$0xff]
        %v1081 = vld [vmem:[%s240 + $0x1860] sm:$0xff]
        %v1082 = vld [vmem:[%s240 + $0x1868] sm:$0xff]
        %v1083 = vld [vmem:[%s240 + $0x1870] sm:$0xff]
        %v1084 = vld [vmem:[%s240 + $0x1878] sm:$0xff]
        %v1085 = vld [vmem:[%s240 + $0x1880] sm:$0xff]
        %v1086 = vld [vmem:[%s240 + $0x1888] sm:$0xff]
        %v1087 = vld [vmem:[%s240 + $0x1890] sm:$0xff]
        %v1088 = vld [vmem:[%s240 + $0x1898] sm:$0xff]
        %v1089 = vld [vmem:[%s240 + $0x18a0] sm:$0xff]
        %v1090 = vld [vmem:[%s240 + $0x18a8] sm:$0xff]
        %v1091 = vld [vmem:[%s240 + $0x18b0] sm:$0xff]
        %v1092 = vld [vmem:[%s240 + $0x18b8] sm:$0xff]
        %v1093 = vld [vmem:[%s240 + $0x18c0] sm:$0xff]
        %v1094 = vld [vmem:[%s240 + $0x18c8] sm:$0xff]
        %v1095 = vld [vmem:[%s240 + $0x18d0] sm:$0xff]
        %v1096 = vld [vmem:[%s240 + $0x18d8] sm:$0xff]
        %v1097 = vld [vmem:[%s240 + $0x18e0] sm:$0xff]
        %v1098 = vld [vmem:[%s240 + $0x18e8] sm:$0xff]
        %v1099 = vld [vmem:[%s240 + $0x18f0] sm:$0xff]
        %v1100 = vld [vmem:[%s240 + $0x18f8] sm:$0xff]
        %v1101 = vld [vmem:[%s240 + $0x1900] sm:$0xff]
        %v1102 = vld [vmem:[%s240 + $0x1908] sm:$0xff]
        %v1103 = vld [vmem:[%s240 + $0x1910] sm:$0xff]
        %v1104 = vld [vmem:[%s240 + $0x1918] sm:$0xff]
        %v1105 = vld [vmem:[%s240 + $0x1920] sm:$0xff]
        %v1106 = vld [vmem:[%s240 + $0x1928] sm:$0xff]
        %v1107 = vld [vmem:[%s240 + $0x1930] sm:$0xff]
        %v1108 = vld [vmem:[%s240 + $0x1938] sm:$0xff]
        %v1109 = vld [vmem:[%s240 + $0x1940] sm:$0xff]
        %v1110 = vld [vmem:[%s240 + $0x1948] sm:$0xff]
        %v1111 = vld [vmem:[%s240 + $0x1950] sm:$0xff]
        %v1112 = vld [vmem:[%s240 + $0x1958] sm:$0xff]
        %v1113 = vld [vmem:[%s240 + $0x1960] sm:$0xff]
        %v1114 = vld [vmem:[%s240 + $0x1968] sm:$0xff]
        %v1115 = vld [vmem:[%s240 + $0x1970] sm:$0xff]
        %v1116 = vld [vmem:[%s240 + $0x1978] sm:$0xff]
        %v1117 = vld [vmem:[%s240 + $0x1980] sm:$0xff]
        %v1118 = vld [vmem:[%s240 + $0x1988] sm:$0xff]
        %v1119 = vld [vmem:[%s240 + $0x1990] sm:$0xff]
        %v1120 = vld [vmem:[%s240 + $0x1998] sm:$0xff]
        %v1121 = vld [vmem:[%s240 + $0x19a0] sm:$0xff]
        %v1122 = vld [vmem:[%s240 + $0x19a8] sm:$0xff]
        %v1123 = vld [vmem:[%s240 + $0x19b0] sm:$0xff]
        %v1124 = vld [vmem:[%s240 + $0x19b8] sm:$0xff]
        %v1125 = vld [vmem:[%s240 + $0x19c0] sm:$0xff]
        %v1126 = vld [vmem:[%s240 + $0x19c8] sm:$0xff]
        %v1127 = vld [vmem:[%s240 + $0x19d0] sm:$0xff]
        %v1128 = vld [vmem:[%s240 + $0x19d8] sm:$0xff]
        %v1129 = vld [vmem:[%s240 + $0x19e0] sm:$0xff]
        %v1130 = vld [vmem:[%s240 + $0x19e8] sm:$0xff]
        %v1131 = vld [vmem:[%s240 + $0x19f0] sm:$0xff]
        %v1132 = vld [vmem:[%s240 + $0x19f8] sm:$0xff]
        %v1133 = vld [vmem:[%s240 + $0x1a00] sm:$0xff]
        %v1134 = vld [vmem:[%s240 + $0x1a08] sm:$0xff]
        %v1135 = vld [vmem:[%s240 + $0x1a10] sm:$0xff]
        %v1136 = vld [vmem:[%s240 + $0x1a18] sm:$0xff]
        %v1137 = vld [vmem:[%s240 + $0x1a20] sm:$0xff]
        %v1138 = vld [vmem:[%s240 + $0x1a28] sm:$0xff]
        %v1139 = vld [vmem:[%s240 + $0x1a30] sm:$0xff]
        %v1140 = vld [vmem:[%s240 + $0x1a38] sm:$0xff]
        %v1141 = vld [vmem:[%s240 + $0x1a40] sm:$0xff]
        %v1142 = vld [vmem:[%s240 + $0x1a48] sm:$0xff]
        %v1143 = vld [vmem:[%s240 + $0x1a50] sm:$0xff]
        %v1144 = vld [vmem:[%s240 + $0x1a58] sm:$0xff]
        %v1145 = vld [vmem:[%s240 + $0x1a60] sm:$0xff]
        %v1146 = vld [vmem:[%s240 + $0x1a68] sm:$0xff]
        %v1147 = vld [vmem:[%s240 + $0x1a70] sm:$0xff]
        %v1148 = vld [vmem:[%s240 + $0x1a78] sm:$0xff]
        %v1149 = vld [vmem:[%s240 + $0x1a80] sm:$0xff]
        %v1150 = vld [vmem:[%s240 + $0x1a88] sm:$0xff]
        %v1151 = vld [vmem:[%s240 + $0x1a90] sm:$0xff]
        %v1152 = vld [vmem:[%s240 + $0x1a98] sm:$0xff]
        %v1153 = vld [vmem:[%s240 + $0x1aa0] sm:$0xff]
        %v1154 = vld [vmem:[%s240 + $0x1aa8] sm:$0xff]
        %v1155 = vld [vmem:[%s240 + $0x1ab0] sm:$0xff]
        %v1156 = vld [vmem:[%s240 + $0x1ab8] sm:$0xff]
        %v1157 = vld [vmem:[%s240 + $0x1ac0] sm:$0xff]
        %v1158 = vld [vmem:[%s240 + $0x1ac8] sm:$0xff]
        %v1159 = vld [vmem:[%s240 + $0x1ad0] sm:$0xff]
        %v1160 = vld [vmem:[%s240 + $0x1ad8] sm:$0xff]
        %v1161 = vld [vmem:[%s240 + $0x1ae0] sm:$0xff]
        %v1162 = vld [vmem:[%s240 + $0x1ae8] sm:$0xff]
        %v1163 = vld [vmem:[%s240 + $0x1af0] sm:$0xff]
        %v1164 = vld [vmem:[%s240 + $0x1af8] sm:$0xff]
        %v1165 = vld [vmem:[%s240 + $0x1b00] sm:$0xff]
        %v1166 = vld [vmem:[%s240 + $0x1b08] sm:$0xff]
        %v1167 = vld [vmem:[%s240 + $0x1b10] sm:$0xff]
        %v1168 = vld [vmem:[%s240 + $0x1b18] sm:$0xff]
        %v1169 = vld [vmem:[%s240 + $0x1b20] sm:$0xff]
        %v1170 = vld [vmem:[%s240 + $0x1b28] sm:$0xff]
        %v1171 = vld [vmem:[%s240 + $0x1b30] sm:$0xff]
        %v1172 = vld [vmem:[%s240 + $0x1b38] sm:$0xff]
        %v1173 = vld [vmem:[%s240 + $0x1b40] sm:$0xff]
        %v1174 = vld [vmem:[%s240 + $0x1b48] sm:$0xff]
        %v1175 = vld [vmem:[%s240 + $0x1b50] sm:$0xff]
        %v1176 = vld [vmem:[%s240 + $0x1b58] sm:$0xff]
        %v1177 = vld [vmem:[%s240 + $0x1b60] sm:$0xff]
        %v1178 = vld [vmem:[%s240 + $0x1b68] sm:$0xff]
        %v1179 = vld [vmem:[%s240 + $0x1b70] sm:$0xff]
        %v1180 = vld [vmem:[%s240 + $0x1b78] sm:$0xff]
        %v1181 = vld [vmem:[%s240 + $0x1b80] sm:$0xff]
        %v1182 = vld [vmem:[%s240 + $0x1b88] sm:$0xff]
        %v1183 = vld [vmem:[%s240 + $0x1b90] sm:$0xff]
        %v1184 = vld [vmem:[%s240 + $0x1b98] sm:$0xff]
        %v1185 = vld [vmem:[%s240 + $0x1ba0] sm:$0xff]
        %v1186 = vld [vmem:[%s240 + $0x1ba8] sm:$0xff]
        %v1187 = vld [vmem:[%s240 + $0x1bb0] sm:$0xff]
        %v1188 = vld [vmem:[%s240 + $0x1bb8] sm:$0xff]
        %v1189 = vld [vmem:[%s240 + $0x1bc0] sm:$0xff]
        %v1190 = vld [vmem:[%s240 + $0x1bc8] sm:$0xff]
        %v1191 = vld [vmem:[%s240 + $0x1bd0] sm:$0xff]
        %v1192 = vld [vmem:[%s240 + $0x1bd8] sm:$0xff]
        %v1193 = vld [vmem:[%s240 + $0x1be0] sm:$0xff]
        %v1194 = vld [vmem:[%s240 + $0x1be8] sm:$0xff]
        %v1195 = vld [vmem:[%s240 + $0x1bf0] sm:$0xff]
        %v1196 = vld [vmem:[%s240 + $0x1bf8] sm:$0xff]
        %v1197 = vld [vmem:[%s240 + $0x1c00] sm:$0xff]
        %v1198 = vld [vmem:[%s240 + $0x1c08] sm:$0xff]
        %v1199 = vld [vmem:[%s240 + $0x1c10] sm:$0xff]
        %v1200 = vld [vmem:[%s240 + $0x1c18] sm:$0xff]
        %v1201 = vld [vmem:[%s240 + $0x1c20] sm:$0xff]
        %v1202 = vld [vmem:[%s240 + $0x1c28] sm:$0xff]
        %v1203 = vld [vmem:[%s240 + $0x1c30] sm:$0xff]
        %v1204 = vld [vmem:[%s240 + $0x1c38] sm:$0xff]
        %v1205 = vld [vmem:[%s240 + $0x1c40] sm:$0xff]
        %v1206 = vld [vmem:[%s240 + $0x1c48] sm:$0xff]
        %v1207 = vld [vmem:[%s240 + $0x1c50] sm:$0xff]
        %v1208 = vld [vmem:[%s240 + $0x1c58] sm:$0xff]
        %v1209 = vld [vmem:[%s240 + $0x1c60] sm:$0xff]
        %v1210 = vld [vmem:[%s240 + $0x1c68] sm:$0xff]
        %v1211 = vld [vmem:[%s240 + $0x1c70] sm:$0xff]
        %v1212 = vld [vmem:[%s240 + $0x1c78] sm:$0xff]
        %v1213 = vld [vmem:[%s240 + $0x1c80] sm:$0xff]
        %v1214 = vld [vmem:[%s240 + $0x1c88] sm:$0xff]
        %v1215 = vld [vmem:[%s240 + $0x1c90] sm:$0xff]
        %v1216 = vld [vmem:[%s240 + $0x1c98] sm:$0xff]
        %v1217 = vld [vmem:[%s240 + $0x1ca0] sm:$0xff]
        %v1218 = vld [vmem:[%s240 + $0x1ca8] sm:$0xff]
        %v1219 = vld [vmem:[%s240 + $0x1cb0] sm:$0xff]
        %v1220 = vld [vmem:[%s240 + $0x1cb8] sm:$0xff]
        %v1221 = vld [vmem:[%s240 + $0x1cc0] sm:$0xff]
        %v1222 = vld [vmem:[%s240 + $0x1cc8] sm:$0xff]
        %v1223 = vld [vmem:[%s240 + $0x1cd0] sm:$0xff]
        %v1224 = vld [vmem:[%s240 + $0x1cd8] sm:$0xff]
        %v1225 = vld [vmem:[%s240 + $0x1ce0] sm:$0xff]
        %v1226 = vld [vmem:[%s240 + $0x1ce8] sm:$0xff]
        %v1227 = vld [vmem:[%s240 + $0x1cf0] sm:$0xff]
        %v1228 = vld [vmem:[%s240 + $0x1cf8] sm:$0xff]
        %v1229 = vld [vmem:[%s240 + $0x1d00] sm:$0xff]
        %v1230 = vld [vmem:[%s240 + $0x1d08] sm:$0xff]
        %v1231 = vld [vmem:[%s240 + $0x1d10] sm:$0xff]
        %v1232 = vld [vmem:[%s240 + $0x1d18] sm:$0xff]
        %v1233 = vld [vmem:[%s240 + $0x1d20] sm:$0xff]
        %v1234 = vld [vmem:[%s240 + $0x1d28] sm:$0xff]
        %v1235 = vld [vmem:[%s240 + $0x1d30] sm:$0xff]
        %v1236 = vld [vmem:[%s240 + $0x1d38] sm:$0xff]
        %v1237 = vld [vmem:[%s240 + $0x1d40] sm:$0xff]
        %v1238 = vld [vmem:[%s240 + $0x1d48] sm:$0xff]
        %v1239 = vld [vmem:[%s240 + $0x1d50] sm:$0xff]
        %v1240 = vld [vmem:[%s240 + $0x1d58] sm:$0xff]
        %v1241 = vld [vmem:[%s240 + $0x1d60] sm:$0xff]
        %v1242 = vld [vmem:[%s240 + $0x1d68] sm:$0xff]
        %v1243 = vld [vmem:[%s240 + $0x1d70] sm:$0xff]
        %v1244 = vld [vmem:[%s240 + $0x1d78] sm:$0xff]
        %v1245 = vld [vmem:[%s240 + $0x1d80] sm:$0xff]
        %v1246 = vld [vmem:[%s240 + $0x1d88] sm:$0xff]
        %v1247 = vld [vmem:[%s240 + $0x1d90] sm:$0xff]
        %v1248 = vld [vmem:[%s240 + $0x1d98] sm:$0xff]
        %v1249 = vld [vmem:[%s240 + $0x1da0] sm:$0xff]
        %v1250 = vld [vmem:[%s240 + $0x1da8] sm:$0xff]
        %v1251 = vld [vmem:[%s240 + $0x1db0] sm:$0xff]
        %v1252 = vld [vmem:[%s240 + $0x1db8] sm:$0xff]
        %v1253 = vld [vmem:[%s240 + $0x1dc0] sm:$0xff]
        %v1254 = vld [vmem:[%s240 + $0x1dc8] sm:$0xff]
        %v1255 = vld [vmem:[%s240 + $0x1dd0] sm:$0xff]
        %v1256 = vld [vmem:[%s240 + $0x1dd8] sm:$0xff]
        %v1257 = vld [vmem:[%s240 + $0x1de0] sm:$0xff]
        %v1258 = vld [vmem:[%s240 + $0x1de8] sm:$0xff]
        %v1259 = vld [vmem:[%s240 + $0x1df0] sm:$0xff]
        %v1260 = vld [vmem:[%s240 + $0x1df8] sm:$0xff]
        %v1261 = vld [vmem:[%s240 + $0x1e00] sm:$0xff]
        %v1262 = vld [vmem:[%s240 + $0x1e08] sm:$0xff]
        %v1263 = vld [vmem:[%s240 + $0x1e10] sm:$0xff]
        %v1264 = vld [vmem:[%s240 + $0x1e18] sm:$0xff]
        %v1265 = vld [vmem:[%s240 + $0x1e20] sm:$0xff]
        %v1266 = vld [vmem:[%s240 + $0x1e28] sm:$0xff]
        %v1267 = vld [vmem:[%s240 + $0x1e30] sm:$0xff]
        %v1268 = vld [vmem:[%s240 + $0x1e38] sm:$0xff]
        %v1269 = vld [vmem:[%s240 + $0x1e40] sm:$0xff]
        %v1270 = vld [vmem:[%s240 + $0x1e48] sm:$0xff]
        %v1271 = vld [vmem:[%s240 + $0x1e50] sm:$0xff]
        %v1272 = vld [vmem:[%s240 + $0x1e58] sm:$0xff]
        %v1273 = vld [vmem:[%s240 + $0x1e60] sm:$0xff]
        %v1274 = vld [vmem:[%s240 + $0x1e68] sm:$0xff]
        %v1275 = vld [vmem:[%s240 + $0x1e70] sm:$0xff]
        %v1276 = vld [vmem:[%s240 + $0x1e78] sm:$0xff]
        %v1277 = vld [vmem:[%s240 + $0x1e80] sm:$0xff]
        %v1278 = vld [vmem:[%s240 + $0x1e88] sm:$0xff]
        %v1279 = vld [vmem:[%s240 + $0x1e90] sm:$0xff]
        %v1280 = vld [vmem:[%s240 + $0x1e98] sm:$0xff]
        %v1281 = vld [vmem:[%s240 + $0x1ea0] sm:$0xff]
        %v1282 = vld [vmem:[%s240 + $0x1ea8] sm:$0xff]
        %v1283 = vld [vmem:[%s240 + $0x1eb0] sm:$0xff]
        %v1284 = vld [vmem:[%s240 + $0x1eb8] sm:$0xff]
        %v1285 = vld [vmem:[%s240 + $0x1ec0] sm:$0xff]
        %v1286 = vld [vmem:[%s240 + $0x1ec8] sm:$0xff]
        %v1287 = vld [vmem:[%s240 + $0x1ed0] sm:$0xff]
        %v1288 = vld [vmem:[%s240 + $0x1ed8] sm:$0xff]
        %v1289 = vld [vmem:[%s240 + $0x1ee0] sm:$0xff]
        %v1290 = vld [vmem:[%s240 + $0x1ee8] sm:$0xff]
        %v1291 = vld [vmem:[%s240 + $0x1ef0] sm:$0xff]
        %v1292 = vld [vmem:[%s240 + $0x1ef8] sm:$0xff]
        %v1293 = vld [vmem:[%s240 + $0x1f00] sm:$0xff]
        %v1294 = vld [vmem:[%s240 + $0x1f08] sm:$0xff]
        %v1295 = vld [vmem:[%s240 + $0x1f10] sm:$0xff]
        %v1296 = vld [vmem:[%s240 + $0x1f18] sm:$0xff]
        %v1297 = vld [vmem:[%s240 + $0x1f20] sm:$0xff]
        %v1298 = vld [vmem:[%s240 + $0x1f28] sm:$0xff]
        %v1299 = vld [vmem:[%s240 + $0x1f30] sm:$0xff]
        %v1300 = vld [vmem:[%s240 + $0x1f38] sm:$0xff]
        %v1301 = vld [vmem:[%s240 + $0x1f40] sm:$0xff]
        %v1302 = vld [vmem:[%s240 + $0x1f48] sm:$0xff]
        %v1303 = vld [vmem:[%s240 + $0x1f50] sm:$0xff]
        %v1304 = vld [vmem:[%s240 + $0x1f58] sm:$0xff]
        %v1305 = vld [vmem:[%s240 + $0x1f60] sm:$0xff]
        %v1306 = vld [vmem:[%s240 + $0x1f68] sm:$0xff]
        %v1307 = vld [vmem:[%s240 + $0x1f70] sm:$0xff]
        %v1308 = vld [vmem:[%s240 + $0x1f78] sm:$0xff]
        %v1309 = vld [vmem:[%s240 + $0x1f80] sm:$0xff]
        %v1310 = vld [vmem:[%s240 + $0x1f88] sm:$0xff]
        %v1311 = vld [vmem:[%s240 + $0x1f90] sm:$0xff]
        %v1312 = vld [vmem:[%s240 + $0x1f98] sm:$0xff]
        %v1313 = vld [vmem:[%s240 + $0x1fa0] sm:$0xff]
        %v1314 = vld [vmem:[%s240 + $0x1fa8] sm:$0xff]
        %v1315 = vld [vmem:[%s240 + $0x1fb0] sm:$0xff]
        %v1316 = vld [vmem:[%s240 + $0x1fb8] sm:$0xff]
        %v1317 = vld [vmem:[%s240 + $0x1fc0] sm:$0xff]
        %v1318 = vld [vmem:[%s240 + $0x1fc8] sm:$0xff]
        %v1319 = vld [vmem:[%s240 + $0x1fd0] sm:$0xff]
        %v1320 = vld [vmem:[%s240 + $0x1fd8] sm:$0xff]
        %v1321 = vld [vmem:[%s240 + $0x1fe0] sm:$0xff]
        %v1322 = vld [vmem:[%s240 + $0x1fe8] sm:$0xff]
        %v1323 = vld [vmem:[%s240 + $0x1ff0] sm:$0xff]
        %v1324 = vld [vmem:[%s240 + $0x1ff8] sm:$0xff]
        %v1325 = vld [vmem:[%s240 + $0x2000] sm:$0xff]
        %v1326 = vld [vmem:[%s240 + $0x2008] sm:$0xff]
        %v1327 = vld [vmem:[%s240 + $0x2010] sm:$0xff]
        %v1328 = vld [vmem:[%s240 + $0x2018] sm:$0xff]
        %v1329 = vld [vmem:[%s240 + $0x2020] sm:$0xff]
        %v1330 = vld [vmem:[%s240 + $0x2028] sm:$0xff]
        %v1331 = vld [vmem:[%s240 + $0x2030] sm:$0xff]
        %v1332 = vld [vmem:[%s240 + $0x2038] sm:$0xff]
        %v1333 = vld [vmem:[%s240 + $0x2040] sm:$0xff]
        %v1334 = vld [vmem:[%s240 + $0x2048] sm:$0xff]
        %v1335 = vld [vmem:[%s240 + $0x2050] sm:$0xff]
        %v1336 = vld [vmem:[%s240 + $0x2058] sm:$0xff]
        %v1337 = vld [vmem:[%s240 + $0x2060] sm:$0xff]
        %v1338 = vld [vmem:[%s240 + $0x2068] sm:$0xff]
        %v1339 = vld [vmem:[%s240 + $0x2070] sm:$0xff]
        %v1340 = vld [vmem:[%s240 + $0x2078] sm:$0xff]
        %v1341 = vld [vmem:[%s240 + $0x2080] sm:$0xff]
        %v1342 = vld [vmem:[%s240 + $0x2088] sm:$0xff]
        %v1343 = vld [vmem:[%s240 + $0x2090] sm:$0xff]
        %v1344 = vld [vmem:[%s240 + $0x2098] sm:$0xff]
        %v1345 = vld [vmem:[%s240 + $0x20a0] sm:$0xff]
        %v1346 = vld [vmem:[%s240 + $0x20a8] sm:$0xff]
        %v1347 = vld [vmem:[%s240 + $0x20b0] sm:$0xff]
        %v1348 = vld [vmem:[%s240 + $0x20b8] sm:$0xff]
        %v1349 = vld [vmem:[%s240 + $0x20c0] sm:$0xff]
        %v1350 = vld [vmem:[%s240 + $0x20c8] sm:$0xff]
        %v1351 = vld [vmem:[%s240 + $0x20d0] sm:$0xff]
        %v1352 = vld [vmem:[%s240 + $0x20d8] sm:$0xff]
        %v1353 = vld [vmem:[%s240 + $0x20e0] sm:$0xff]
        %v1354 = vld [vmem:[%s240 + $0x20e8] sm:$0xff]
        %v1355 = vld [vmem:[%s240 + $0x20f0] sm:$0xff]
        %v1356 = vld [vmem:[%s240 + $0x20f8] sm:$0xff]
        %v1357 = vld [vmem:[%s240 + $0x2100] sm:$0xff]
        %v1358 = vld [vmem:[%s240 + $0x2108] sm:$0xff]
        %v1359 = vld [vmem:[%s240 + $0x2110] sm:$0xff]
        %v1360 = vld [vmem:[%s240 + $0x2118] sm:$0xff]
        %v1361 = vld [vmem:[%s240 + $0x2120] sm:$0xff]
        %v1362 = vld [vmem:[%s240 + $0x2128] sm:$0xff]
        %v1363 = vld [vmem:[%s240 + $0x2130] sm:$0xff]
        %v1364 = vld [vmem:[%s240 + $0x2138] sm:$0xff]
        %v1365 = vld [vmem:[%s240 + $0x2140] sm:$0xff]
        %v1366 = vld [vmem:[%s240 + $0x2148] sm:$0xff]
        %v1367 = vld [vmem:[%s240 + $0x2150] sm:$0xff]
        %v1368 = vld [vmem:[%s240 + $0x2158] sm:$0xff]
        %v1369 = vld [vmem:[%s240 + $0x2160] sm:$0xff]
        %v1370 = vld [vmem:[%s240 + $0x2168] sm:$0xff]
        %v1371 = vld [vmem:[%s240 + $0x2170] sm:$0xff]
        %v1372 = vld [vmem:[%s240 + $0x2178] sm:$0xff]
        %v1373 = vld [vmem:[%s240 + $0x2180] sm:$0xff]
        %v1374 = vld [vmem:[%s240 + $0x2188] sm:$0xff]
        %v1375 = vld [vmem:[%s240 + $0x2190] sm:$0xff]
        %v1376 = vld [vmem:[%s240 + $0x2198] sm:$0xff]
        %v1377 = vld [vmem:[%s240 + $0x21a0] sm:$0xff]
        %v1378 = vld [vmem:[%s240 + $0x21a8] sm:$0xff]
        %v1379 = vld [vmem:[%s240 + $0x21b0] sm:$0xff]
        %v1380 = vld [vmem:[%s240 + $0x21b8] sm:$0xff]
        %v1381 = vld [vmem:[%s240 + $0x21c0] sm:$0xff]
        %v1382 = vld [vmem:[%s240 + $0x21c8] sm:$0xff]
        %v1383 = vld [vmem:[%s240 + $0x21d0] sm:$0xff]
        %v1384 = vld [vmem:[%s240 + $0x21d8] sm:$0xff]
        %v1385 = vld [vmem:[%s240 + $0x21e0] sm:$0xff]
        %v1386 = vld [vmem:[%s240 + $0x21e8] sm:$0xff]
        %v1387 = vld [vmem:[%s240 + $0x21f0] sm:$0xff]
        %v1388 = vld [vmem:[%s240 + $0x21f8] sm:$0xff]
        %v1389 = vld [vmem:[%s240 + $0x2200] sm:$0xff]
        %v1390 = vld [vmem:[%s240 + $0x2208] sm:$0xff]
        %v1391 = vld [vmem:[%s240 + $0x2210] sm:$0xff]
        %v1392 = vld [vmem:[%s240 + $0x2218] sm:$0xff]
        %v1393 = vld [vmem:[%s240 + $0x2220] sm:$0xff]
        %v1394 = vld [vmem:[%s240 + $0x2228] sm:$0xff]
        %v1395 = vld [vmem:[%s240 + $0x2230] sm:$0xff]
        %v1396 = vld [vmem:[%s240 + $0x2238] sm:$0xff]
        %v1397 = vld [vmem:[%s240 + $0x2240] sm:$0xff]
        %v1398 = vld [vmem:[%s240 + $0x2248] sm:$0xff]
        %v1399 = vld [vmem:[%s240 + $0x2250] sm:$0xff]
        %v1400 = vld [vmem:[%s240 + $0x2258] sm:$0xff]
        %v1401 = vld [vmem:[%s240 + $0x2260] sm:$0xff]
        %v1402 = vld [vmem:[%s240 + $0x2268] sm:$0xff]
        %v1403 = vld [vmem:[%s240 + $0x2270] sm:$0xff]
        %v1404 = vld [vmem:[%s240 + $0x2278] sm:$0xff]
        %v1405 = vld [vmem:[%s240 + $0x2280] sm:$0xff]
        %v1406 = vld [vmem:[%s240 + $0x2288] sm:$0xff]
        %v1407 = vld [vmem:[%s240 + $0x2290] sm:$0xff]
        %v1408 = vld [vmem:[%s240 + $0x2298] sm:$0xff]
        %v1409 = vld [vmem:[%s240 + $0x22a0] sm:$0xff]
        %v1410 = vld [vmem:[%s240 + $0x22a8] sm:$0xff]
        %v1411 = vld [vmem:[%s240 + $0x22b0] sm:$0xff]
        %v1412 = vld [vmem:[%s240 + $0x22b8] sm:$0xff]
        %v1413 = vld [vmem:[%s240 + $0x22c0] sm:$0xff]
        %v1414 = vld [vmem:[%s240 + $0x22c8] sm:$0xff]
        %v1415 = vld [vmem:[%s240 + $0x22d0] sm:$0xff]
        %v1416 = vld [vmem:[%s240 + $0x22d8] sm:$0xff]
        %v1417 = vld [vmem:[%s240 + $0x22e0] sm:$0xff]
        %v1418 = vld [vmem:[%s240 + $0x22e8] sm:$0xff]
        %v1419 = vld [vmem:[%s240 + $0x22f0] sm:$0xff]
        %v1420 = vld [vmem:[%s240 + $0x22f8] sm:$0xff]
        %v1421 = vld [vmem:[%s240 + $0x2300] sm:$0xff]
        %v1422 = vld [vmem:[%s240 + $0x2308] sm:$0xff]
        %v1423 = vld [vmem:[%s240 + $0x2310] sm:$0xff]
        %v1424 = vld [vmem:[%s240 + $0x2318] sm:$0xff]
        %v1425 = vld [vmem:[%s240 + $0x2320] sm:$0xff]
        %v1426 = vld [vmem:[%s240 + $0x2328] sm:$0xff]
        %v1427 = vld [vmem:[%s240 + $0x2330] sm:$0xff]
        %v1428 = vld [vmem:[%s240 + $0x2338] sm:$0xff]
        %v1429 = vld [vmem:[%s240 + $0x2340] sm:$0xff]
        %v1430 = vld [vmem:[%s240 + $0x2348] sm:$0xff]
        %v1431 = vld [vmem:[%s240 + $0x2350] sm:$0xff]
        %v1432 = vld [vmem:[%s240 + $0x2358] sm:$0xff]
        %v1433 = vld [vmem:[%s240 + $0x2360] sm:$0xff]
        %v1434 = vld [vmem:[%s240 + $0x2368] sm:$0xff]
        %v1435 = vld [vmem:[%s240 + $0x2370] sm:$0xff]
        %v1436 = vld [vmem:[%s240 + $0x2378] sm:$0xff]
        %v1437 = vld [vmem:[%s240 + $0x2380] sm:$0xff]
        %v1438 = vld [vmem:[%s240 + $0x2388] sm:$0xff]
        %v1439 = vld [vmem:[%s240 + $0x2390] sm:$0xff]
        %v1440 = vld [vmem:[%s240 + $0x2398] sm:$0xff]
        %v1441 = vld [vmem:[%s240 + $0x23a0] sm:$0xff]
        %v1442 = vld [vmem:[%s240 + $0x23a8] sm:$0xff]
        %v1443 = vld [vmem:[%s240 + $0x23b0] sm:$0xff]
        %v1444 = vld [vmem:[%s240 + $0x23b8] sm:$0xff]
        %v1445 = vld [vmem:[%s240 + $0x23c0] sm:$0xff]
        %v1446 = vld [vmem:[%s240 + $0x23c8] sm:$0xff]
        %v1447 = vld [vmem:[%s240 + $0x23d0] sm:$0xff]
        %v1448 = vld [vmem:[%s240 + $0x23d8] sm:$0xff]
        %v1449 = vld [vmem:[%s240 + $0x23e0] sm:$0xff]
        %v1450 = vld [vmem:[%s240 + $0x23e8] sm:$0xff]
        %v1451 = vld [vmem:[%s240 + $0x23f0] sm:$0xff]
        %v1452 = vld [vmem:[%s240 + $0x23f8] sm:$0xff]
        %v1453 = vld [vmem:[%s240 + $0x2400] sm:$0xff]
        %v1454 = vld [vmem:[%s240 + $0x2408] sm:$0xff]
        %v1455 = vld [vmem:[%s240 + $0x2410] sm:$0xff]
        %v1456 = vld [vmem:[%s240 + $0x2418] sm:$0xff]
        %v1457 = vld [vmem:[%s240 + $0x2420] sm:$0xff]
        %v1458 = vld [vmem:[%s240 + $0x2428] sm:$0xff]
        %v1459 = vld [vmem:[%s240 + $0x2430] sm:$0xff]
        %v1460 = vld [vmem:[%s240 + $0x2438] sm:$0xff]
        %v1461 = vld [vmem:[%s240 + $0x2440] sm:$0xff]
        %v1462 = vld [vmem:[%s240 + $0x2448] sm:$0xff]
        %v1463 = vld [vmem:[%s240 + $0x2450] sm:$0xff]
        %v1464 = vld [vmem:[%s240 + $0x2458] sm:$0xff]
        %v1465 = vld [vmem:[%s240 + $0x2460] sm:$0xff]
        %v1466 = vld [vmem:[%s240 + $0x2468] sm:$0xff]
        %v1467 = vld [vmem:[%s240 + $0x2470] sm:$0xff]
        %v1468 = vld [vmem:[%s240 + $0x2478] sm:$0xff]
        %v1469 = vld [vmem:[%s240 + $0x2480] sm:$0xff]
        %v1470 = vld [vmem:[%s240 + $0x2488] sm:$0xff]
        %v1471 = vld [vmem:[%s240 + $0x2490] sm:$0xff]
        %v1472 = vld [vmem:[%s240 + $0x2498] sm:$0xff]
        %v1473 = vld [vmem:[%s240 + $0x24a0] sm:$0xff]
        %v1474 = vld [vmem:[%s240 + $0x24a8] sm:$0xff]
        %v1475 = vld [vmem:[%s240 + $0x24b0] sm:$0xff]
        %v1476 = vld [vmem:[%s240 + $0x24b8] sm:$0xff]
        %v1477 = vld [vmem:[%s240 + $0x24c0] sm:$0xff]
        %v1478 = vld [vmem:[%s240 + $0x24c8] sm:$0xff]
        %v1479 = vld [vmem:[%s240 + $0x24d0] sm:$0xff]
        %v1480 = vld [vmem:[%s240 + $0x24d8] sm:$0xff]
        %v1481 = vld [vmem:[%s240 + $0x24e0] sm:$0xff]
        %v1482 = vld [vmem:[%s240 + $0x24e8] sm:$0xff]
        %v1483 = vld [vmem:[%s240 + $0x24f0] sm:$0xff]
        %v1484 = vld [vmem:[%s240 + $0x24f8] sm:$0xff]
        %v1485 = vld [vmem:[%s240 + $0x2500] sm:$0xff]
        %v1486 = vld [vmem:[%s240 + $0x2508] sm:$0xff]
        %v1487 = vld [vmem:[%s240 + $0x2510] sm:$0xff]
        %v1488 = vld [vmem:[%s240 + $0x2518] sm:$0xff]
        %v1489 = vld [vmem:[%s240 + $0x2520] sm:$0xff]
        %v1490 = vld [vmem:[%s240 + $0x2528] sm:$0xff]
        %v1491 = vld [vmem:[%s240 + $0x2530] sm:$0xff]
        %v1492 = vld [vmem:[%s240 + $0x2538] sm:$0xff]
        %v1493 = vld [vmem:[%s240 + $0x2540] sm:$0xff]
        %v1494 = vld [vmem:[%s240 + $0x2548] sm:$0xff]
        %v1495 = vld [vmem:[%s240 + $0x2550] sm:$0xff]
        %v1496 = vld [vmem:[%s240 + $0x2558] sm:$0xff]
        %v1497 = vld [vmem:[%s240 + $0x2560] sm:$0xff]
        %v1498 = vld [vmem:[%s240 + $0x2568] sm:$0xff]
        %v1499 = vld [vmem:[%s240 + $0x2570] sm:$0xff]
        %v1500 = vld [vmem:[%s240 + $0x2578] sm:$0xff]
        %v1501 = vld [vmem:[%s240 + $0x2580] sm:$0xff]
        %v1502 = vld [vmem:[%s240 + $0x2588] sm:$0xff]
        %v1503 = vld [vmem:[%s240 + $0x2590] sm:$0xff]
        %v1504 = vld [vmem:[%s240 + $0x2598] sm:$0xff]
        %v1505 = vld [vmem:[%s240 + $0x25a0] sm:$0xff]
        %v1506 = vld [vmem:[%s240 + $0x25a8] sm:$0xff]
        %v1507 = vld [vmem:[%s240 + $0x25b0] sm:$0xff]
        %v1508 = vld [vmem:[%s240 + $0x25b8] sm:$0xff]
        %v1509 = vld [vmem:[%s240 + $0x25c0] sm:$0xff]
        %v1510 = vld [vmem:[%s240 + $0x25c8] sm:$0xff]
        %v1511 = vld [vmem:[%s240 + $0x25d0] sm:$0xff]
        %v1512 = vld [vmem:[%s240 + $0x25d8] sm:$0xff]
        %v1513 = vld [vmem:[%s240 + $0x25e0] sm:$0xff]
        %v1514 = vld [vmem:[%s240 + $0x25e8] sm:$0xff]
        %v1515 = vld [vmem:[%s240 + $0x25f0] sm:$0xff]
        %v1516 = vld [vmem:[%s240 + $0x25f8] sm:$0xff]
        %v1517 = vld [vmem:[%s240 + $0x2600] sm:$0xff]
        %v1518 = vld [vmem:[%s240 + $0x2608] sm:$0xff]
        %v1519 = vld [vmem:[%s240 + $0x2610] sm:$0xff]
        %v1520 = vld [vmem:[%s240 + $0x2618] sm:$0xff]
        %v1521 = vld [vmem:[%s240 + $0x2620] sm:$0xff]
        %v1522 = vld [vmem:[%s240 + $0x2628] sm:$0xff]
        %v1523 = vld [vmem:[%s240 + $0x2630] sm:$0xff]
        %v1524 = vld [vmem:[%s240 + $0x2638] sm:$0xff]
        %v1525 = vld [vmem:[%s240 + $0x2640] sm:$0xff]
        %v1526 = vld [vmem:[%s240 + $0x2648] sm:$0xff]
        %v1527 = vld [vmem:[%s240 + $0x2650] sm:$0xff]
        %v1528 = vld [vmem:[%s240 + $0x2658] sm:$0xff]
        %v1529 = vld [vmem:[%s240 + $0x2660] sm:$0xff]
        %v1530 = vld [vmem:[%s240 + $0x2668] sm:$0xff]
        %v1531 = vld [vmem:[%s240 + $0x2670] sm:$0xff]
        %v1532 = vld [vmem:[%s240 + $0x2678] sm:$0xff]
        %v1533 = vld [vmem:[%s240 + $0x2680] sm:$0xff]
        %v1534 = vld [vmem:[%s240 + $0x2688] sm:$0xff]
        %v1535 = vld [vmem:[%s240 + $0x2690] sm:$0xff]
        %v1536 = vld [vmem:[%s240 + $0x2698] sm:$0xff]
        %v1537 = vld [vmem:[%s240 + $0x26a0] sm:$0xff]
        %v1538 = vld [vmem:[%s240 + $0x26a8] sm:$0xff]
        %v1539 = vld [vmem:[%s240 + $0x26b0] sm:$0xff]
        %v1540 = vld [vmem:[%s240 + $0x26b8] sm:$0xff]
        %v1541 = vld [vmem:[%s240 + $0x26c0] sm:$0xff]
        %v1542 = vld [vmem:[%s240 + $0x26c8] sm:$0xff]
        %v1543 = vld [vmem:[%s240 + $0x26d0] sm:$0xff]
        %v1544 = vld [vmem:[%s240 + $0x26d8] sm:$0xff]
        %v1545 = vld [vmem:[%s240 + $0x26e0] sm:$0xff]
        %v1546 = vld [vmem:[%s240 + $0x26e8] sm:$0xff]
        %v1547 = vld [vmem:[%s240 + $0x26f0] sm:$0xff]
        %v1548 = vld [vmem:[%s240 + $0x26f8] sm:$0xff]
        %v1549 = vld [vmem:[%s240 + $0x2700] sm:$0xff]
        %v1550 = vld [vmem:[%s240 + $0x2708] sm:$0xff]
        %v1551 = vld [vmem:[%s240 + $0x2710] sm:$0xff]
        %v1552 = vld [vmem:[%s240 + $0x2718] sm:$0xff]
        %v1553 = vld [vmem:[%s240 + $0x2720] sm:$0xff]
        %v1554 = vld [vmem:[%s240 + $0x2728] sm:$0xff]
        %v1555 = vld [vmem:[%s240 + $0x2730] sm:$0xff]
        %v1556 = vld [vmem:[%s240 + $0x2738] sm:$0xff]
        %v1557 = vld [vmem:[%s240 + $0x2740] sm:$0xff]
        %v1558 = vld [vmem:[%s240 + $0x2748] sm:$0xff]
        %v1559 = vld [vmem:[%s240 + $0x2750] sm:$0xff]
        %v1560 = vld [vmem:[%s240 + $0x2758] sm:$0xff]
        %v1561 = vld [vmem:[%s240 + $0x2760] sm:$0xff]
        %v1562 = vld [vmem:[%s240 + $0x2768] sm:$0xff]
        %v1563 = vld [vmem:[%s240 + $0x2770] sm:$0xff]
        %v1564 = vld [vmem:[%s240 + $0x2778] sm:$0xff]
        %v1565 = vld [vmem:[%s240 + $0x2780] sm:$0xff]
        %v1566 = vld [vmem:[%s240 + $0x2788] sm:$0xff]
        %v1567 = vld [vmem:[%s240 + $0x2790] sm:$0xff]
        %v1568 = vld [vmem:[%s240 + $0x2798] sm:$0xff]
        %v1569 = vld [vmem:[%s240 + $0x27a0] sm:$0xff]
        %v1570 = vld [vmem:[%s240 + $0x27a8] sm:$0xff]
        %v1571 = vld [vmem:[%s240 + $0x27b0] sm:$0xff]
        %v1572 = vld [vmem:[%s240 + $0x27b8] sm:$0xff]
        %v1573 = vld [vmem:[%s240 + $0x27c0] sm:$0xff]
        %v1574 = vld [vmem:[%s240 + $0x27c8] sm:$0xff]
        %v1575 = vld [vmem:[%s240 + $0x27d0] sm:$0xff]
        %v1576 = vld [vmem:[%s240 + $0x27d8] sm:$0xff]
        %v1577 = vld [vmem:[%s240 + $0x27e0] sm:$0xff]
        %v1578 = vld [vmem:[%s240 + $0x27e8] sm:$0xff]
        %v1579 = vld [vmem:[%s240 + $0x27f0] sm:$0xff]
        %v1580 = vld [vmem:[%s240 + $0x27f8] sm:$0xff]
        %v1581 = vld [vmem:[%s240 + $0x2800] sm:$0xff]
        %v1582 = vld [vmem:[%s240 + $0x2808] sm:$0xff]
        %v1583 = vld [vmem:[%s240 + $0x2810] sm:$0xff]
        %v1584 = vld [vmem:[%s240 + $0x2818] sm:$0xff]
        %v1585 = vld [vmem:[%s240 + $0x2820] sm:$0xff]
        %v1586 = vld [vmem:[%s240 + $0x2828] sm:$0xff]
        %v1587 = vld [vmem:[%s240 + $0x2830] sm:$0xff]
        %v1588 = vld [vmem:[%s240 + $0x2838] sm:$0xff]
        %v1589 = vld [vmem:[%s240 + $0x2840] sm:$0xff]
        %v1590 = vld [vmem:[%s240 + $0x2848] sm:$0xff]
        %v1591 = vld [vmem:[%s240 + $0x2850] sm:$0xff]
        %v1592 = vld [vmem:[%s240 + $0x2858] sm:$0xff]
        %v1593 = vld [vmem:[%s240 + $0x2860] sm:$0xff]
        %v1594 = vld [vmem:[%s240 + $0x2868] sm:$0xff]
        %v1595 = vld [vmem:[%s240 + $0x2870] sm:$0xff]
        %v1596 = vld [vmem:[%s240 + $0x2878] sm:$0xff]
        %v1597 = vld [vmem:[%s240 + $0x2880] sm:$0xff]
        %v1598 = vld [vmem:[%s240 + $0x2888] sm:$0xff]
        %v1599 = vld [vmem:[%s240 + $0x2890] sm:$0xff]
        %v1600 = vld [vmem:[%s240 + $0x2898] sm:$0xff]
        %v1601 = vld [vmem:[%s240 + $0x28a0] sm:$0xff]
        %v1602 = vld [vmem:[%s240 + $0x28a8] sm:$0xff]
        %v1603 = vld [vmem:[%s240 + $0x28b0] sm:$0xff]
        %v1604 = vld [vmem:[%s240 + $0x28b8] sm:$0xff]
        %v1605 = vld [vmem:[%s240 + $0x28c0] sm:$0xff]
        %v1606 = vld [vmem:[%s240 + $0x28c8] sm:$0xff]
        %v1607 = vld [vmem:[%s240 + $0x28d0] sm:$0xff]
        %v1608 = vld [vmem:[%s240 + $0x28d8] sm:$0xff]
        %v1609 = vld [vmem:[%s240 + $0x28e0] sm:$0xff]
        %v1610 = vld [vmem:[%s240 + $0x28e8] sm:$0xff]
        %v1611 = vld [vmem:[%s240 + $0x28f0] sm:$0xff]
        %v1612 = vld [vmem:[%s240 + $0x28f8] sm:$0xff]
        %v1613 = vld [vmem:[%s240 + $0x2900] sm:$0xff]
        %v1614 = vld [vmem:[%s240 + $0x2908] sm:$0xff]
        %v1615 = vld [vmem:[%s240 + $0x2910] sm:$0xff]
        %v1616 = vld [vmem:[%s240 + $0x2918] sm:$0xff]
        %v1617 = vld [vmem:[%s240 + $0x2920] sm:$0xff]
        %v1618 = vld [vmem:[%s240 + $0x2928] sm:$0xff]
        %v1619 = vld [vmem:[%s240 + $0x2930] sm:$0xff]
        %v1620 = vld [vmem:[%s240 + $0x2938] sm:$0xff]
        %v1621 = vld [vmem:[%s240 + $0x2940] sm:$0xff]
        %v1622 = vld [vmem:[%s240 + $0x2948] sm:$0xff]
        %v1623 = vld [vmem:[%s240 + $0x2950] sm:$0xff]
        %v1624 = vld [vmem:[%s240 + $0x2958] sm:$0xff]
        %v1625 = vld [vmem:[%s240 + $0x2960] sm:$0xff]
        %v1626 = vld [vmem:[%s240 + $0x2968] sm:$0xff]
        %v1627 = vld [vmem:[%s240 + $0x2970] sm:$0xff]
        %v1628 = vld [vmem:[%s240 + $0x2978] sm:$0xff]
        %v1629 = vld [vmem:[%s240 + $0x2980] sm:$0xff]
        %v1630 = vld [vmem:[%s240 + $0x2988] sm:$0xff]
        %v1631 = vld [vmem:[%s240 + $0x2990] sm:$0xff]
        %v1632 = vld [vmem:[%s240 + $0x2998] sm:$0xff]
        %v1633 = vld [vmem:[%s240 + $0x29a0] sm:$0xff]
        %v1634 = vld [vmem:[%s240 + $0x29a8] sm:$0xff]
        %v1635 = vld [vmem:[%s240 + $0x29b0] sm:$0xff]
        %v1636 = vld [vmem:[%s240 + $0x29b8] sm:$0xff]
        %v1637 = vld [vmem:[%s240 + $0x29c0] sm:$0xff]
        %v1638 = vld [vmem:[%s240 + $0x29c8] sm:$0xff]
        %v1639 = vld [vmem:[%s240 + $0x29d0] sm:$0xff]
        %v1640 = vld [vmem:[%s240 + $0x29d8] sm:$0xff]
        %v1641 = vld [vmem:[%s240 + $0x29e0] sm:$0xff]
        %v1642 = vld [vmem:[%s240 + $0x29e8] sm:$0xff]
        %v1643 = vld [vmem:[%s240 + $0x29f0] sm:$0xff]
        %v1644 = vld [vmem:[%s240 + $0x29f8] sm:$0xff]
        %v1645 = vld [vmem:[%s240 + $0x2a00] sm:$0xff]
        %v1646 = vld [vmem:[%s240 + $0x2a08] sm:$0xff]
        %v1647 = vld [vmem:[%s240 + $0x2a10] sm:$0xff]
        %v1648 = vld [vmem:[%s240 + $0x2a18] sm:$0xff]
        %v1649 = vld [vmem:[%s240 + $0x2a20] sm:$0xff]
        %v1650 = vld [vmem:[%s240 + $0x2a28] sm:$0xff]
        %v1651 = vld [vmem:[%s240 + $0x2a30] sm:$0xff]
        %v1652 = vld [vmem:[%s240 + $0x2a38] sm:$0xff]
        %v1653 = vld [vmem:[%s240 + $0x2a40] sm:$0xff]
        %v1654 = vld [vmem:[%s240 + $0x2a48] sm:$0xff]
        %v1655 = vld [vmem:[%s240 + $0x2a50] sm:$0xff]
        %v1656 = vld [vmem:[%s240 + $0x2a58] sm:$0xff]
        %v1657 = vld [vmem:[%s240 + $0x2a60] sm:$0xff]
        %v1658 = vld [vmem:[%s240 + $0x2a68] sm:$0xff]
        %v1659 = vld [vmem:[%s240 + $0x2a70] sm:$0xff]
        %v1660 = vld [vmem:[%s240 + $0x2a78] sm:$0xff]
        %v1661 = vld [vmem:[%s240 + $0x2a80] sm:$0xff]
        %v1662 = vld [vmem:[%s240 + $0x2a88] sm:$0xff]
        %v1663 = vld [vmem:[%s240 + $0x2a90] sm:$0xff]
        %v1664 = vld [vmem:[%s240 + $0x2a98] sm:$0xff]
        %v1665 = vld [vmem:[%s240 + $0x2aa0] sm:$0xff]
        %v1666 = vld [vmem:[%s240 + $0x2aa8] sm:$0xff]
        %v1667 = vld [vmem:[%s240 + $0x2ab0] sm:$0xff]
        %v1668 = vld [vmem:[%s240 + $0x2ab8] sm:$0xff]
        %v1669 = vld [vmem:[%s240 + $0x2ac0] sm:$0xff]
        %v1670 = vld [vmem:[%s240 + $0x2ac8] sm:$0xff]
        %v1671 = vld [vmem:[%s240 + $0x2ad0] sm:$0xff]
        %v1672 = vld [vmem:[%s240 + $0x2ad8] sm:$0xff]
        %v1673 = vld [vmem:[%s240 + $0x2ae0] sm:$0xff]
        %v1674 = vld [vmem:[%s240 + $0x2ae8] sm:$0xff]
        %v1675 = vld [vmem:[%s240 + $0x2af0] sm:$0xff]
        %v1676 = vld [vmem:[%s240 + $0x2af8] sm:$0xff]
        %v1677 = vld [vmem:[%s240 + $0x2b00] sm:$0xff]
        %v1678 = vld [vmem:[%s240 + $0x2b08] sm:$0xff]
        %v1679 = vld [vmem:[%s240 + $0x2b10] sm:$0xff]
        %v1680 = vld [vmem:[%s240 + $0x2b18] sm:$0xff]
        %v1681 = vld [vmem:[%s240 + $0x2b20] sm:$0xff]
        %v1682 = vld [vmem:[%s240 + $0x2b28] sm:$0xff]
        %v1683 = vld [vmem:[%s240 + $0x2b30] sm:$0xff]
        %v1684 = vld [vmem:[%s240 + $0x2b38] sm:$0xff]
        %v1685 = vld [vmem:[%s240 + $0x2b40] sm:$0xff]
        %v1686 = vld [vmem:[%s240 + $0x2b48] sm:$0xff]
        %v1687 = vld [vmem:[%s240 + $0x2b50] sm:$0xff]
        %v1688 = vld [vmem:[%s240 + $0x2b58] sm:$0xff]
        %v1689 = vld [vmem:[%s240 + $0x2b60] sm:$0xff]
        %v1690 = vld [vmem:[%s240 + $0x2b68] sm:$0xff]
        %v1691 = vld [vmem:[%s240 + $0x2b70] sm:$0xff]
        %v1692 = vld [vmem:[%s240 + $0x2b78] sm:$0xff]
        %v1693 = vld [vmem:[%s240 + $0x2b80] sm:$0xff]
        %v1694 = vld [vmem:[%s240 + $0x2b88] sm:$0xff]
        %v1695 = vld [vmem:[%s240 + $0x2b90] sm:$0xff]
        %v1696 = vld [vmem:[%s240 + $0x2b98] sm:$0xff]
        %v1697 = vld [vmem:[%s240 + $0x2ba0] sm:$0xff]
        %v1698 = vld [vmem:[%s240 + $0x2ba8] sm:$0xff]
        %v1699 = vld [vmem:[%s240 + $0x2bb0] sm:$0xff]
        %v1700 = vld [vmem:[%s240 + $0x2bb8] sm:$0xff]
        %v1701 = vld [vmem:[%s240 + $0x2bc0] sm:$0xff]
        %v1702 = vld [vmem:[%s240 + $0x2bc8] sm:$0xff]
        %v1703 = vld [vmem:[%s240 + $0x2bd0] sm:$0xff]
        %v1704 = vld [vmem:[%s240 + $0x2bd8] sm:$0xff]
        %v1705 = vld [vmem:[%s240 + $0x2be0] sm:$0xff]
        %v1706 = vld [vmem:[%s240 + $0x2be8] sm:$0xff]
        %v1707 = vld [vmem:[%s240 + $0x2bf0] sm:$0xff]
        %v1708 = vld [vmem:[%s240 + $0x2bf8] sm:$0xff]
        %v1709 = vld [vmem:[%s240 + $0x2c00] sm:$0xff]
        %v1710 = vld [vmem:[%s240 + $0x2c08] sm:$0xff]
        %v1711 = vld [vmem:[%s240 + $0x2c10] sm:$0xff]
        %v1712 = vld [vmem:[%s240 + $0x2c18] sm:$0xff]
        %v1713 = vld [vmem:[%s240 + $0x2c20] sm:$0xff]
        %v1714 = vld [vmem:[%s240 + $0x2c28] sm:$0xff]
        %v1715 = vld [vmem:[%s240 + $0x2c30] sm:$0xff]
        %v1716 = vld [vmem:[%s240 + $0x2c38] sm:$0xff]
        %v1717 = vld [vmem:[%s240 + $0x2c40] sm:$0xff]
        %v1718 = vld [vmem:[%s240 + $0x2c48] sm:$0xff]
        %v1719 = vld [vmem:[%s240 + $0x2c50] sm:$0xff]
        %v1720 = vld [vmem:[%s240 + $0x2c58] sm:$0xff]
        %v1721 = vld [vmem:[%s240 + $0x2c60] sm:$0xff]
        %v1722 = vld [vmem:[%s240 + $0x2c68] sm:$0xff]
        %v1723 = vld [vmem:[%s240 + $0x2c70] sm:$0xff]
        %v1724 = vld [vmem:[%s240 + $0x2c78] sm:$0xff]
        %v1725 = vld [vmem:[%s240 + $0x2c80] sm:$0xff]
        %v1726 = vld [vmem:[%s240 + $0x2c88] sm:$0xff]
        %v1727 = vld [vmem:[%s240 + $0x2c90] sm:$0xff]
        %v1728 = vld [vmem:[%s240 + $0x2c98] sm:$0xff]
        %v1729 = vld [vmem:[%s240 + $0x2ca0] sm:$0xff]
        %v1730 = vld [vmem:[%s240 + $0x2ca8] sm:$0xff]
        %v1731 = vld [vmem:[%s240 + $0x2cb0] sm:$0xff]
        %v1732 = vld [vmem:[%s240 + $0x2cb8] sm:$0xff]
        %v1733 = vld [vmem:[%s240 + $0x2cc0] sm:$0xff]
        %v1734 = vld [vmem:[%s240 + $0x2cc8] sm:$0xff]
        %v1735 = vld [vmem:[%s240 + $0x2cd0] sm:$0xff]
        %v1736 = vld [vmem:[%s240 + $0x2cd8] sm:$0xff]
        %v1737 = vld [vmem:[%s240 + $0x2ce0] sm:$0xff]
        %v1738 = vld [vmem:[%s240 + $0x2ce8] sm:$0xff]
        %v1739 = vld [vmem:[%s240 + $0x2cf0] sm:$0xff]
        %v1740 = vld [vmem:[%s240 + $0x2cf8] sm:$0xff]
        %v1741 = vld [vmem:[%s240 + $0x2d00] sm:$0xff]
        %v1742 = vld [vmem:[%s240 + $0x2d08] sm:$0xff]
        %v1743 = vld [vmem:[%s240 + $0x2d10] sm:$0xff]
        %v1744 = vld [vmem:[%s240 + $0x2d18] sm:$0xff]
        %v1745 = vld [vmem:[%s240 + $0x2d20] sm:$0xff]
        %v1746 = vld [vmem:[%s240 + $0x2d28] sm:$0xff]
        %v1747 = vld [vmem:[%s240 + $0x2d30] sm:$0xff]
        %v1748 = vld [vmem:[%s240 + $0x2d38] sm:$0xff]
        %v1749 = vld [vmem:[%s240 + $0x2d40] sm:$0xff]
        %v1750 = vld [vmem:[%s240 + $0x2d48] sm:$0xff]
        %v1751 = vld [vmem:[%s240 + $0x2d50] sm:$0xff]
        %v1752 = vld [vmem:[%s240 + $0x2d58] sm:$0xff]
        %v1753 = vld [vmem:[%s240 + $0x2d60] sm:$0xff]
        %v1754 = vld [vmem:[%s240 + $0x2d68] sm:$0xff]
        %v1755 = vld [vmem:[%s240 + $0x2d70] sm:$0xff]
        %v1756 = vld [vmem:[%s240 + $0x2d78] sm:$0xff]
        %v1757 = vld [vmem:[%s240 + $0x2d80] sm:$0xff]
        %v1758 = vld [vmem:[%s240 + $0x2d88] sm:$0xff]
        %v1759 = vld [vmem:[%s240 + $0x2d90] sm:$0xff]
        %v1760 = vld [vmem:[%s240 + $0x2d98] sm:$0xff]
        %v1761 = vld [vmem:[%s240 + $0x2da0] sm:$0xff]
        %v1762 = vld [vmem:[%s240 + $0x2da8] sm:$0xff]
        %v1763 = vld [vmem:[%s240 + $0x2db0] sm:$0xff]
        %v1764 = vld [vmem:[%s240 + $0x2db8] sm:$0xff]
        %v1765 = vld [vmem:[%s240 + $0x2dc0] sm:$0xff]
        %v1766 = vld [vmem:[%s240 + $0x2dc8] sm:$0xff]
        %v1767 = vld [vmem:[%s240 + $0x2dd0] sm:$0xff]
        %v1768 = vld [vmem:[%s240 + $0x2dd8] sm:$0xff]
        %v1769 = vld [vmem:[%s240 + $0x2de0] sm:$0xff]
        %v1770 = vld [vmem:[%s240 + $0x2de8] sm:$0xff]
        %v1771 = vld [vmem:[%s240 + $0x2df0] sm:$0xff]
        %v1772 = vld [vmem:[%s240 + $0x2df8] sm:$0xff]
        %v1773 = vld [vmem:[%s240 + $0x2e00] sm:$0xff]
        %v1774 = vld [vmem:[%s240 + $0x2e08] sm:$0xff]
        %v1775 = vld [vmem:[%s240 + $0x2e10] sm:$0xff]
        %v1776 = vld [vmem:[%s240 + $0x2e18] sm:$0xff]
        %v1777 = vld [vmem:[%s240 + $0x2e20] sm:$0xff]
        %v1778 = vld [vmem:[%s240 + $0x2e28] sm:$0xff]
        %v1779 = vld [vmem:[%s240 + $0x2e30] sm:$0xff]
        %v1780 = vld [vmem:[%s240 + $0x2e38] sm:$0xff]
        %v1781 = vld [vmem:[%s240 + $0x2e40] sm:$0xff]
        %v1782 = vld [vmem:[%s240 + $0x2e48] sm:$0xff]
        %v1783 = vld [vmem:[%s240 + $0x2e50] sm:$0xff]
        %v1784 = vld [vmem:[%s240 + $0x2e58] sm:$0xff]
        %v1785 = vld [vmem:[%s240 + $0x2e60] sm:$0xff]
        %v1786 = vld [vmem:[%s240 + $0x2e68] sm:$0xff]
        %v1787 = vld [vmem:[%s240 + $0x2e70] sm:$0xff]
        %v1788 = vld [vmem:[%s240 + $0x2e78] sm:$0xff]
        %v1789 = vld [vmem:[%s240 + $0x2e80] sm:$0xff]
        %v1790 = vld [vmem:[%s240 + $0x2e88] sm:$0xff]
        %v1791 = vld [vmem:[%s240 + $0x2e90] sm:$0xff]
        %v1792 = vld [vmem:[%s240 + $0x2e98] sm:$0xff]
        %v1793 = vld [vmem:[%s240 + $0x2ea0] sm:$0xff]
        %v1794 = vld [vmem:[%s240 + $0x2ea8] sm:$0xff]
        %v1795 = vld [vmem:[%s240 + $0x2eb0] sm:$0xff]
        %v1796 = vld [vmem:[%s240 + $0x2eb8] sm:$0xff]
        %v1797 = vld [vmem:[%s240 + $0x2ec0] sm:$0xff]
        %v1798 = vld [vmem:[%s240 + $0x2ec8] sm:$0xff]
        %v1799 = vld [vmem:[%s240 + $0x2ed0] sm:$0xff]
        %v1800 = vld [vmem:[%s240 + $0x2ed8] sm:$0xff]
        %v1801 = vld [vmem:[%s240 + $0x2ee0] sm:$0xff]
        %v1802 = vld [vmem:[%s240 + $0x2ee8] sm:$0xff]
        %v1803 = vld [vmem:[%s240 + $0x2ef0] sm:$0xff]
        %v1804 = vld [vmem:[%s240 + $0x2ef8] sm:$0xff]
        %v1805 = vld [vmem:[%s240 + $0x2f00] sm:$0xff]
        %v1806 = vld [vmem:[%s240 + $0x2f08] sm:$0xff]
        %v1807 = vld [vmem:[%s240 + $0x2f10] sm:$0xff]
        %v1808 = vld [vmem:[%s240 + $0x2f18] sm:$0xff]
        %v1809 = vld [vmem:[%s240 + $0x2f20] sm:$0xff]
        %v1810 = vld [vmem:[%s240 + $0x2f28] sm:$0xff]
        %v1811 = vld [vmem:[%s240 + $0x2f30] sm:$0xff]
        %v1812 = vld [vmem:[%s240 + $0x2f38] sm:$0xff]
        %v1813 = vld [vmem:[%s240 + $0x2f40] sm:$0xff]
        %v1814 = vld [vmem:[%s240 + $0x2f48] sm:$0xff]
        %v1815 = vld [vmem:[%s240 + $0x2f50] sm:$0xff]
        %v1816 = vld [vmem:[%s240 + $0x2f58] sm:$0xff]
        %v1817 = vld [vmem:[%s240 + $0x2f60] sm:$0xff]
        %v1818 = vld [vmem:[%s240 + $0x2f68] sm:$0xff]
        %v1819 = vld [vmem:[%s240 + $0x2f70] sm:$0xff]
        %v1820 = vld [vmem:[%s240 + $0x2f78] sm:$0xff]
        %v1821 = vld [vmem:[%s240 + $0x2f80] sm:$0xff]
        %v1822 = vld [vmem:[%s240 + $0x2f88] sm:$0xff]
        %v1823 = vld [vmem:[%s240 + $0x2f90] sm:$0xff]
        %v1824 = vld [vmem:[%s240 + $0x2f98] sm:$0xff]
        %v1825 = vld [vmem:[%s240 + $0x2fa0] sm:$0xff]
        %v1826 = vld [vmem:[%s240 + $0x2fa8] sm:$0xff]
        %v1827 = vld [vmem:[%s240 + $0x2fb0] sm:$0xff]
        %v1828 = vld [vmem:[%s240 + $0x2fb8] sm:$0xff]
        %v1829 = vld [vmem:[%s240 + $0x2fc0] sm:$0xff]
        %v1830 = vld [vmem:[%s240 + $0x2fc8] sm:$0xff]
        %v1831 = vld [vmem:[%s240 + $0x2fd0] sm:$0xff]
        %v1832 = vld [vmem:[%s240 + $0x2fd8] sm:$0xff]
        %v1833 = vld [vmem:[%s240 + $0x2fe0] sm:$0xff]
        %v1834 = vld [vmem:[%s240 + $0x2fe8] sm:$0xff]
        %v1835 = vld [vmem:[%s240 + $0x2ff0] sm:$0xff]
        %v1836 = vld [vmem:[%s240 + $0x2ff8] sm:$0xff]
        %v1837 = vld [vmem:[%s240 + $0x3000] sm:$0xff]
        %v1838 = vld [vmem:[%s240 + $0x3008] sm:$0xff]
        %v1839 = vld [vmem:[%s240 + $0x3010] sm:$0xff]
        %v1840 = vld [vmem:[%s240 + $0x3018] sm:$0xff]
        %v1841 = vld [vmem:[%s240 + $0x3020] sm:$0xff]
        %v1842 = vld [vmem:[%s240 + $0x3028] sm:$0xff]
        %v1843 = vld [vmem:[%s240 + $0x3030] sm:$0xff]
        %v1844 = vld [vmem:[%s240 + $0x3038] sm:$0xff]
        %v1845 = vld [vmem:[%s240 + $0x3040] sm:$0xff]
        %v1846 = vld [vmem:[%s240 + $0x3048] sm:$0xff]
        %v1847 = vld [vmem:[%s240 + $0x3050] sm:$0xff]
        %v1848 = vld [vmem:[%s240 + $0x3058] sm:$0xff]
        %v1849 = vld [vmem:[%s240 + $0x3060] sm:$0xff]
        %v1850 = vld [vmem:[%s240 + $0x3068] sm:$0xff]
        %v1851 = vld [vmem:[%s240 + $0x3070] sm:$0xff]
        %v1852 = vld [vmem:[%s240 + $0x3078] sm:$0xff]
        %v1853 = vld [vmem:[%s240 + $0x3080] sm:$0xff]
        %v1854 = vld [vmem:[%s240 + $0x3088] sm:$0xff]
        %v1855 = vld [vmem:[%s240 + $0x3090] sm:$0xff]
        %v1856 = vld [vmem:[%s240 + $0x3098] sm:$0xff]
        %v1857 = vld [vmem:[%s240 + $0x30a0] sm:$0xff]
        %v1858 = vld [vmem:[%s240 + $0x30a8] sm:$0xff]
        %v1859 = vld [vmem:[%s240 + $0x30b0] sm:$0xff]
        %v1860 = vld [vmem:[%s240 + $0x30b8] sm:$0xff]
        %v1861 = vld [vmem:[%s240 + $0x30c0] sm:$0xff]
        %v1862 = vld [vmem:[%s240 + $0x30c8] sm:$0xff]
        %v1863 = vld [vmem:[%s240 + $0x30d0] sm:$0xff]
        %v1864 = vld [vmem:[%s240 + $0x30d8] sm:$0xff]
        %v1865 = vld [vmem:[%s240 + $0x30e0] sm:$0xff]
        %v1866 = vld [vmem:[%s240 + $0x30e8] sm:$0xff]
        %v1867 = vld [vmem:[%s240 + $0x30f0] sm:$0xff]
        %v1868 = vld [vmem:[%s240 + $0x30f8] sm:$0xff]
        %v1869 = vld [vmem:[%s240 + $0x3100] sm:$0xff]
        %v1870 = vld [vmem:[%s240 + $0x3108] sm:$0xff]
        %v1871 = vld [vmem:[%s240 + $0x3110] sm:$0xff]
        %v1872 = vld [vmem:[%s240 + $0x3118] sm:$0xff]
        %v1873 = vld [vmem:[%s240 + $0x3120] sm:$0xff]
        %v1874 = vld [vmem:[%s240 + $0x3128] sm:$0xff]
        %v1875 = vld [vmem:[%s240 + $0x3130] sm:$0xff]
        %v1876 = vld [vmem:[%s240 + $0x3138] sm:$0xff]
        %v1877 = vld [vmem:[%s240 + $0x3140] sm:$0xff]
        %v1878 = vld [vmem:[%s240 + $0x3148] sm:$0xff]
        %v1879 = vld [vmem:[%s240 + $0x3150] sm:$0xff]
        %v1880 = vld [vmem:[%s240 + $0x3158] sm:$0xff]
        %v1881 = vld [vmem:[%s240 + $0x3160] sm:$0xff]
        %v1882 = vld [vmem:[%s240 + $0x3168] sm:$0xff]
        %v1883 = vld [vmem:[%s240 + $0x3170] sm:$0xff]
        %v1884 = vld [vmem:[%s240 + $0x3178] sm:$0xff]
        %v1885 = vld [vmem:[%s240 + $0x3180] sm:$0xff]
        %v1886 = vld [vmem:[%s240 + $0x3188] sm:$0xff]
        %v1887 = vld [vmem:[%s240 + $0x3190] sm:$0xff]
        %v1888 = vld [vmem:[%s240 + $0x3198] sm:$0xff]
        %v1889 = vld [vmem:[%s240 + $0x31a0] sm:$0xff]
        %v1890 = vld [vmem:[%s240 + $0x31a8] sm:$0xff]
        %v1891 = vld [vmem:[%s240 + $0x31b0] sm:$0xff]
        %v1892 = vld [vmem:[%s240 + $0x31b8] sm:$0xff]
        %v1893 = vld [vmem:[%s240 + $0x31c0] sm:$0xff]
        %v1894 = vld [vmem:[%s240 + $0x31c8] sm:$0xff]
        %v1895 = vld [vmem:[%s240 + $0x31d0] sm:$0xff]
        %v1896 = vld [vmem:[%s240 + $0x31d8] sm:$0xff]
        %v1897 = vld [vmem:[%s240 + $0x31e0] sm:$0xff]
        %v1898 = vld [vmem:[%s240 + $0x31e8] sm:$0xff]
        %v1899 = vld [vmem:[%s240 + $0x31f0] sm:$0xff]
        %v1900 = vld [vmem:[%s240 + $0x31f8] sm:$0xff]
        %v1901 = vld [vmem:[%s240 + $0x3200] sm:$0xff]
        %v1902 = vld [vmem:[%s240 + $0x3208] sm:$0xff]
        %v1903 = vld [vmem:[%s240 + $0x3210] sm:$0xff]
        %v1904 = vld [vmem:[%s240 + $0x3218] sm:$0xff]
        %v1905 = vld [vmem:[%s240 + $0x3220] sm:$0xff]
        %v1906 = vld [vmem:[%s240 + $0x3228] sm:$0xff]
        %v1907 = vld [vmem:[%s240 + $0x3230] sm:$0xff]
        %v1908 = vld [vmem:[%s240 + $0x3238] sm:$0xff]
        %v1909 = vld [vmem:[%s240 + $0x3240] sm:$0xff]
        %v1910 = vld [vmem:[%s240 + $0x3248] sm:$0xff]
        %v1911 = vld [vmem:[%s240 + $0x3250] sm:$0xff]
        %v1912 = vld [vmem:[%s240 + $0x3258] sm:$0xff]
        %v1913 = vld [vmem:[%s240 + $0x3260] sm:$0xff]
        %v1914 = vld [vmem:[%s240 + $0x3268] sm:$0xff]
        %v1915 = vld [vmem:[%s240 + $0x3270] sm:$0xff]
        %v1916 = vld [vmem:[%s240 + $0x3278] sm:$0xff]
        %v1917 = vld [vmem:[%s240 + $0x3280] sm:$0xff]
        %v1918 = vld [vmem:[%s240 + $0x3288] sm:$0xff]
        %v1919 = vld [vmem:[%s240 + $0x3290] sm:$0xff]
        %v1920 = vld [vmem:[%s240 + $0x3298] sm:$0xff]
        %v1921 = vld [vmem:[%s240 + $0x32a0] sm:$0xff]
        %v1922 = vld [vmem:[%s240 + $0x32a8] sm:$0xff]
        %v1923 = vld [vmem:[%s240 + $0x32b0] sm:$0xff]
        %v1924 = vld [vmem:[%s240 + $0x32b8] sm:$0xff]
        %v1925 = vld [vmem:[%s240 + $0x32c0] sm:$0xff]
        %v1926 = vld [vmem:[%s240 + $0x32c8] sm:$0xff]
        %v1927 = vld [vmem:[%s240 + $0x32d0] sm:$0xff]
        %v1928 = vld [vmem:[%s240 + $0x32d8] sm:$0xff]
        %v1929 = vld [vmem:[%s240 + $0x32e0] sm:$0xff]
        %v1930 = vld [vmem:[%s240 + $0x32e8] sm:$0xff]
        %v1931 = vld [vmem:[%s240 + $0x32f0] sm:$0xff]
        %v1932 = vld [vmem:[%s240 + $0x32f8] sm:$0xff]
        %v1933 = vld [vmem:[%s240 + $0x3300] sm:$0xff]
        %v1934 = vld [vmem:[%s240 + $0x3308] sm:$0xff]
        %v1935 = vld [vmem:[%s240 + $0x3310] sm:$0xff]
        %v1936 = vld [vmem:[%s240 + $0x3318] sm:$0xff]
        %v1937 = vld [vmem:[%s240 + $0x3320] sm:$0xff]
        %v1938 = vld [vmem:[%s240 + $0x3328] sm:$0xff]
        %v1939 = vld [vmem:[%s240 + $0x3330] sm:$0xff]
        %v1940 = vld [vmem:[%s240 + $0x3338] sm:$0xff]
        %v1941 = vld [vmem:[%s240 + $0x3340] sm:$0xff]
        %v1942 = vld [vmem:[%s240 + $0x3348] sm:$0xff]
        %v1943 = vld [vmem:[%s240 + $0x3350] sm:$0xff]
        %v1944 = vld [vmem:[%s240 + $0x3358] sm:$0xff]
        %v1945 = vld [vmem:[%s240 + $0x3360] sm:$0xff]
        %v1946 = vld [vmem:[%s240 + $0x3368] sm:$0xff]
        %v1947 = vld [vmem:[%s240 + $0x3370] sm:$0xff]
        %v1948 = vld [vmem:[%s240 + $0x3378] sm:$0xff]
        %v1949 = vld [vmem:[%s240 + $0x3380] sm:$0xff]
        %v1950 = vld [vmem:[%s240 + $0x3388] sm:$0xff]
        %v1951 = vld [vmem:[%s240 + $0x3390] sm:$0xff]
        %v1952 = vld [vmem:[%s240 + $0x3398] sm:$0xff]
        %v1953 = vld [vmem:[%s240 + $0x33a0] sm:$0xff]
        %v1954 = vld [vmem:[%s240 + $0x33a8] sm:$0xff]
        %v1955 = vld [vmem:[%s240 + $0x33b0] sm:$0xff]
        %v1956 = vld [vmem:[%s240 + $0x33b8] sm:$0xff]
        %v1957 = vld [vmem:[%s240 + $0x33c0] sm:$0xff]
        %v1958 = vld [vmem:[%s240 + $0x33c8] sm:$0xff]
        %v1959 = vld [vmem:[%s240 + $0x33d0] sm:$0xff]
        %v1960 = vld [vmem:[%s240 + $0x33d8] sm:$0xff]
        %v1961 = vld [vmem:[%s240 + $0x33e0] sm:$0xff]
        %v1962 = vld [vmem:[%s240 + $0x33e8] sm:$0xff]
        %v1963 = vld [vmem:[%s240 + $0x33f0] sm:$0xff]
        %v1964 = vld [vmem:[%s240 + $0x33f8] sm:$0xff]
        %v1965 = vld [vmem:[%s240 + $0x3400] sm:$0xff]
        %v1966 = vld [vmem:[%s240 + $0x3408] sm:$0xff]
        %v1967 = vld [vmem:[%s240 + $0x3410] sm:$0xff]
        %v1968 = vld [vmem:[%s240 + $0x3418] sm:$0xff]
        %v1969 = vld [vmem:[%s240 + $0x3420] sm:$0xff]
        %v1970 = vld [vmem:[%s240 + $0x3428] sm:$0xff]
        %v1971 = vld [vmem:[%s240 + $0x3430] sm:$0xff]
        %v1972 = vld [vmem:[%s240 + $0x3438] sm:$0xff]
        %v1973 = vld [vmem:[%s240 + $0x3440] sm:$0xff]
        %v1974 = vld [vmem:[%s240 + $0x3448] sm:$0xff]
        %v1975 = vld [vmem:[%s240 + $0x3450] sm:$0xff]
        %v1976 = vld [vmem:[%s240 + $0x3458] sm:$0xff]
        %v1977 = vld [vmem:[%s240 + $0x3460] sm:$0xff]
        %v1978 = vld [vmem:[%s240 + $0x3468] sm:$0xff]
        %v1979 = vld [vmem:[%s240 + $0x3470] sm:$0xff]
        %v1980 = vld [vmem:[%s240 + $0x3478] sm:$0xff]
        %v1981 = vld [vmem:[%s240 + $0x3480] sm:$0xff]
        %v1982 = vld [vmem:[%s240 + $0x3488] sm:$0xff]
        %v1983 = vld [vmem:[%s240 + $0x3490] sm:$0xff]
        %v1984 = vld [vmem:[%s240 + $0x3498] sm:$0xff]
        %v1985 = vld [vmem:[%s240 + $0x34a0] sm:$0xff]
        %v1986 = vld [vmem:[%s240 + $0x34a8] sm:$0xff]
        %v1987 = vld [vmem:[%s240 + $0x34b0] sm:$0xff]
        %v1988 = vld [vmem:[%s240 + $0x34b8] sm:$0xff]
        %v1989 = vld [vmem:[%s240 + $0x34c0] sm:$0xff]
        %v1990 = vld [vmem:[%s240 + $0x34c8] sm:$0xff]
        %v1991 = vld [vmem:[%s240 + $0x34d0] sm:$0xff]
        %v1992 = vld [vmem:[%s240 + $0x34d8] sm:$0xff]
        %v1993 = vld [vmem:[%s240 + $0x34e0] sm:$0xff]
        %v1994 = vld [vmem:[%s240 + $0x34e8] sm:$0xff]
        %v1995 = vld [vmem:[%s240 + $0x34f0] sm:$0xff]
        %v1996 = vld [vmem:[%s240 + $0x34f8] sm:$0xff]
        %v1997 = vld [vmem:[%s240 + $0x3500] sm:$0xff]
        %v1998 = vld [vmem:[%s240 + $0x3508] sm:$0xff]
        %v1999 = vld [vmem:[%s240 + $0x3510] sm:$0xff]
        %v2000 = vld [vmem:[%s240 + $0x3518] sm:$0xff]
        %v2001 = vld [vmem:[%s240 + $0x3520] sm:$0xff]
        %v2002 = vld [vmem:[%s240 + $0x3528] sm:$0xff]
        %v2003 = vld [vmem:[%s240 + $0x3530] sm:$0xff]
        %v2004 = vld [vmem:[%s240 + $0x3538] sm:$0xff]
        %v2005 = vld [vmem:[%s240 + $0x3540] sm:$0xff]
        %v2006 = vld [vmem:[%s240 + $0x3548] sm:$0xff]
        %v2007 = vld [vmem:[%s240 + $0x3550] sm:$0xff]
        %v2008 = vld [vmem:[%s240 + $0x3558] sm:$0xff]
        %v2009 = vld [vmem:[%s240 + $0x3560] sm:$0xff]
        %v2010 = vld [vmem:[%s240 + $0x3568] sm:$0xff]
        %v2011 = vld [vmem:[%s240 + $0x3570] sm:$0xff]
        %v2012 = vld [vmem:[%s240 + $0x3578] sm:$0xff]
        %v2013 = vld [vmem:[%s240 + $0x3580] sm:$0xff]
        %v2014 = vld [vmem:[%s240 + $0x3588] sm:$0xff]
        %v2015 = vld [vmem:[%s240 + $0x3590] sm:$0xff]
        %v2016 = vld [vmem:[%s240 + $0x3598] sm:$0xff]
        %v2017 = vld [vmem:[%s240 + $0x35a0] sm:$0xff]
        %v2018 = vld [vmem:[%s240 + $0x35a8] sm:$0xff]
        %v2019 = vld [vmem:[%s240 + $0x35b0] sm:$0xff]
        %v2020 = vld [vmem:[%s240 + $0x35b8] sm:$0xff]
        %v2021 = vld [vmem:[%s240 + $0x35c0] sm:$0xff]
        %v2022 = vld [vmem:[%s240 + $0x35c8] sm:$0xff]
        %v2023 = vld [vmem:[%s240 + $0x35d0] sm:$0xff]
        %v2024 = vld [vmem:[%s240 + $0x35d8] sm:$0xff]
        %v2025 = vld [vmem:[%s240 + $0x35e0] sm:$0xff]
        %v2026 = vld [vmem:[%s240 + $0x35e8] sm:$0xff]
        %v2027 = vld [vmem:[%s240 + $0x35f0] sm:$0xff]
        %v2028 = vld [vmem:[%s240 + $0x35f8] sm:$0xff]
        %v2029 = vld [vmem:[%s240 + $0x3600] sm:$0xff]
        %v2030 = vld [vmem:[%s240 + $0x3608] sm:$0xff]
        %v2031 = vld [vmem:[%s240 + $0x3610] sm:$0xff]
        %v2032 = vld [vmem:[%s240 + $0x3618] sm:$0xff]
        %v2033 = vld [vmem:[%s240 + $0x3620] sm:$0xff]
        %v2034 = vld [vmem:[%s240 + $0x3628] sm:$0xff]
        %v2035 = vld [vmem:[%s240 + $0x3630] sm:$0xff]
        %v2036 = vld [vmem:[%s240 + $0x3638] sm:$0xff]
        %v2037 = vld [vmem:[%s240 + $0x3640] sm:$0xff]
        %v2038 = vld [vmem:[%s240 + $0x3648] sm:$0xff]
        %v2039 = vld [vmem:[%s240 + $0x3650] sm:$0xff]
        %v2040 = vld [vmem:[%s240 + $0x3658] sm:$0xff]
        %v2041 = vld [vmem:[%s240 + $0x3660] sm:$0xff]
        %v2042 = vld [vmem:[%s240 + $0x3668] sm:$0xff]
        %v2043 = vld [vmem:[%s240 + $0x3670] sm:$0xff]
        %v2044 = vld [vmem:[%s240 + $0x3678] sm:$0xff]
        %v2045 = vld [vmem:[%s240 + $0x3680] sm:$0xff]
        %v2046 = vld [vmem:[%s240 + $0x3688] sm:$0xff]
        %v2047 = vld [vmem:[%s240 + $0x3690] sm:$0xff]
        %v2048 = vld [vmem:[%s240 + $0x3698] sm:$0xff]
        %v2049 = vld [vmem:[%s240 + $0x36a0] sm:$0xff]
        %v2050 = vld [vmem:[%s240 + $0x36a8] sm:$0xff]
        %v2051 = vld [vmem:[%s240 + $0x36b0] sm:$0xff]
        %v2052 = vld [vmem:[%s240 + $0x36b8] sm:$0xff]
        %v2053 = vld [vmem:[%s240 + $0x36c0] sm:$0xff]
        %v2054 = vld [vmem:[%s240 + $0x36c8] sm:$0xff]
        %v2055 = vld [vmem:[%s240 + $0x36d0] sm:$0xff]
        %v2056 = vld [vmem:[%s240 + $0x36d8] sm:$0xff]
        %v2057 = vld [vmem:[%s240 + $0x36e0] sm:$0xff]
        %v2058 = vld [vmem:[%s240 + $0x36e8] sm:$0xff]
        %v2059 = vld [vmem:[%s240 + $0x36f0] sm:$0xff]
        %v2060 = vld [vmem:[%s240 + $0x36f8] sm:$0xff]
        %v2061 = vld [vmem:[%s240 + $0x3700] sm:$0xff]
        %v2062 = vld [vmem:[%s240 + $0x3708] sm:$0xff]
        %v2063 = vld [vmem:[%s240 + $0x3710] sm:$0xff]
        %v2064 = vld [vmem:[%s240 + $0x3718] sm:$0xff]
        %v2065 = vld [vmem:[%s240 + $0x3720] sm:$0xff]
        %v2066 = vld [vmem:[%s240 + $0x3728] sm:$0xff]
        %v2067 = vld [vmem:[%s240 + $0x3730] sm:$0xff]
        %v2068 = vld [vmem:[%s240 + $0x3738] sm:$0xff]
        %v2069 = vld [vmem:[%s240 + $0x3740] sm:$0xff]
        %v2070 = vld [vmem:[%s240 + $0x3748] sm:$0xff]
        %v2071 = vld [vmem:[%s240 + $0x3750] sm:$0xff]
        %v2072 = vld [vmem:[%s240 + $0x3758] sm:$0xff]
        %v2073 = vld [vmem:[%s240 + $0x3760] sm:$0xff]
        %v2074 = vld [vmem:[%s240 + $0x3768] sm:$0xff]
        %v2075 = vld [vmem:[%s240 + $0x3770] sm:$0xff]
        %v2076 = vld [vmem:[%s240 + $0x3778] sm:$0xff]
        %v2077 = vld [vmem:[%s240 + $0x3780] sm:$0xff]
        %v2078 = vld [vmem:[%s240 + $0x3788] sm:$0xff]
        %v2079 = vld [vmem:[%s240 + $0x3790] sm:$0xff]
        %v2080 = vld [vmem:[%s240 + $0x3798] sm:$0xff]
        %v2081 = vld [vmem:[%s240 + $0x37a0] sm:$0xff]
        %v2082 = vld [vmem:[%s240 + $0x37a8] sm:$0xff]
        %v2083 = vld [vmem:[%s240 + $0x37b0] sm:$0xff]
        %v2084 = vld [vmem:[%s240 + $0x37b8] sm:$0xff]
        %v2085 = vld [vmem:[%s240 + $0x37c0] sm:$0xff]
        %v2086 = vld [vmem:[%s240 + $0x37c8] sm:$0xff]
        %v2087 = vld [vmem:[%s240 + $0x37d0] sm:$0xff]
        %v2088 = vld [vmem:[%s240 + $0x37d8] sm:$0xff]
        %v2089 = vld [vmem:[%s240 + $0x37e0] sm:$0xff]
        %v2090 = vld [vmem:[%s240 + $0x37e8] sm:$0xff]
        %v2091 = vld [vmem:[%s240 + $0x37f0] sm:$0xff]
        %v2092 = vld [vmem:[%s240 + $0x37f8] sm:$0xff]
        %v2093 = vld [vmem:[%s240 + $0x3800] sm:$0xff]
        %v2094 = vld [vmem:[%s240 + $0x3808] sm:$0xff]
        %v2095 = vld [vmem:[%s240 + $0x3810] sm:$0xff]
        %v2096 = vld [vmem:[%s240 + $0x3818] sm:$0xff]
        %v2097 = vld [vmem:[%s240 + $0x3820] sm:$0xff]
        %v2098 = vld [vmem:[%s240 + $0x3828] sm:$0xff]
        %v2099 = vld [vmem:[%s240 + $0x3830] sm:$0xff]
        %v2100 = vld [vmem:[%s240 + $0x3838] sm:$0xff]
        %v2101 = vld [vmem:[%s240 + $0x3840] sm:$0xff]
        %v2102 = vld [vmem:[%s240 + $0x3848] sm:$0xff]
        %v2103 = vld [vmem:[%s240 + $0x3850] sm:$0xff]
        %v2104 = vld [vmem:[%s240 + $0x3858] sm:$0xff]
        %v2105 = vld [vmem:[%s240 + $0x3860] sm:$0xff]
        %v2106 = vld [vmem:[%s240 + $0x3868] sm:$0xff]
        %v2107 = vld [vmem:[%s240 + $0x3870] sm:$0xff]
        %v2108 = vld [vmem:[%s240 + $0x3878] sm:$0xff]
        %v2109 = vld [vmem:[%s240 + $0x3880] sm:$0xff]
        %v2110 = vld [vmem:[%s240 + $0x3888] sm:$0xff]
        %v2111 = vld [vmem:[%s240 + $0x3890] sm:$0xff]
        %v2112 = vld [vmem:[%s240 + $0x3898] sm:$0xff]
        %v2113 = vld [vmem:[%s240 + $0x38a0] sm:$0xff]
        %v2114 = vld [vmem:[%s240 + $0x38a8] sm:$0xff]
        %v2115 = vld [vmem:[%s240 + $0x38b0] sm:$0xff]
        %v2116 = vld [vmem:[%s240 + $0x38b8] sm:$0xff]
        %v2117 = vld [vmem:[%s240 + $0x38c0] sm:$0xff]
        %v2118 = vld [vmem:[%s240 + $0x38c8] sm:$0xff]
        %v2119 = vld [vmem:[%s240 + $0x38d0] sm:$0xff]
        %v2120 = vld [vmem:[%s240 + $0x38d8] sm:$0xff]
        %v2121 = vld [vmem:[%s240 + $0x38e0] sm:$0xff]
        %v2122 = vld [vmem:[%s240 + $0x38e8] sm:$0xff]
        %v2123 = vld [vmem:[%s240 + $0x38f0] sm:$0xff]
        %v2124 = vld [vmem:[%s240 + $0x38f8] sm:$0xff]
        %v2125 = vld [vmem:[%s240 + $0x3900] sm:$0xff]
        %v2126 = vld [vmem:[%s240 + $0x3908] sm:$0xff]
        %v2127 = vld [vmem:[%s240 + $0x3910] sm:$0xff]
        %v2128 = vld [vmem:[%s240 + $0x3918] sm:$0xff]
        %v2129 = vld [vmem:[%s240 + $0x3920] sm:$0xff]
        %v2130 = vld [vmem:[%s240 + $0x3928] sm:$0xff]
        %v2131 = vld [vmem:[%s240 + $0x3930] sm:$0xff]
        %v2132 = vld [vmem:[%s240 + $0x3938] sm:$0xff]
        %v2133 = vld [vmem:[%s240 + $0x3940] sm:$0xff]
        %v2134 = vld [vmem:[%s240 + $0x3948] sm:$0xff]
        %v2135 = vld [vmem:[%s240 + $0x3950] sm:$0xff]
        %v2136 = vld [vmem:[%s240 + $0x3958] sm:$0xff]
        %v2137 = vld [vmem:[%s240 + $0x3960] sm:$0xff]
        %v2138 = vld [vmem:[%s240 + $0x3968] sm:$0xff]
        %v2139 = vld [vmem:[%s240 + $0x3970] sm:$0xff]
        %v2140 = vld [vmem:[%s240 + $0x3978] sm:$0xff]
        %v2141 = vld [vmem:[%s240 + $0x3980] sm:$0xff]
        %v2142 = vld [vmem:[%s240 + $0x3988] sm:$0xff]
        %v2143 = vld [vmem:[%s240 + $0x3990] sm:$0xff]
        %v2144 = vld [vmem:[%s240 + $0x3998] sm:$0xff]
        %v2145 = vld [vmem:[%s240 + $0x39a0] sm:$0xff]
        %v2146 = vld [vmem:[%s240 + $0x39a8] sm:$0xff]
        %v2147 = vld [vmem:[%s240 + $0x39b0] sm:$0xff]
        %v2148 = vld [vmem:[%s240 + $0x39b8] sm:$0xff]
        %v2149 = vld [vmem:[%s240 + $0x39c0] sm:$0xff]
        %v2150 = vld [vmem:[%s240 + $0x39c8] sm:$0xff]
        %v2151 = vld [vmem:[%s240 + $0x39d0] sm:$0xff]
        %v2152 = vld [vmem:[%s240 + $0x39d8] sm:$0xff]
        %v2153 = vld [vmem:[%s240 + $0x39e0] sm:$0xff]
        %v2154 = vld [vmem:[%s240 + $0x39e8] sm:$0xff]
        %v2155 = vld [vmem:[%s240 + $0x39f0] sm:$0xff]
        %v2156 = vld [vmem:[%s240 + $0x39f8] sm:$0xff]
        %v2157 = vld [vmem:[%s240 + $0x3a00] sm:$0xff]
        %v2158 = vld [vmem:[%s240 + $0x3a08] sm:$0xff]
        %v2159 = vld [vmem:[%s240 + $0x3a10] sm:$0xff]
        %v2160 = vld [vmem:[%s240 + $0x3a18] sm:$0xff]
        %v2161 = vld [vmem:[%s240 + $0x3a20] sm:$0xff]
        %v2162 = vld [vmem:[%s240 + $0x3a28] sm:$0xff]
        %v2163 = vld [vmem:[%s240 + $0x3a30] sm:$0xff]
        %v2164 = vld [vmem:[%s240 + $0x3a38] sm:$0xff]
        %v2165 = vld [vmem:[%s240 + $0x3a40] sm:$0xff]
        %v2166 = vld [vmem:[%s240 + $0x3a48] sm:$0xff]
        %v2167 = vld [vmem:[%s240 + $0x3a50] sm:$0xff]
        %v2168 = vld [vmem:[%s240 + $0x3a58] sm:$0xff]
        %v2169 = vld [vmem:[%s240 + $0x3a60] sm:$0xff]
        %v2170 = vld [vmem:[%s240 + $0x3a68] sm:$0xff]
        %v2171 = vld [vmem:[%s240 + $0x3a70] sm:$0xff]
        %v2172 = vld [vmem:[%s240 + $0x3a78] sm:$0xff]
        %v2173 = vld [vmem:[%s240 + $0x3a80] sm:$0xff]
        %v2174 = vld [vmem:[%s240 + $0x3a88] sm:$0xff]
        %v2175 = vld [vmem:[%s240 + $0x3a90] sm:$0xff]
        %v2176 = vld [vmem:[%s240 + $0x3a98] sm:$0xff]
        %v2177 = vld [vmem:[%s240 + $0x3aa0] sm:$0xff]
        %v2178 = vld [vmem:[%s240 + $0x3aa8] sm:$0xff]
        %v2179 = vld [vmem:[%s240 + $0x3ab0] sm:$0xff]
        %v2180 = vld [vmem:[%s240 + $0x3ab8] sm:$0xff]
        %v2181 = vld [vmem:[%s240 + $0x3ac0] sm:$0xff]
        %v2182 = vld [vmem:[%s240 + $0x3ac8] sm:$0xff]
        %v2183 = vld [vmem:[%s240 + $0x3ad0] sm:$0xff]
        %v2184 = vld [vmem:[%s240 + $0x3ad8] sm:$0xff]
        %v2185 = vld [vmem:[%s240 + $0x3ae0] sm:$0xff]
        %v2186 = vld [vmem:[%s240 + $0x3ae8] sm:$0xff]
        %v2187 = vld [vmem:[%s240 + $0x3af0] sm:$0xff]
        %v2188 = vld [vmem:[%s240 + $0x3af8] sm:$0xff]
        %v2189 = vld [vmem:[%s240 + $0x3b00] sm:$0xff]
        %v2190 = vld [vmem:[%s240 + $0x3b08] sm:$0xff]
        %v2191 = vld [vmem:[%s240 + $0x3b10] sm:$0xff]
        %v2192 = vld [vmem:[%s240 + $0x3b18] sm:$0xff]
        %v2193 = vld [vmem:[%s240 + $0x3b20] sm:$0xff]
        %v2194 = vld [vmem:[%s240 + $0x3b28] sm:$0xff]
        %v2195 = vld [vmem:[%s240 + $0x3b30] sm:$0xff]
        %v2196 = vld [vmem:[%s240 + $0x3b38] sm:$0xff]
        %v2197 = vld [vmem:[%s240 + $0x3b40] sm:$0xff]
        %v2198 = vld [vmem:[%s240 + $0x3b48] sm:$0xff]
        %v2199 = vld [vmem:[%s240 + $0x3b50] sm:$0xff]
        %v2200 = vld [vmem:[%s240 + $0x3b58] sm:$0xff]
        %v2201 = vld [vmem:[%s240 + $0x3b60] sm:$0xff]
        %v2202 = vld [vmem:[%s240 + $0x3b68] sm:$0xff]
        %v2203 = vld [vmem:[%s240 + $0x3b70] sm:$0xff]
        %v2204 = vld [vmem:[%s240 + $0x3b78] sm:$0xff]
        %v2205 = vld [vmem:[%s240 + $0x3b80] sm:$0xff]
        %v2206 = vld [vmem:[%s240 + $0x3b88] sm:$0xff]
        %v2207 = vld [vmem:[%s240 + $0x3b90] sm:$0xff]
        %v2208 = vld [vmem:[%s240 + $0x3b98] sm:$0xff]
        %v2209 = vld [vmem:[%s240 + $0x3ba0] sm:$0xff]
        %v2210 = vld [vmem:[%s240 + $0x3ba8] sm:$0xff]
        %v2211 = vld [vmem:[%s240 + $0x3bb0] sm:$0xff]
        %v2212 = vld [vmem:[%s240 + $0x3bb8] sm:$0xff]
        %v2213 = vld [vmem:[%s240 + $0x3bc0] sm:$0xff]
        %v2214 = vld [vmem:[%s240 + $0x3bc8] sm:$0xff]
        %v2215 = vld [vmem:[%s240 + $0x3bd0] sm:$0xff]
        %v2216 = vld [vmem:[%s240 + $0x3bd8] sm:$0xff]
        %v2217 = vld [vmem:[%s240 + $0x3be0] sm:$0xff]
        %v2218 = vld [vmem:[%s240 + $0x3be8] sm:$0xff]
        %v2219 = vld [vmem:[%s240 + $0x3bf0] sm:$0xff]
        %v2220 = vld [vmem:[%s240 + $0x3bf8] sm:$0xff]
        %v2221 = vld [vmem:[%s240 + $0x3c00] sm:$0xff]
        %v2222 = vld [vmem:[%s240 + $0x3c08] sm:$0xff]
        %v2223 = vld [vmem:[%s240 + $0x3c10] sm:$0xff]
        %v2224 = vld [vmem:[%s240 + $0x3c18] sm:$0xff]
        %v2225 = vld [vmem:[%s240 + $0x3c20] sm:$0xff]
        %v2226 = vld [vmem:[%s240 + $0x3c28] sm:$0xff]
        %v2227 = vld [vmem:[%s240 + $0x3c30] sm:$0xff]
        %v2228 = vld [vmem:[%s240 + $0x3c38] sm:$0xff]
        %v2229 = vld [vmem:[%s240 + $0x3c40] sm:$0xff]
        %v2230 = vld [vmem:[%s240 + $0x3c48] sm:$0xff]
        %v2231 = vld [vmem:[%s240 + $0x3c50] sm:$0xff]
        %v2232 = vld [vmem:[%s240 + $0x3c58] sm:$0xff]
        %v2233 = vld [vmem:[%s240 + $0x3c60] sm:$0xff]
        %v2234 = vld [vmem:[%s240 + $0x3c68] sm:$0xff]
        %v2235 = vld [vmem:[%s240 + $0x3c70] sm:$0xff]
        %v2236 = vld [vmem:[%s240 + $0x3c78] sm:$0xff]
        %v2237 = vld [vmem:[%s240 + $0x3c80] sm:$0xff]
        %v2238 = vld [vmem:[%s240 + $0x3c88] sm:$0xff]
        %v2239 = vld [vmem:[%s240 + $0x3c90] sm:$0xff]
        %v2240 = vld [vmem:[%s240 + $0x3c98] sm:$0xff]
        %v2241 = vld [vmem:[%s240 + $0x3ca0] sm:$0xff]
        %v2242 = vld [vmem:[%s240 + $0x3ca8] sm:$0xff]
        %v2243 = vld [vmem:[%s240 + $0x3cb0] sm:$0xff]
        %v2244 = vld [vmem:[%s240 + $0x3cb8] sm:$0xff]
        %v2245 = vld [vmem:[%s240 + $0x3cc0] sm:$0xff]
        %v2246 = vld [vmem:[%s240 + $0x3cc8] sm:$0xff]
        %v2247 = vld [vmem:[%s240 + $0x3cd0] sm:$0xff]
        %v2248 = vld [vmem:[%s240 + $0x3cd8] sm:$0xff]
        %v2249 = vld [vmem:[%s240 + $0x3ce0] sm:$0xff]
        %v2250 = vld [vmem:[%s240 + $0x3ce8] sm:$0xff]
        %v2251 = vld [vmem:[%s240 + $0x3cf0] sm:$0xff]
        %v2252 = vld [vmem:[%s240 + $0x3cf8] sm:$0xff]
        %v2253 = vld [vmem:[%s240 + $0x3d00] sm:$0xff]
        %v2254 = vld [vmem:[%s240 + $0x3d08] sm:$0xff]
        %v2255 = vld [vmem:[%s240 + $0x3d10] sm:$0xff]
        %v2256 = vld [vmem:[%s240 + $0x3d18] sm:$0xff]
        %v2257 = vld [vmem:[%s240 + $0x3d20] sm:$0xff]
        %v2258 = vld [vmem:[%s240 + $0x3d28] sm:$0xff]
        %v2259 = vld [vmem:[%s240 + $0x3d30] sm:$0xff]
        %v2260 = vld [vmem:[%s240 + $0x3d38] sm:$0xff]
        %v2261 = vld [vmem:[%s240 + $0x3d40] sm:$0xff]
        %v2262 = vld [vmem:[%s240 + $0x3d48] sm:$0xff]
        %v2263 = vld [vmem:[%s240 + $0x3d50] sm:$0xff]
        %v2264 = vld [vmem:[%s240 + $0x3d58] sm:$0xff]
        %v2265 = vld [vmem:[%s240 + $0x3d60] sm:$0xff]
        %v2266 = vld [vmem:[%s240 + $0x3d68] sm:$0xff]
        %v2267 = vld [vmem:[%s240 + $0x3d70] sm:$0xff]
        %v2268 = vld [vmem:[%s240 + $0x3d78] sm:$0xff]
        %v2269 = vld [vmem:[%s240 + $0x3d80] sm:$0xff]
        %v2270 = vld [vmem:[%s240 + $0x3d88] sm:$0xff]
        %v2271 = vld [vmem:[%s240 + $0x3d90] sm:$0xff]
        %v2272 = vld [vmem:[%s240 + $0x3d98] sm:$0xff]
        %v2273 = vld [vmem:[%s240 + $0x3da0] sm:$0xff]
        %v2274 = vld [vmem:[%s240 + $0x3da8] sm:$0xff]
        %v2275 = vld [vmem:[%s240 + $0x3db0] sm:$0xff]
        %v2276 = vld [vmem:[%s240 + $0x3db8] sm:$0xff]
        %v2277 = vld [vmem:[%s240 + $0x3dc0] sm:$0xff]
        %v2278 = vld [vmem:[%s240 + $0x3dc8] sm:$0xff]
        %v2279 = vld [vmem:[%s240 + $0x3dd0] sm:$0xff]
        %v2280 = vld [vmem:[%s240 + $0x3dd8] sm:$0xff]
        %v2281 = vld [vmem:[%s240 + $0x3de0] sm:$0xff]
        %v2282 = vld [vmem:[%s240 + $0x3de8] sm:$0xff]
        %v2283 = vld [vmem:[%s240 + $0x3df0] sm:$0xff]
        %v2284 = vld [vmem:[%s240 + $0x3df8] sm:$0xff]
        %v2285 = vld [vmem:[%s240 + $0x3e00] sm:$0xff]
        %v2286 = vld [vmem:[%s240 + $0x3e08] sm:$0xff]
        %v2287 = vld [vmem:[%s240 + $0x3e10] sm:$0xff]
        %v2288 = vld [vmem:[%s240 + $0x3e18] sm:$0xff]
        %v2289 = vld [vmem:[%s240 + $0x3e20] sm:$0xff]
        %v2290 = vld [vmem:[%s240 + $0x3e28] sm:$0xff]
        %v2291 = vld [vmem:[%s240 + $0x3e30] sm:$0xff]
        %v2292 = vld [vmem:[%s240 + $0x3e38] sm:$0xff]
        %v2293 = vld [vmem:[%s240 + $0x3e40] sm:$0xff]
        %v2294 = vld [vmem:[%s240 + $0x3e48] sm:$0xff]
        %v2295 = vld [vmem:[%s240 + $0x3e50] sm:$0xff]
        %v2296 = vld [vmem:[%s240 + $0x3e58] sm:$0xff]
        %v2297 = vld [vmem:[%s240 + $0x3e60] sm:$0xff]
        %v2298 = vld [vmem:[%s240 + $0x3e68] sm:$0xff]
        %v2299 = vld [vmem:[%s240 + $0x3e70] sm:$0xff]
        %v2300 = vld [vmem:[%s240 + $0x3e78] sm:$0xff]
        %v2301 = vld [vmem:[%s240 + $0x3e80] sm:$0xff]
        %v2302 = vld [vmem:[%s240 + $0x3e88] sm:$0xff]
        %v2303 = vld [vmem:[%s240 + $0x3e90] sm:$0xff]
        %v2304 = vld [vmem:[%s240 + $0x3e98] sm:$0xff]
        %v2305 = vld [vmem:[%s240 + $0x3ea0] sm:$0xff]
        %v2306 = vld [vmem:[%s240 + $0x3ea8] sm:$0xff]
        %v2307 = vld [vmem:[%s240 + $0x3eb0] sm:$0xff]
        %v2308 = vld [vmem:[%s240 + $0x3eb8] sm:$0xff]
        %v2309 = vld [vmem:[%s240 + $0x3ec0] sm:$0xff]
        %v2310 = vld [vmem:[%s240 + $0x3ec8] sm:$0xff]
        %v2311 = vld [vmem:[%s240 + $0x3ed0] sm:$0xff]
        %v2312 = vld [vmem:[%s240 + $0x3ed8] sm:$0xff]
        %v2313 = vld [vmem:[%s240 + $0x3ee0] sm:$0xff]
        %v2314 = vld [vmem:[%s240 + $0x3ee8] sm:$0xff]
        %v2315 = vld [vmem:[%s240 + $0x3ef0] sm:$0xff]
        %v2316 = vld [vmem:[%s240 + $0x3ef8] sm:$0xff]
        %v2317 = vld [vmem:[%s240 + $0x3f00] sm:$0xff]
        %v2318 = vld [vmem:[%s240 + $0x3f08] sm:$0xff]
        %v2319 = vld [vmem:[%s240 + $0x3f10] sm:$0xff]
        %v2320 = vld [vmem:[%s240 + $0x3f18] sm:$0xff]
        %v2321 = vld [vmem:[%s240 + $0x3f20] sm:$0xff]
        %v2322 = vld [vmem:[%s240 + $0x3f28] sm:$0xff]
        %v2323 = vld [vmem:[%s240 + $0x3f30] sm:$0xff]
        %v2324 = vld [vmem:[%s240 + $0x3f38] sm:$0xff]
        %v2325 = vld [vmem:[%s240 + $0x3f40] sm:$0xff]
        %v2326 = vld [vmem:[%s240 + $0x3f48] sm:$0xff]
        %v2327 = vld [vmem:[%s240 + $0x3f50] sm:$0xff]
        %v2328 = vld [vmem:[%s240 + $0x3f58] sm:$0xff]
        %v2329 = vld [vmem:[%s240 + $0x3f60] sm:$0xff]
        %v2330 = vld [vmem:[%s240 + $0x3f68] sm:$0xff]
        %v2331 = vld [vmem:[%s240 + $0x3f70] sm:$0xff]
        %v2332 = vld [vmem:[%s240 + $0x3f78] sm:$0xff]
        %v2333 = vld [vmem:[%s240 + $0x3f80] sm:$0xff]
        %v2334 = vld [vmem:[%s240 + $0x3f88] sm:$0xff]
        %v2335 = vld [vmem:[%s240 + $0x3f90] sm:$0xff]
        %v2336 = vld [vmem:[%s240 + $0x3f98] sm:$0xff]
        %v2337 = vld [vmem:[%s240 + $0x3fa0] sm:$0xff]
        %v2338 = vld [vmem:[%s240 + $0x3fa8] sm:$0xff]
        %v2339 = vld [vmem:[%s240 + $0x3fb0] sm:$0xff]
        %v2340 = vld [vmem:[%s240 + $0x3fb8] sm:$0xff]
        %v2341 = vld [vmem:[%s240 + $0x3fc0] sm:$0xff]
        %v2342 = vld [vmem:[%s240 + $0x3fc8] sm:$0xff]
        %v2343 = vld [vmem:[%s240 + $0x3fd0] sm:$0xff]
        %v2344 = vld [vmem:[%s240 + $0x3fd8] sm:$0xff]
        %v2345 = vld [vmem:[%s240 + $0x3fe0] sm:$0xff]
        %v2346 = vld [vmem:[%s240 + $0x3fe8] sm:$0xff]
        %v2347 = vld [vmem:[%s240 + $0x3ff0] sm:$0xff]
        %v2348 = vld [vmem:[%s240 + $0x3ff8] sm:$0xff]
        %2353 = vst [vmem:[#allocation1] ss:$4 sm:$0xff] %v297
        %s2354 = scalar_lea.vmem [#allocation1], 32
        %2355 = vst [vmem:[%s2354] ss:$4 sm:$0xff] %v298
        %v2356 = vld.sshfl [vmem:[#allocation1] sm:$0xff pattern:$0x73625140]
        %v2357 = vld.sshfl [vmem:[#allocation1 + $0x8] sm:$0xff pattern:$0x73625140]
        %v2358 = vld.sshfl [vmem:[#allocation1 + $0x10] sm:$0xff pattern:$0x73625140]
        %v2359 = vld.sshfl [vmem:[#allocation1 + $0x18] sm:$0xff pattern:$0x73625140]
        %v2360 = vld.sshfl [vmem:[#allocation1 + $0x20] sm:$0xff pattern:$0x73625140]
        %v2361 = vld.sshfl [vmem:[#allocation1 + $0x28] sm:$0xff pattern:$0x73625140]
        %v2362 = vld.sshfl [vmem:[#allocation1 + $0x30] sm:$0xff pattern:$0x73625140]
        %v2363 = vld.sshfl [vmem:[#allocation1 + $0x38] sm:$0xff pattern:$0x73625140]
        %2364 = vst [vmem:[#allocation1] ss:$4 sm:$0xff] %v299
        %2365 = vst [vmem:[%s2354] ss:$4 sm:$0xff] %v300
        %v2366 = vld.sshfl [vmem:[#allocation1] sm:$0xff pattern:$0x73625140]
        %v2367 = vld.sshfl [vmem:[#allocation1 + $0x8] sm:$0xff pattern:$0x73625140]
        %v2368 = vld.sshfl [vmem:[#allocation1 + $0x10] sm:$0xff pattern:$0x73625140]
        %v2369 = vld.sshfl [vmem:[#allocation1 + $0x18] sm:$0xff pattern:$0x73625140]
        %v2370 = vld.sshfl [vmem:[#allocation1 + $0x20] sm:$0xff pattern:$0x73625140]
        %v2371 = vld.sshfl [vmem:[#allocation1 + $0x28] sm:$0xff pattern:$0x73625140]
        %v2372 = vld.sshfl [vmem:[#allocation1 + $0x30] sm:$0xff pattern:$0x73625140]
        %v2373 = vld.sshfl [vmem:[#allocation1 + $0x38] sm:$0xff pattern:$0x73625140]
        %2390 = vmatpush.msra.mxu0 %v421
        %2391 = vmatpush.msra.mxu0 %v413
        %2392 = vmatpush.msra.mxu0 %v405
        %2393 = vmatpush.msra.mxu0 %v397
        %2394 = vmatpush.msra.mxu0 %v389
        %2395 = vmatpush.msra.mxu0 %v381
        %2396 = vmatpush.msra.mxu0 %v373
        %2397 = vmatpush.msra.mxu0 %v365
        %2398 = vmatpush.msra.mxu0 %v357
        %2399 = vmatpush.msra.mxu0 %v349
        %2400 = vmatpush.msra.mxu0 %v341
        %2401 = vmatpush.msra.mxu0 %v333
        %2402 = vmatpush.msra.mxu0 %v325
        %2403 = vmatpush.msra.mxu0 %v317
        %2404 = vmatpush.msra.mxu0 %v309
        %2405 = vmatpush.msra.mxu0 %v301
        %2406 = vmatmul.f32.gmra.mxu0 %v2356
        %v2407 = vpop.f32.mrf.mxu0
        %v2408 = vadd.f32 0.0, %v2407
        %2409 = vdwg.mxu0
        %2410 = vmatpush.msra.mxu0 %v549
        %2411 = vmatpush.msra.mxu0 %v541
        %2412 = vmatpush.msra.mxu0 %v533
        %2413 = vmatpush.msra.mxu0 %v525
        %2414 = vmatpush.msra.mxu0 %v517
        %2415 = vmatpush.msra.mxu0 %v509
        %2416 = vmatpush.msra.mxu0 %v501
        %2417 = vmatpush.msra.mxu0 %v493
        %2418 = vmatpush.msra.mxu0 %v485
        %2419 = vmatpush.msra.mxu0 %v477
        %2420 = vmatpush.msra.mxu0 %v469
        %2421 = vmatpush.msra.mxu0 %v461
        %2422 = vmatpush.msra.mxu0 %v453
        %2423 = vmatpush.msra.mxu0 %v445
        %2424 = vmatpush.msra.mxu0 %v437
        %2425 = vmatpush.msra.mxu0 %v429
        %2426 = vmatmul.f32.gmra.mxu0 %v2357
        %v2427 = vpop.f32.mrf.mxu0
        %v2428 = vadd.f32 %v2408, %v2427
        %2429 = vdwg.mxu0
        %2430 = vmatpush.msra.mxu0 %v677
        %2431 = vmatpush.msra.mxu0 %v669
        %2432 = vmatpush.msra.mxu0 %v661
        %2433 = vmatpush.msra.mxu0 %v653
        %2434 = vmatpush.msra.mxu0 %v645
        %2435 = vmatpush.msra.mxu0 %v637
        %2436 = vmatpush.msra.mxu0 %v629
        %2437 = vmatpush.msra.mxu0 %v621
        %2438 = vmatpush.msra.mxu0 %v613
        %2439 = vmatpush.msra.mxu0 %v605
        %2440 = vmatpush.msra.mxu0 %v597
        %2441 = vmatpush.msra.mxu0 %v589
        %2442 = vmatpush.msra.mxu0 %v581
        %2443 = vmatpush.msra.mxu0 %v573
        %2444 = vmatpush.msra.mxu0 %v565
        %2445 = vmatpush.msra.mxu0 %v557
        %2446 = vmatmul.f32.gmra.mxu0 %v2358
        %v2447 = vpop.f32.mrf.mxu0
        %v2448 = vadd.f32 %v2428, %v2447
        %2449 = vdwg.mxu0
        %2450 = vmatpush.msra.mxu0 %v805
        %2451 = vmatpush.msra.mxu0 %v797
        %2452 = vmatpush.msra.mxu0 %v789
        %2453 = vmatpush.msra.mxu0 %v781
        %2454 = vmatpush.msra.mxu0 %v773
        %2455 = vmatpush.msra.mxu0 %v765
        %2456 = vmatpush.msra.mxu0 %v757
        %2457 = vmatpush.msra.mxu0 %v749
        %2458 = vmatpush.msra.mxu0 %v741
        %2459 = vmatpush.msra.mxu0 %v733
        %2460 = vmatpush.msra.mxu0 %v725
        %2461 = vmatpush.msra.mxu0 %v717
        %2462 = vmatpush.msra.mxu0 %v709
        %2463 = vmatpush.msra.mxu0 %v701
        %2464 = vmatpush.msra.mxu0 %v693
        %2465 = vmatpush.msra.mxu0 %v685
        %2466 = vmatmul.f32.gmra.mxu0 %v2359
        %v2467 = vpop.f32.mrf.mxu0
        %v2468 = vadd.f32 %v2448, %v2467
        %2469 = vdwg.mxu0
        %2470 = vmatpush.msra.mxu0 %v933
        %2471 = vmatpush.msra.mxu0 %v925
        %2472 = vmatpush.msra.mxu0 %v917
        %2473 = vmatpush.msra.mxu0 %v909
        %2474 = vmatpush.msra.mxu0 %v901
        %2475 = vmatpush.msra.mxu0 %v893
        %2476 = vmatpush.msra.mxu0 %v885
        %2477 = vmatpush.msra.mxu0 %v877
        %2478 = vmatpush.msra.mxu0 %v869
        %2479 = vmatpush.msra.mxu0 %v861
        %2480 = vmatpush.msra.mxu0 %v853
        %2481 = vmatpush.msra.mxu0 %v845
        %2482 = vmatpush.msra.mxu0 %v837
        %2483 = vmatpush.msra.mxu0 %v829
        %2484 = vmatpush.msra.mxu0 %v821
        %2485 = vmatpush.msra.mxu0 %v813
        %2486 = vmatmul.f32.gmra.mxu0 %v2360
        %v2487 = vpop.f32.mrf.mxu0
        %v2488 = vadd.f32 %v2468, %v2487
        %2489 = vdwg.mxu0
        %2490 = vmatpush.msra.mxu0 %v1061
        %2491 = vmatpush.msra.mxu0 %v1053
        %2492 = vmatpush.msra.mxu0 %v1045
        %2493 = vmatpush.msra.mxu0 %v1037
        %2494 = vmatpush.msra.mxu0 %v1029
        %2495 = vmatpush.msra.mxu0 %v1021
        %2496 = vmatpush.msra.mxu0 %v1013
        %2497 = vmatpush.msra.mxu0 %v1005
        %2498 = vmatpush.msra.mxu0 %v997
        %2499 = vmatpush.msra.mxu0 %v989
        %2500 = vmatpush.msra.mxu0 %v981
        %2501 = vmatpush.msra.mxu0 %v973
        %2502 = vmatpush.msra.mxu0 %v965
        %2503 = vmatpush.msra.mxu0 %v957
        %2504 = vmatpush.msra.mxu0 %v949
        %2505 = vmatpush.msra.mxu0 %v941
        %2506 = vmatmul.f32.gmra.mxu0 %v2361
        %v2507 = vpop.f32.mrf.mxu0
        %v2508 = vadd.f32 %v2488, %v2507
        %2509 = vdwg.mxu0
        %2510 = vmatpush.msra.mxu0 %v1189
        %2511 = vmatpush.msra.mxu0 %v1181
        %2512 = vmatpush.msra.mxu0 %v1173
        %2513 = vmatpush.msra.mxu0 %v1165
        %2514 = vmatpush.msra.mxu0 %v1157
        %2515 = vmatpush.msra.mxu0 %v1149
        %2516 = vmatpush.msra.mxu0 %v1141
        %2517 = vmatpush.msra.mxu0 %v1133
        %2518 = vmatpush.msra.mxu0 %v1125
        %2519 = vmatpush.msra.mxu0 %v1117
        %2520 = vmatpush.msra.mxu0 %v1109
        %2521 = vmatpush.msra.mxu0 %v1101
        %2522 = vmatpush.msra.mxu0 %v1093
        %2523 = vmatpush.msra.mxu0 %v1085
        %2524 = vmatpush.msra.mxu0 %v1077
        %2525 = vmatpush.msra.mxu0 %v1069
        %2526 = vmatmul.f32.gmra.mxu0 %v2362
        %v2527 = vpop.f32.mrf.mxu0
        %v2528 = vadd.f32 %v2508, %v2527
        %2529 = vdwg.mxu0
        %2530 = vmatpush.msra.mxu0 %v1317
        %2531 = vmatpush.msra.mxu0 %v1309
        %2532 = vmatpush.msra.mxu0 %v1301
        %2533 = vmatpush.msra.mxu0 %v1293
        %2534 = vmatpush.msra.mxu0 %v1285
        %2535 = vmatpush.msra.mxu0 %v1277
        %2536 = vmatpush.msra.mxu0 %v1269
        %2537 = vmatpush.msra.mxu0 %v1261
        %2538 = vmatpush.msra.mxu0 %v1253
        %2539 = vmatpush.msra.mxu0 %v1245
        %2540 = vmatpush.msra.mxu0 %v1237
        %2541 = vmatpush.msra.mxu0 %v1229
        %2542 = vmatpush.msra.mxu0 %v1221
        %2543 = vmatpush.msra.mxu0 %v1213
        %2544 = vmatpush.msra.mxu0 %v1205
        %2545 = vmatpush.msra.mxu0 %v1197
        %2546 = vmatmul.f32.gmra.mxu0 %v2363
        %v2547 = vpop.f32.mrf.mxu0
        %v2548 = vadd.f32 %v2528, %v2547
        %2549 = vdwg.mxu0
        %2550 = vmatpush.msra.mxu0 %v1445
        %2551 = vmatpush.msra.mxu0 %v1437
        %2552 = vmatpush.msra.mxu0 %v1429
        %2553 = vmatpush.msra.mxu0 %v1421
        %2554 = vmatpush.msra.mxu0 %v1413
        %2555 = vmatpush.msra.mxu0 %v1405
        %2556 = vmatpush.msra.mxu0 %v1397
        %2557 = vmatpush.msra.mxu0 %v1389
        %2558 = vmatpush.msra.mxu0 %v1381
        %2559 = vmatpush.msra.mxu0 %v1373
        %2560 = vmatpush.msra.mxu0 %v1365
        %2561 = vmatpush.msra.mxu0 %v1357
        %2562 = vmatpush.msra.mxu0 %v1349
        %2563 = vmatpush.msra.mxu0 %v1341
        %2564 = vmatpush.msra.mxu0 %v1333
        %2565 = vmatpush.msra.mxu0 %v1325
        %2566 = vmatmul.f32.gmra.mxu0 %v2366
        %v2567 = vpop.f32.mrf.mxu0
        %v2568 = vadd.f32 %v2548, %v2567
        %2569 = vdwg.mxu0
        %2570 = vmatpush.msra.mxu0 %v1573
        %2571 = vmatpush.msra.mxu0 %v1565
        %2572 = vmatpush.msra.mxu0 %v1557
        %2573 = vmatpush.msra.mxu0 %v1549
        %2574 = vmatpush.msra.mxu0 %v1541
        %2575 = vmatpush.msra.mxu0 %v1533
        %2576 = vmatpush.msra.mxu0 %v1525
        %2577 = vmatpush.msra.mxu0 %v1517
        %2578 = vmatpush.msra.mxu0 %v1509
        %2579 = vmatpush.msra.mxu0 %v1501
        %2580 = vmatpush.msra.mxu0 %v1493
        %2581 = vmatpush.msra.mxu0 %v1485
        %2582 = vmatpush.msra.mxu0 %v1477
        %2583 = vmatpush.msra.mxu0 %v1469
        %2584 = vmatpush.msra.mxu0 %v1461
        %2585 = vmatpush.msra.mxu0 %v1453
        %2586 = vmatmul.f32.gmra.mxu0 %v2367
        %v2587 = vpop.f32.mrf.mxu0
        %v2588 = vadd.f32 %v2568, %v2587
        %2589 = vdwg.mxu0
        %2590 = vmatpush.msra.mxu0 %v1701
        %2591 = vmatpush.msra.mxu0 %v1693
        %2592 = vmatpush.msra.mxu0 %v1685
        %2593 = vmatpush.msra.mxu0 %v1677
        %2594 = vmatpush.msra.mxu0 %v1669
        %2595 = vmatpush.msra.mxu0 %v1661
        %2596 = vmatpush.msra.mxu0 %v1653
        %2597 = vmatpush.msra.mxu0 %v1645
        %2598 = vmatpush.msra.mxu0 %v1637
        %2599 = vmatpush.msra.mxu0 %v1629
        %2600 = vmatpush.msra.mxu0 %v1621
        %2601 = vmatpush.msra.mxu0 %v1613
        %2602 = vmatpush.msra.mxu0 %v1605
        %2603 = vmatpush.msra.mxu0 %v1597
        %2604 = vmatpush.msra.mxu0 %v1589
        %2605 = vmatpush.msra.mxu0 %v1581
        %2606 = vmatmul.f32.gmra.mxu0 %v2368
        %v2607 = vpop.f32.mrf.mxu0
        %v2608 = vadd.f32 %v2588, %v2607
        %2609 = vdwg.mxu0
        %2610 = vmatpush.msra.mxu0 %v1829
        %2611 = vmatpush.msra.mxu0 %v1821
        %2612 = vmatpush.msra.mxu0 %v1813
        %2613 = vmatpush.msra.mxu0 %v1805
        %2614 = vmatpush.msra.mxu0 %v1797
        %2615 = vmatpush.msra.mxu0 %v1789
        %2616 = vmatpush.msra.mxu0 %v1781
        %2617 = vmatpush.msra.mxu0 %v1773
        %2618 = vmatpush.msra.mxu0 %v1765
        %2619 = vmatpush.msra.mxu0 %v1757
        %2620 = vmatpush.msra.mxu0 %v1749
        %2621 = vmatpush.msra.mxu0 %v1741
        %2622 = vmatpush.msra.mxu0 %v1733
        %2623 = vmatpush.msra.mxu0 %v1725
        %2624 = vmatpush.msra.mxu0 %v1717
        %2625 = vmatpush.msra.mxu0 %v1709
        %2626 = vmatmul.f32.gmra.mxu0 %v2369
        %v2627 = vpop.f32.mrf.mxu0
        %v2628 = vadd.f32 %v2608, %v2627
        %2629 = vdwg.mxu0
        %2630 = vmatpush.msra.mxu0 %v1957
        %2631 = vmatpush.msra.mxu0 %v1949
        %2632 = vmatpush.msra.mxu0 %v1941
        %2633 = vmatpush.msra.mxu0 %v1933
        %2634 = vmatpush.msra.mxu0 %v1925
        %2635 = vmatpush.msra.mxu0 %v1917
        %2636 = vmatpush.msra.mxu0 %v1909
        %2637 = vmatpush.msra.mxu0 %v1901
        %2638 = vmatpush.msra.mxu0 %v1893
        %2639 = vmatpush.msra.mxu0 %v1885
        %2640 = vmatpush.msra.mxu0 %v1877
        %2641 = vmatpush.msra.mxu0 %v1869
        %2642 = vmatpush.msra.mxu0 %v1861
        %2643 = vmatpush.msra.mxu0 %v1853
        %2644 = vmatpush.msra.mxu0 %v1845
        %2645 = vmatpush.msra.mxu0 %v1837
        %2646 = vmatmul.f32.gmra.mxu0 %v2370
        %v2647 = vpop.f32.mrf.mxu0
        %v2648 = vadd.f32 %v2628, %v2647
        %2649 = vdwg.mxu0
        %2650 = vmatpush.msra.mxu0 %v2085
        %2651 = vmatpush.msra.mxu0 %v2077
        %2652 = vmatpush.msra.mxu0 %v2069
        %2653 = vmatpush.msra.mxu0 %v2061
        %2654 = vmatpush.msra.mxu0 %v2053
        %2655 = vmatpush.msra.mxu0 %v2045
        %2656 = vmatpush.msra.mxu0 %v2037
        %2657 = vmatpush.msra.mxu0 %v2029
        %2658 = vmatpush.msra.mxu0 %v2021
        %2659 = vmatpush.msra.mxu0 %v2013
        %2660 = vmatpush.msra.mxu0 %v2005
        %2661 = vmatpush.msra.mxu0 %v1997
        %2662 = vmatpush.msra.mxu0 %v1989
        %2663 = vmatpush.msra.mxu0 %v1981
        %2664 = vmatpush.msra.mxu0 %v1973
        %2665 = vmatpush.msra.mxu0 %v1965
        %2666 = vmatmul.f32.gmra.mxu0 %v2371
        %v2667 = vpop.f32.mrf.mxu0
        %v2668 = vadd.f32 %v2648, %v2667
        %2669 = vdwg.mxu0
        %2670 = vmatpush.msra.mxu0 %v2213
        %2671 = vmatpush.msra.mxu0 %v2205
        %2672 = vmatpush.msra.mxu0 %v2197
        %2673 = vmatpush.msra.mxu0 %v2189
        %2674 = vmatpush.msra.mxu0 %v2181
        %2675 = vmatpush.msra.mxu0 %v2173
        %2676 = vmatpush.msra.mxu0 %v2165
        %2677 = vmatpush.msra.mxu0 %v2157
        %2678 = vmatpush.msra.mxu0 %v2149
        %2679 = vmatpush.msra.mxu0 %v2141
        %2680 = vmatpush.msra.mxu0 %v2133
        %2681 = vmatpush.msra.mxu0 %v2125
        %2682 = vmatpush.msra.mxu0 %v2117
        %2683 = vmatpush.msra.mxu0 %v2109
        %2684 = vmatpush.msra.mxu0 %v2101
        %2685 = vmatpush.msra.mxu0 %v2093
        %2686 = vmatmul.f32.gmra.mxu0 %v2372
        %v2687 = vpop.f32.mrf.mxu0
        %v2688 = vadd.f32 %v2668, %v2687
        %2689 = vdwg.mxu0
        %2690 = vmatpush.msra.mxu0 %v2341
        %2691 = vmatpush.msra.mxu0 %v2333
        %2692 = vmatpush.msra.mxu0 %v2325
        %2693 = vmatpush.msra.mxu0 %v2317
        %2694 = vmatpush.msra.mxu0 %v2309
        %2695 = vmatpush.msra.mxu0 %v2301
        %2696 = vmatpush.msra.mxu0 %v2293
        %2697 = vmatpush.msra.mxu0 %v2285
        %2698 = vmatpush.msra.mxu0 %v2277
        %2699 = vmatpush.msra.mxu0 %v2269
        %2700 = vmatpush.msra.mxu0 %v2261
        %2701 = vmatpush.msra.mxu0 %v2253
        %2702 = vmatpush.msra.mxu0 %v2245
        %2703 = vmatpush.msra.mxu0 %v2237
        %2704 = vmatpush.msra.mxu0 %v2229
        %2705 = vmatpush.msra.mxu0 %v2221
        %2706 = vmatmul.f32.gmra.mxu0 %v2373
        %v2707 = vpop.f32.mrf.mxu0
        %v2708 = vadd.f32 %v2688, %v2707
        %2709 = vdwg.mxu0
        %2710 = vmatpush.msra.mxu0 %v422
        %2711 = vmatpush.msra.mxu0 %v414
        %2712 = vmatpush.msra.mxu0 %v406
        %2713 = vmatpush.msra.mxu0 %v398
        %2714 = vmatpush.msra.mxu0 %v390
        %2715 = vmatpush.msra.mxu0 %v382
        %2716 = vmatpush.msra.mxu0 %v374
        %2717 = vmatpush.msra.mxu0 %v366
        %2718 = vmatpush.msra.mxu0 %v358
        %2719 = vmatpush.msra.mxu0 %v350
        %2720 = vmatpush.msra.mxu0 %v342
        %2721 = vmatpush.msra.mxu0 %v334
        %2722 = vmatpush.msra.mxu0 %v326
        %2723 = vmatpush.msra.mxu0 %v318
        %2724 = vmatpush.msra.mxu0 %v310
        %2725 = vmatpush.msra.mxu0 %v302
        %2726 = vmatmul.f32.gmra.mxu0 %v2356
        %v2727 = vpop.f32.mrf.mxu0
        %v2728 = vadd.f32 0.0, %v2727
        %2729 = vdwg.mxu0
        %2730 = vmatpush.msra.mxu0 %v550
        %2731 = vmatpush.msra.mxu0 %v542
        %2732 = vmatpush.msra.mxu0 %v534
        %2733 = vmatpush.msra.mxu0 %v526
        %2734 = vmatpush.msra.mxu0 %v518
        %2735 = vmatpush.msra.mxu0 %v510
        %2736 = vmatpush.msra.mxu0 %v502
        %2737 = vmatpush.msra.mxu0 %v494
        %2738 = vmatpush.msra.mxu0 %v486
        %2739 = vmatpush.msra.mxu0 %v478
        %2740 = vmatpush.msra.mxu0 %v470
        %2741 = vmatpush.msra.mxu0 %v462
        %2742 = vmatpush.msra.mxu0 %v454
        %2743 = vmatpush.msra.mxu0 %v446
        %2744 = vmatpush.msra.mxu0 %v438
        %2745 = vmatpush.msra.mxu0 %v430
        %2746 = vmatmul.f32.gmra.mxu0 %v2357
        %v2747 = vpop.f32.mrf.mxu0
        %v2748 = vadd.f32 %v2728, %v2747
        %2749 = vdwg.mxu0
        %2750 = vmatpush.msra.mxu0 %v678
        %2751 = vmatpush.msra.mxu0 %v670
        %2752 = vmatpush.msra.mxu0 %v662
        %2753 = vmatpush.msra.mxu0 %v654
        %2754 = vmatpush.msra.mxu0 %v646
        %2755 = vmatpush.msra.mxu0 %v638
        %2756 = vmatpush.msra.mxu0 %v630
        %2757 = vmatpush.msra.mxu0 %v622
        %2758 = vmatpush.msra.mxu0 %v614
        %2759 = vmatpush.msra.mxu0 %v606
        %2760 = vmatpush.msra.mxu0 %v598
        %2761 = vmatpush.msra.mxu0 %v590
        %2762 = vmatpush.msra.mxu0 %v582
        %2763 = vmatpush.msra.mxu0 %v574
        %2764 = vmatpush.msra.mxu0 %v566
        %2765 = vmatpush.msra.mxu0 %v558
        %2766 = vmatmul.f32.gmra.mxu0 %v2358
        %v2767 = vpop.f32.mrf.mxu0
        %v2768 = vadd.f32 %v2748, %v2767
        %2769 = vdwg.mxu0
        %2770 = vmatpush.msra.mxu0 %v806
        %2771 = vmatpush.msra.mxu0 %v798
        %2772 = vmatpush.msra.mxu0 %v790
        %2773 = vmatpush.msra.mxu0 %v782
        %2774 = vmatpush.msra.mxu0 %v774
        %2775 = vmatpush.msra.mxu0 %v766
        %2776 = vmatpush.msra.mxu0 %v758
        %2777 = vmatpush.msra.mxu0 %v750
        %2778 = vmatpush.msra.mxu0 %v742
        %2779 = vmatpush.msra.mxu0 %v734
        %2780 = vmatpush.msra.mxu0 %v726
        %2781 = vmatpush.msra.mxu0 %v718
        %2782 = vmatpush.msra.mxu0 %v710
        %2783 = vmatpush.msra.mxu0 %v702
        %2784 = vmatpush.msra.mxu0 %v694
        %2785 = vmatpush.msra.mxu0 %v686
        %2786 = vmatmul.f32.gmra.mxu0 %v2359
        %v2787 = vpop.f32.mrf.mxu0
        %v2788 = vadd.f32 %v2768, %v2787
        %2789 = vdwg.mxu0
        %2790 = vmatpush.msra.mxu0 %v934
        %2791 = vmatpush.msra.mxu0 %v926
        %2792 = vmatpush.msra.mxu0 %v918
        %2793 = vmatpush.msra.mxu0 %v910
        %2794 = vmatpush.msra.mxu0 %v902
        %2795 = vmatpush.msra.mxu0 %v894
        %2796 = vmatpush.msra.mxu0 %v886
        %2797 = vmatpush.msra.mxu0 %v878
        %2798 = vmatpush.msra.mxu0 %v870
        %2799 = vmatpush.msra.mxu0 %v862
        %2800 = vmatpush.msra.mxu0 %v854
        %2801 = vmatpush.msra.mxu0 %v846
        %2802 = vmatpush.msra.mxu0 %v838
        %2803 = vmatpush.msra.mxu0 %v830
        %2804 = vmatpush.msra.mxu0 %v822
        %2805 = vmatpush.msra.mxu0 %v814
        %2806 = vmatmul.f32.gmra.mxu0 %v2360
        %v2807 = vpop.f32.mrf.mxu0
        %v2808 = vadd.f32 %v2788, %v2807
        %2809 = vdwg.mxu0
        %2810 = vmatpush.msra.mxu0 %v1062
        %2811 = vmatpush.msra.mxu0 %v1054
        %2812 = vmatpush.msra.mxu0 %v1046
        %2813 = vmatpush.msra.mxu0 %v1038
        %2814 = vmatpush.msra.mxu0 %v1030
        %2815 = vmatpush.msra.mxu0 %v1022
        %2816 = vmatpush.msra.mxu0 %v1014
        %2817 = vmatpush.msra.mxu0 %v1006
        %2818 = vmatpush.msra.mxu0 %v998
        %2819 = vmatpush.msra.mxu0 %v990
        %2820 = vmatpush.msra.mxu0 %v982
        %2821 = vmatpush.msra.mxu0 %v974
        %2822 = vmatpush.msra.mxu0 %v966
        %2823 = vmatpush.msra.mxu0 %v958
        %2824 = vmatpush.msra.mxu0 %v950
        %2825 = vmatpush.msra.mxu0 %v942
        %2826 = vmatmul.f32.gmra.mxu0 %v2361
        %v2827 = vpop.f32.mrf.mxu0
        %v2828 = vadd.f32 %v2808, %v2827
        %2829 = vdwg.mxu0
        %2830 = vmatpush.msra.mxu0 %v1190
        %2831 = vmatpush.msra.mxu0 %v1182
        %2832 = vmatpush.msra.mxu0 %v1174
        %2833 = vmatpush.msra.mxu0 %v1166
        %2834 = vmatpush.msra.mxu0 %v1158
        %2835 = vmatpush.msra.mxu0 %v1150
        %2836 = vmatpush.msra.mxu0 %v1142
        %2837 = vmatpush.msra.mxu0 %v1134
        %2838 = vmatpush.msra.mxu0 %v1126
        %2839 = vmatpush.msra.mxu0 %v1118
        %2840 = vmatpush.msra.mxu0 %v1110
        %2841 = vmatpush.msra.mxu0 %v1102
        %2842 = vmatpush.msra.mxu0 %v1094
        %2843 = vmatpush.msra.mxu0 %v1086
        %2844 = vmatpush.msra.mxu0 %v1078
        %2845 = vmatpush.msra.mxu0 %v1070
        %2846 = vmatmul.f32.gmra.mxu0 %v2362
        %v2847 = vpop.f32.mrf.mxu0
        %v2848 = vadd.f32 %v2828, %v2847
        %2849 = vdwg.mxu0
        %2850 = vmatpush.msra.mxu0 %v1318
        %2851 = vmatpush.msra.mxu0 %v1310
        %2852 = vmatpush.msra.mxu0 %v1302
        %2853 = vmatpush.msra.mxu0 %v1294
        %2854 = vmatpush.msra.mxu0 %v1286
        %2855 = vmatpush.msra.mxu0 %v1278
        %2856 = vmatpush.msra.mxu0 %v1270
        %2857 = vmatpush.msra.mxu0 %v1262
        %2858 = vmatpush.msra.mxu0 %v1254
        %2859 = vmatpush.msra.mxu0 %v1246
        %2860 = vmatpush.msra.mxu0 %v1238
        %2861 = vmatpush.msra.mxu0 %v1230
        %2862 = vmatpush.msra.mxu0 %v1222
        %2863 = vmatpush.msra.mxu0 %v1214
        %2864 = vmatpush.msra.mxu0 %v1206
        %2865 = vmatpush.msra.mxu0 %v1198
        %2866 = vmatmul.f32.gmra.mxu0 %v2363
        %v2867 = vpop.f32.mrf.mxu0
        %v2868 = vadd.f32 %v2848, %v2867
        %2869 = vdwg.mxu0
        %2870 = vmatpush.msra.mxu0 %v1446
        %2871 = vmatpush.msra.mxu0 %v1438
        %2872 = vmatpush.msra.mxu0 %v1430
        %2873 = vmatpush.msra.mxu0 %v1422
        %2874 = vmatpush.msra.mxu0 %v1414
        %2875 = vmatpush.msra.mxu0 %v1406
        %2876 = vmatpush.msra.mxu0 %v1398
        %2877 = vmatpush.msra.mxu0 %v1390
        %2878 = vmatpush.msra.mxu0 %v1382
        %2879 = vmatpush.msra.mxu0 %v1374
        %2880 = vmatpush.msra.mxu0 %v1366
        %2881 = vmatpush.msra.mxu0 %v1358
        %2882 = vmatpush.msra.mxu0 %v1350
        %2883 = vmatpush.msra.mxu0 %v1342
        %2884 = vmatpush.msra.mxu0 %v1334
        %2885 = vmatpush.msra.mxu0 %v1326
        %2886 = vmatmul.f32.gmra.mxu0 %v2366
        %v2887 = vpop.f32.mrf.mxu0
        %v2888 = vadd.f32 %v2868, %v2887
        %2889 = vdwg.mxu0
        %2890 = vmatpush.msra.mxu0 %v1574
        %2891 = vmatpush.msra.mxu0 %v1566
        %2892 = vmatpush.msra.mxu0 %v1558
        %2893 = vmatpush.msra.mxu0 %v1550
        %2894 = vmatpush.msra.mxu0 %v1542
        %2895 = vmatpush.msra.mxu0 %v1534
        %2896 = vmatpush.msra.mxu0 %v1526
        %2897 = vmatpush.msra.mxu0 %v1518
        %2898 = vmatpush.msra.mxu0 %v1510
        %2899 = vmatpush.msra.mxu0 %v1502
        %2900 = vmatpush.msra.mxu0 %v1494
        %2901 = vmatpush.msra.mxu0 %v1486
        %2902 = vmatpush.msra.mxu0 %v1478
        %2903 = vmatpush.msra.mxu0 %v1470
        %2904 = vmatpush.msra.mxu0 %v1462
        %2905 = vmatpush.msra.mxu0 %v1454
        %2906 = vmatmul.f32.gmra.mxu0 %v2367
        %v2907 = vpop.f32.mrf.mxu0
        %v2908 = vadd.f32 %v2888, %v2907
        %2909 = vdwg.mxu0
        %2910 = vmatpush.msra.mxu0 %v1702
        %2911 = vmatpush.msra.mxu0 %v1694
        %2912 = vmatpush.msra.mxu0 %v1686
        %2913 = vmatpush.msra.mxu0 %v1678
        %2914 = vmatpush.msra.mxu0 %v1670
        %2915 = vmatpush.msra.mxu0 %v1662
        %2916 = vmatpush.msra.mxu0 %v1654
        %2917 = vmatpush.msra.mxu0 %v1646
        %2918 = vmatpush.msra.mxu0 %v1638
        %2919 = vmatpush.msra.mxu0 %v1630
        %2920 = vmatpush.msra.mxu0 %v1622
        %2921 = vmatpush.msra.mxu0 %v1614
        %2922 = vmatpush.msra.mxu0 %v1606
        %2923 = vmatpush.msra.mxu0 %v1598
        %2924 = vmatpush.msra.mxu0 %v1590
        %2925 = vmatpush.msra.mxu0 %v1582
        %2926 = vmatmul.f32.gmra.mxu0 %v2368
        %v2927 = vpop.f32.mrf.mxu0
        %v2928 = vadd.f32 %v2908, %v2927
        %2929 = vdwg.mxu0
        %2930 = vmatpush.msra.mxu0 %v1830
        %2931 = vmatpush.msra.mxu0 %v1822
        %2932 = vmatpush.msra.mxu0 %v1814
        %2933 = vmatpush.msra.mxu0 %v1806
        %2934 = vmatpush.msra.mxu0 %v1798
        %2935 = vmatpush.msra.mxu0 %v1790
        %2936 = vmatpush.msra.mxu0 %v1782
        %2937 = vmatpush.msra.mxu0 %v1774
        %2938 = vmatpush.msra.mxu0 %v1766
        %2939 = vmatpush.msra.mxu0 %v1758
        %2940 = vmatpush.msra.mxu0 %v1750
        %2941 = vmatpush.msra.mxu0 %v1742
        %2942 = vmatpush.msra.mxu0 %v1734
        %2943 = vmatpush.msra.mxu0 %v1726
        %2944 = vmatpush.msra.mxu0 %v1718
        %2945 = vmatpush.msra.mxu0 %v1710
        %2946 = vmatmul.f32.gmra.mxu0 %v2369
        %v2947 = vpop.f32.mrf.mxu0
        %v2948 = vadd.f32 %v2928, %v2947
        %2949 = vdwg.mxu0
        %2950 = vmatpush.msra.mxu0 %v1958
        %2951 = vmatpush.msra.mxu0 %v1950
        %2952 = vmatpush.msra.mxu0 %v1942
        %2953 = vmatpush.msra.mxu0 %v1934
        %2954 = vmatpush.msra.mxu0 %v1926
        %2955 = vmatpush.msra.mxu0 %v1918
        %2956 = vmatpush.msra.mxu0 %v1910
        %2957 = vmatpush.msra.mxu0 %v1902
        %2958 = vmatpush.msra.mxu0 %v1894
        %2959 = vmatpush.msra.mxu0 %v1886
        %2960 = vmatpush.msra.mxu0 %v1878
        %2961 = vmatpush.msra.mxu0 %v1870
        %2962 = vmatpush.msra.mxu0 %v1862
        %2963 = vmatpush.msra.mxu0 %v1854
        %2964 = vmatpush.msra.mxu0 %v1846
        %2965 = vmatpush.msra.mxu0 %v1838
        %2966 = vmatmul.f32.gmra.mxu0 %v2370
        %v2967 = vpop.f32.mrf.mxu0
        %v2968 = vadd.f32 %v2948, %v2967
        %2969 = vdwg.mxu0
        %2970 = vmatpush.msra.mxu0 %v2086
        %2971 = vmatpush.msra.mxu0 %v2078
        %2972 = vmatpush.msra.mxu0 %v2070
        %2973 = vmatpush.msra.mxu0 %v2062
        %2974 = vmatpush.msra.mxu0 %v2054
        %2975 = vmatpush.msra.mxu0 %v2046
        %2976 = vmatpush.msra.mxu0 %v2038
        %2977 = vmatpush.msra.mxu0 %v2030
        %2978 = vmatpush.msra.mxu0 %v2022
        %2979 = vmatpush.msra.mxu0 %v2014
        %2980 = vmatpush.msra.mxu0 %v2006
        %2981 = vmatpush.msra.mxu0 %v1998
        %2982 = vmatpush.msra.mxu0 %v1990
        %2983 = vmatpush.msra.mxu0 %v1982
        %2984 = vmatpush.msra.mxu0 %v1974
        %2985 = vmatpush.msra.mxu0 %v1966
        %2986 = vmatmul.f32.gmra.mxu0 %v2371
        %v2987 = vpop.f32.mrf.mxu0
        %v2988 = vadd.f32 %v2968, %v2987
        %2989 = vdwg.mxu0
        %2990 = vmatpush.msra.mxu0 %v2214
        %2991 = vmatpush.msra.mxu0 %v2206
        %2992 = vmatpush.msra.mxu0 %v2198
        %2993 = vmatpush.msra.mxu0 %v2190
        %2994 = vmatpush.msra.mxu0 %v2182
        %2995 = vmatpush.msra.mxu0 %v2174
        %2996 = vmatpush.msra.mxu0 %v2166
        %2997 = vmatpush.msra.mxu0 %v2158
        %2998 = vmatpush.msra.mxu0 %v2150
        %2999 = vmatpush.msra.mxu0 %v2142
        %3000 = vmatpush.msra.mxu0 %v2134
        %3001 = vmatpush.msra.mxu0 %v2126
        %3002 = vmatpush.msra.mxu0 %v2118
        %3003 = vmatpush.msra.mxu0 %v2110
        %3004 = vmatpush.msra.mxu0 %v2102
        %3005 = vmatpush.msra.mxu0 %v2094
        %3006 = vmatmul.f32.gmra.mxu0 %v2372
        %v3007 = vpop.f32.mrf.mxu0
        %v3008 = vadd.f32 %v2988, %v3007
        %3009 = vdwg.mxu0
        %3010 = vmatpush.msra.mxu0 %v2342
        %3011 = vmatpush.msra.mxu0 %v2334
        %3012 = vmatpush.msra.mxu0 %v2326
        %3013 = vmatpush.msra.mxu0 %v2318
        %3014 = vmatpush.msra.mxu0 %v2310
        %3015 = vmatpush.msra.mxu0 %v2302
        %3016 = vmatpush.msra.mxu0 %v2294
        %3017 = vmatpush.msra.mxu0 %v2286
        %3018 = vmatpush.msra.mxu0 %v2278
        %3019 = vmatpush.msra.mxu0 %v2270
        %3020 = vmatpush.msra.mxu0 %v2262
        %3021 = vmatpush.msra.mxu0 %v2254
        %3022 = vmatpush.msra.mxu0 %v2246
        %3023 = vmatpush.msra.mxu0 %v2238
        %3024 = vmatpush.msra.mxu0 %v2230
        %3025 = vmatpush.msra.mxu0 %v2222
        %3026 = vmatmul.f32.gmra.mxu0 %v2373
        %v3027 = vpop.f32.mrf.mxu0
        %v3028 = vadd.f32 %v3008, %v3027
        %3029 = vdwg.mxu0
        %3030 = vmatpush.msra.mxu0 %v423
        %3031 = vmatpush.msra.mxu0 %v415
        %3032 = vmatpush.msra.mxu0 %v407
        %3033 = vmatpush.msra.mxu0 %v399
        %3034 = vmatpush.msra.mxu0 %v391
        %3035 = vmatpush.msra.mxu0 %v383
        %3036 = vmatpush.msra.mxu0 %v375
        %3037 = vmatpush.msra.mxu0 %v367
        %3038 = vmatpush.msra.mxu0 %v359
        %3039 = vmatpush.msra.mxu0 %v351
        %3040 = vmatpush.msra.mxu0 %v343
        %3041 = vmatpush.msra.mxu0 %v335
        %3042 = vmatpush.msra.mxu0 %v327
        %3043 = vmatpush.msra.mxu0 %v319
        %3044 = vmatpush.msra.mxu0 %v311
        %3045 = vmatpush.msra.mxu0 %v303
        %3046 = vmatmul.f32.gmra.mxu0 %v2356
        %v3047 = vpop.f32.mrf.mxu0
        %v3048 = vadd.f32 0.0, %v3047
        %3049 = vdwg.mxu0
        %3050 = vmatpush.msra.mxu0 %v551
        %3051 = vmatpush.msra.mxu0 %v543
        %3052 = vmatpush.msra.mxu0 %v535
        %3053 = vmatpush.msra.mxu0 %v527
        %3054 = vmatpush.msra.mxu0 %v519
        %3055 = vmatpush.msra.mxu0 %v511
        %3056 = vmatpush.msra.mxu0 %v503
        %3057 = vmatpush.msra.mxu0 %v495
        %3058 = vmatpush.msra.mxu0 %v487
        %3059 = vmatpush.msra.mxu0 %v479
        %3060 = vmatpush.msra.mxu0 %v471
        %3061 = vmatpush.msra.mxu0 %v463
        %3062 = vmatpush.msra.mxu0 %v455
        %3063 = vmatpush.msra.mxu0 %v447
        %3064 = vmatpush.msra.mxu0 %v439
        %3065 = vmatpush.msra.mxu0 %v431
        %3066 = vmatmul.f32.gmra.mxu0 %v2357
        %v3067 = vpop.f32.mrf.mxu0
        %v3068 = vadd.f32 %v3048, %v3067
        %3069 = vdwg.mxu0
        %3070 = vmatpush.msra.mxu0 %v679
        %3071 = vmatpush.msra.mxu0 %v671
        %3072 = vmatpush.msra.mxu0 %v663
        %3073 = vmatpush.msra.mxu0 %v655
        %3074 = vmatpush.msra.mxu0 %v647
        %3075 = vmatpush.msra.mxu0 %v639
        %3076 = vmatpush.msra.mxu0 %v631
        %3077 = vmatpush.msra.mxu0 %v623
        %3078 = vmatpush.msra.mxu0 %v615
        %3079 = vmatpush.msra.mxu0 %v607
        %3080 = vmatpush.msra.mxu0 %v599
        %3081 = vmatpush.msra.mxu0 %v591
        %3082 = vmatpush.msra.mxu0 %v583
        %3083 = vmatpush.msra.mxu0 %v575
        %3084 = vmatpush.msra.mxu0 %v567
        %3085 = vmatpush.msra.mxu0 %v559
        %3086 = vmatmul.f32.gmra.mxu0 %v2358
        %v3087 = vpop.f32.mrf.mxu0
        %v3088 = vadd.f32 %v3068, %v3087
        %3089 = vdwg.mxu0
        %3090 = vmatpush.msra.mxu0 %v807
        %3091 = vmatpush.msra.mxu0 %v799
        %3092 = vmatpush.msra.mxu0 %v791
        %3093 = vmatpush.msra.mxu0 %v783
        %3094 = vmatpush.msra.mxu0 %v775
        %3095 = vmatpush.msra.mxu0 %v767
        %3096 = vmatpush.msra.mxu0 %v759
        %3097 = vmatpush.msra.mxu0 %v751
        %3098 = vmatpush.msra.mxu0 %v743
        %3099 = vmatpush.msra.mxu0 %v735
        %3100 = vmatpush.msra.mxu0 %v727
        %3101 = vmatpush.msra.mxu0 %v719
        %3102 = vmatpush.msra.mxu0 %v711
        %3103 = vmatpush.msra.mxu0 %v703
        %3104 = vmatpush.msra.mxu0 %v695
        %3105 = vmatpush.msra.mxu0 %v687
        %3106 = vmatmul.f32.gmra.mxu0 %v2359
        %v3107 = vpop.f32.mrf.mxu0
        %v3108 = vadd.f32 %v3088, %v3107
        %3109 = vdwg.mxu0
        %3110 = vmatpush.msra.mxu0 %v935
        %3111 = vmatpush.msra.mxu0 %v927
        %3112 = vmatpush.msra.mxu0 %v919
        %3113 = vmatpush.msra.mxu0 %v911
        %3114 = vmatpush.msra.mxu0 %v903
        %3115 = vmatpush.msra.mxu0 %v895
        %3116 = vmatpush.msra.mxu0 %v887
        %3117 = vmatpush.msra.mxu0 %v879
        %3118 = vmatpush.msra.mxu0 %v871
        %3119 = vmatpush.msra.mxu0 %v863
        %3120 = vmatpush.msra.mxu0 %v855
        %3121 = vmatpush.msra.mxu0 %v847
        %3122 = vmatpush.msra.mxu0 %v839
        %3123 = vmatpush.msra.mxu0 %v831
        %3124 = vmatpush.msra.mxu0 %v823
        %3125 = vmatpush.msra.mxu0 %v815
        %3126 = vmatmul.f32.gmra.mxu0 %v2360
        %v3127 = vpop.f32.mrf.mxu0
        %v3128 = vadd.f32 %v3108, %v3127
        %3129 = vdwg.mxu0
        %3130 = vmatpush.msra.mxu0 %v1063
        %3131 = vmatpush.msra.mxu0 %v1055
        %3132 = vmatpush.msra.mxu0 %v1047
        %3133 = vmatpush.msra.mxu0 %v1039
        %3134 = vmatpush.msra.mxu0 %v1031
        %3135 = vmatpush.msra.mxu0 %v1023
        %3136 = vmatpush.msra.mxu0 %v1015
        %3137 = vmatpush.msra.mxu0 %v1007
        %3138 = vmatpush.msra.mxu0 %v999
        %3139 = vmatpush.msra.mxu0 %v991
        %3140 = vmatpush.msra.mxu0 %v983
        %3141 = vmatpush.msra.mxu0 %v975
        %3142 = vmatpush.msra.mxu0 %v967
        %3143 = vmatpush.msra.mxu0 %v959
        %3144 = vmatpush.msra.mxu0 %v951
        %3145 = vmatpush.msra.mxu0 %v943
        %3146 = vmatmul.f32.gmra.mxu0 %v2361
        %v3147 = vpop.f32.mrf.mxu0
        %v3148 = vadd.f32 %v3128, %v3147
        %3149 = vdwg.mxu0
        %3150 = vmatpush.msra.mxu0 %v1191
        %3151 = vmatpush.msra.mxu0 %v1183
        %3152 = vmatpush.msra.mxu0 %v1175
        %3153 = vmatpush.msra.mxu0 %v1167
        %3154 = vmatpush.msra.mxu0 %v1159
        %3155 = vmatpush.msra.mxu0 %v1151
        %3156 = vmatpush.msra.mxu0 %v1143
        %3157 = vmatpush.msra.mxu0 %v1135
        %3158 = vmatpush.msra.mxu0 %v1127
        %3159 = vmatpush.msra.mxu0 %v1119
        %3160 = vmatpush.msra.mxu0 %v1111
        %3161 = vmatpush.msra.mxu0 %v1103
        %3162 = vmatpush.msra.mxu0 %v1095
        %3163 = vmatpush.msra.mxu0 %v1087
        %3164 = vmatpush.msra.mxu0 %v1079
        %3165 = vmatpush.msra.mxu0 %v1071
        %3166 = vmatmul.f32.gmra.mxu0 %v2362
        %v3167 = vpop.f32.mrf.mxu0
        %v3168 = vadd.f32 %v3148, %v3167
        %3169 = vdwg.mxu0
        %3170 = vmatpush.msra.mxu0 %v1319
        %3171 = vmatpush.msra.mxu0 %v1311
        %3172 = vmatpush.msra.mxu0 %v1303
        %3173 = vmatpush.msra.mxu0 %v1295
        %3174 = vmatpush.msra.mxu0 %v1287
        %3175 = vmatpush.msra.mxu0 %v1279
        %3176 = vmatpush.msra.mxu0 %v1271
        %3177 = vmatpush.msra.mxu0 %v1263
        %3178 = vmatpush.msra.mxu0 %v1255
        %3179 = vmatpush.msra.mxu0 %v1247
        %3180 = vmatpush.msra.mxu0 %v1239
        %3181 = vmatpush.msra.mxu0 %v1231
        %3182 = vmatpush.msra.mxu0 %v1223
        %3183 = vmatpush.msra.mxu0 %v1215
        %3184 = vmatpush.msra.mxu0 %v1207
        %3185 = vmatpush.msra.mxu0 %v1199
        %3186 = vmatmul.f32.gmra.mxu0 %v2363
        %v3187 = vpop.f32.mrf.mxu0
        %v3188 = vadd.f32 %v3168, %v3187
        %3189 = vdwg.mxu0
        %3190 = vmatpush.msra.mxu0 %v1447
        %3191 = vmatpush.msra.mxu0 %v1439
        %3192 = vmatpush.msra.mxu0 %v1431
        %3193 = vmatpush.msra.mxu0 %v1423
        %3194 = vmatpush.msra.mxu0 %v1415
        %3195 = vmatpush.msra.mxu0 %v1407
        %3196 = vmatpush.msra.mxu0 %v1399
        %3197 = vmatpush.msra.mxu0 %v1391
        %3198 = vmatpush.msra.mxu0 %v1383
        %3199 = vmatpush.msra.mxu0 %v1375
        %3200 = vmatpush.msra.mxu0 %v1367
        %3201 = vmatpush.msra.mxu0 %v1359
        %3202 = vmatpush.msra.mxu0 %v1351
        %3203 = vmatpush.msra.mxu0 %v1343
        %3204 = vmatpush.msra.mxu0 %v1335
        %3205 = vmatpush.msra.mxu0 %v1327
        %3206 = vmatmul.f32.gmra.mxu0 %v2366
        %v3207 = vpop.f32.mrf.mxu0
        %v3208 = vadd.f32 %v3188, %v3207
        %3209 = vdwg.mxu0
        %3210 = vmatpush.msra.mxu0 %v1575
        %3211 = vmatpush.msra.mxu0 %v1567
        %3212 = vmatpush.msra.mxu0 %v1559
        %3213 = vmatpush.msra.mxu0 %v1551
        %3214 = vmatpush.msra.mxu0 %v1543
        %3215 = vmatpush.msra.mxu0 %v1535
        %3216 = vmatpush.msra.mxu0 %v1527
        %3217 = vmatpush.msra.mxu0 %v1519
        %3218 = vmatpush.msra.mxu0 %v1511
        %3219 = vmatpush.msra.mxu0 %v1503
        %3220 = vmatpush.msra.mxu0 %v1495
        %3221 = vmatpush.msra.mxu0 %v1487
        %3222 = vmatpush.msra.mxu0 %v1479
        %3223 = vmatpush.msra.mxu0 %v1471
        %3224 = vmatpush.msra.mxu0 %v1463
        %3225 = vmatpush.msra.mxu0 %v1455
        %3226 = vmatmul.f32.gmra.mxu0 %v2367
        %v3227 = vpop.f32.mrf.mxu0
        %v3228 = vadd.f32 %v3208, %v3227
        %3229 = vdwg.mxu0
        %3230 = vmatpush.msra.mxu0 %v1703
        %3231 = vmatpush.msra.mxu0 %v1695
        %3232 = vmatpush.msra.mxu0 %v1687
        %3233 = vmatpush.msra.mxu0 %v1679
        %3234 = vmatpush.msra.mxu0 %v1671
        %3235 = vmatpush.msra.mxu0 %v1663
        %3236 = vmatpush.msra.mxu0 %v1655
        %3237 = vmatpush.msra.mxu0 %v1647
        %3238 = vmatpush.msra.mxu0 %v1639
        %3239 = vmatpush.msra.mxu0 %v1631
        %3240 = vmatpush.msra.mxu0 %v1623
        %3241 = vmatpush.msra.mxu0 %v1615
        %3242 = vmatpush.msra.mxu0 %v1607
        %3243 = vmatpush.msra.mxu0 %v1599
        %3244 = vmatpush.msra.mxu0 %v1591
        %3245 = vmatpush.msra.mxu0 %v1583
        %3246 = vmatmul.f32.gmra.mxu0 %v2368
        %v3247 = vpop.f32.mrf.mxu0
        %v3248 = vadd.f32 %v3228, %v3247
        %3249 = vdwg.mxu0
        %3250 = vmatpush.msra.mxu0 %v1831
        %3251 = vmatpush.msra.mxu0 %v1823
        %3252 = vmatpush.msra.mxu0 %v1815
        %3253 = vmatpush.msra.mxu0 %v1807
        %3254 = vmatpush.msra.mxu0 %v1799
        %3255 = vmatpush.msra.mxu0 %v1791
        %3256 = vmatpush.msra.mxu0 %v1783
        %3257 = vmatpush.msra.mxu0 %v1775
        %3258 = vmatpush.msra.mxu0 %v1767
        %3259 = vmatpush.msra.mxu0 %v1759
        %3260 = vmatpush.msra.mxu0 %v1751
        %3261 = vmatpush.msra.mxu0 %v1743
        %3262 = vmatpush.msra.mxu0 %v1735
        %3263 = vmatpush.msra.mxu0 %v1727
        %3264 = vmatpush.msra.mxu0 %v1719
        %3265 = vmatpush.msra.mxu0 %v1711
        %3266 = vmatmul.f32.gmra.mxu0 %v2369
        %v3267 = vpop.f32.mrf.mxu0
        %v3268 = vadd.f32 %v3248, %v3267
        %3269 = vdwg.mxu0
        %3270 = vmatpush.msra.mxu0 %v1959
        %3271 = vmatpush.msra.mxu0 %v1951
        %3272 = vmatpush.msra.mxu0 %v1943
        %3273 = vmatpush.msra.mxu0 %v1935
        %3274 = vmatpush.msra.mxu0 %v1927
        %3275 = vmatpush.msra.mxu0 %v1919
        %3276 = vmatpush.msra.mxu0 %v1911
        %3277 = vmatpush.msra.mxu0 %v1903
        %3278 = vmatpush.msra.mxu0 %v1895
        %3279 = vmatpush.msra.mxu0 %v1887
        %3280 = vmatpush.msra.mxu0 %v1879
        %3281 = vmatpush.msra.mxu0 %v1871
        %3282 = vmatpush.msra.mxu0 %v1863
        %3283 = vmatpush.msra.mxu0 %v1855
        %3284 = vmatpush.msra.mxu0 %v1847
        %3285 = vmatpush.msra.mxu0 %v1839
        %3286 = vmatmul.f32.gmra.mxu0 %v2370
        %v3287 = vpop.f32.mrf.mxu0
        %v3288 = vadd.f32 %v3268, %v3287
        %3289 = vdwg.mxu0
        %3290 = vmatpush.msra.mxu0 %v2087
        %3291 = vmatpush.msra.mxu0 %v2079
        %3292 = vmatpush.msra.mxu0 %v2071
        %3293 = vmatpush.msra.mxu0 %v2063
        %3294 = vmatpush.msra.mxu0 %v2055
        %3295 = vmatpush.msra.mxu0 %v2047
        %3296 = vmatpush.msra.mxu0 %v2039
        %3297 = vmatpush.msra.mxu0 %v2031
        %3298 = vmatpush.msra.mxu0 %v2023
        %3299 = vmatpush.msra.mxu0 %v2015
        %3300 = vmatpush.msra.mxu0 %v2007
        %3301 = vmatpush.msra.mxu0 %v1999
        %3302 = vmatpush.msra.mxu0 %v1991
        %3303 = vmatpush.msra.mxu0 %v1983
        %3304 = vmatpush.msra.mxu0 %v1975
        %3305 = vmatpush.msra.mxu0 %v1967
        %3306 = vmatmul.f32.gmra.mxu0 %v2371
        %v3307 = vpop.f32.mrf.mxu0
        %v3308 = vadd.f32 %v3288, %v3307
        %3309 = vdwg.mxu0
        %3310 = vmatpush.msra.mxu0 %v2215
        %3311 = vmatpush.msra.mxu0 %v2207
        %3312 = vmatpush.msra.mxu0 %v2199
        %3313 = vmatpush.msra.mxu0 %v2191
        %3314 = vmatpush.msra.mxu0 %v2183
        %3315 = vmatpush.msra.mxu0 %v2175
        %3316 = vmatpush.msra.mxu0 %v2167
        %3317 = vmatpush.msra.mxu0 %v2159
        %3318 = vmatpush.msra.mxu0 %v2151
        %3319 = vmatpush.msra.mxu0 %v2143
        %3320 = vmatpush.msra.mxu0 %v2135
        %3321 = vmatpush.msra.mxu0 %v2127
        %3322 = vmatpush.msra.mxu0 %v2119
        %3323 = vmatpush.msra.mxu0 %v2111
        %3324 = vmatpush.msra.mxu0 %v2103
        %3325 = vmatpush.msra.mxu0 %v2095
        %3326 = vmatmul.f32.gmra.mxu0 %v2372
        %v3327 = vpop.f32.mrf.mxu0
        %v3328 = vadd.f32 %v3308, %v3327
        %3329 = vdwg.mxu0
        %3330 = vmatpush.msra.mxu0 %v2343
        %3331 = vmatpush.msra.mxu0 %v2335
        %3332 = vmatpush.msra.mxu0 %v2327
        %3333 = vmatpush.msra.mxu0 %v2319
        %3334 = vmatpush.msra.mxu0 %v2311
        %3335 = vmatpush.msra.mxu0 %v2303
        %3336 = vmatpush.msra.mxu0 %v2295
        %3337 = vmatpush.msra.mxu0 %v2287
        %3338 = vmatpush.msra.mxu0 %v2279
        %3339 = vmatpush.msra.mxu0 %v2271
        %3340 = vmatpush.msra.mxu0 %v2263
        %3341 = vmatpush.msra.mxu0 %v2255
        %3342 = vmatpush.msra.mxu0 %v2247
        %3343 = vmatpush.msra.mxu0 %v2239
        %3344 = vmatpush.msra.mxu0 %v2231
        %3345 = vmatpush.msra.mxu0 %v2223
        %3346 = vmatmul.f32.gmra.mxu0 %v2373
        %v3347 = vpop.f32.mrf.mxu0
        %v3348 = vadd.f32 %v3328, %v3347
        %3349 = vdwg.mxu0
        %3350 = vmatpush.msra.mxu0 %v424
        %3351 = vmatpush.msra.mxu0 %v416
        %3352 = vmatpush.msra.mxu0 %v408
        %3353 = vmatpush.msra.mxu0 %v400
        %3354 = vmatpush.msra.mxu0 %v392
        %3355 = vmatpush.msra.mxu0 %v384
        %3356 = vmatpush.msra.mxu0 %v376
        %3357 = vmatpush.msra.mxu0 %v368
        %3358 = vmatpush.msra.mxu0 %v360
        %3359 = vmatpush.msra.mxu0 %v352
        %3360 = vmatpush.msra.mxu0 %v344
        %3361 = vmatpush.msra.mxu0 %v336
        %3362 = vmatpush.msra.mxu0 %v328
        %3363 = vmatpush.msra.mxu0 %v320
        %3364 = vmatpush.msra.mxu0 %v312
        %3365 = vmatpush.msra.mxu0 %v304
        %3366 = vmatmul.f32.gmra.mxu0 %v2356
        %v3367 = vpop.f32.mrf.mxu0
        %v3368 = vadd.f32 0.0, %v3367
        %3369 = vdwg.mxu0
        %3370 = vmatpush.msra.mxu0 %v552
        %3371 = vmatpush.msra.mxu0 %v544
        %3372 = vmatpush.msra.mxu0 %v536
        %3373 = vmatpush.msra.mxu0 %v528
        %3374 = vmatpush.msra.mxu0 %v520
        %3375 = vmatpush.msra.mxu0 %v512
        %3376 = vmatpush.msra.mxu0 %v504
        %3377 = vmatpush.msra.mxu0 %v496
        %3378 = vmatpush.msra.mxu0 %v488
        %3379 = vmatpush.msra.mxu0 %v480
        %3380 = vmatpush.msra.mxu0 %v472
        %3381 = vmatpush.msra.mxu0 %v464
        %3382 = vmatpush.msra.mxu0 %v456
        %3383 = vmatpush.msra.mxu0 %v448
        %3384 = vmatpush.msra.mxu0 %v440
        %3385 = vmatpush.msra.mxu0 %v432
        %3386 = vmatmul.f32.gmra.mxu0 %v2357
        %v3387 = vpop.f32.mrf.mxu0
        %v3388 = vadd.f32 %v3368, %v3387
        %3389 = vdwg.mxu0
        %3390 = vmatpush.msra.mxu0 %v680
        %3391 = vmatpush.msra.mxu0 %v672
        %3392 = vmatpush.msra.mxu0 %v664
        %3393 = vmatpush.msra.mxu0 %v656
        %3394 = vmatpush.msra.mxu0 %v648
        %3395 = vmatpush.msra.mxu0 %v640
        %3396 = vmatpush.msra.mxu0 %v632
        %3397 = vmatpush.msra.mxu0 %v624
        %3398 = vmatpush.msra.mxu0 %v616
        %3399 = vmatpush.msra.mxu0 %v608
        %3400 = vmatpush.msra.mxu0 %v600
        %3401 = vmatpush.msra.mxu0 %v592
        %3402 = vmatpush.msra.mxu0 %v584
        %3403 = vmatpush.msra.mxu0 %v576
        %3404 = vmatpush.msra.mxu0 %v568
        %3405 = vmatpush.msra.mxu0 %v560
        %3406 = vmatmul.f32.gmra.mxu0 %v2358
        %v3407 = vpop.f32.mrf.mxu0
        %v3408 = vadd.f32 %v3388, %v3407
        %3409 = vdwg.mxu0
        %3410 = vmatpush.msra.mxu0 %v808
        %3411 = vmatpush.msra.mxu0 %v800
        %3412 = vmatpush.msra.mxu0 %v792
        %3413 = vmatpush.msra.mxu0 %v784
        %3414 = vmatpush.msra.mxu0 %v776
        %3415 = vmatpush.msra.mxu0 %v768
        %3416 = vmatpush.msra.mxu0 %v760
        %3417 = vmatpush.msra.mxu0 %v752
        %3418 = vmatpush.msra.mxu0 %v744
        %3419 = vmatpush.msra.mxu0 %v736
        %3420 = vmatpush.msra.mxu0 %v728
        %3421 = vmatpush.msra.mxu0 %v720
        %3422 = vmatpush.msra.mxu0 %v712
        %3423 = vmatpush.msra.mxu0 %v704
        %3424 = vmatpush.msra.mxu0 %v696
        %3425 = vmatpush.msra.mxu0 %v688
        %3426 = vmatmul.f32.gmra.mxu0 %v2359
        %v3427 = vpop.f32.mrf.mxu0
        %v3428 = vadd.f32 %v3408, %v3427
        %3429 = vdwg.mxu0
        %3430 = vmatpush.msra.mxu0 %v936
        %3431 = vmatpush.msra.mxu0 %v928
        %3432 = vmatpush.msra.mxu0 %v920
        %3433 = vmatpush.msra.mxu0 %v912
        %3434 = vmatpush.msra.mxu0 %v904
        %3435 = vmatpush.msra.mxu0 %v896
        %3436 = vmatpush.msra.mxu0 %v888
        %3437 = vmatpush.msra.mxu0 %v880
        %3438 = vmatpush.msra.mxu0 %v872
        %3439 = vmatpush.msra.mxu0 %v864
        %3440 = vmatpush.msra.mxu0 %v856
        %3441 = vmatpush.msra.mxu0 %v848
        %3442 = vmatpush.msra.mxu0 %v840
        %3443 = vmatpush.msra.mxu0 %v832
        %3444 = vmatpush.msra.mxu0 %v824
        %3445 = vmatpush.msra.mxu0 %v816
        %3446 = vmatmul.f32.gmra.mxu0 %v2360
        %v3447 = vpop.f32.mrf.mxu0
        %v3448 = vadd.f32 %v3428, %v3447
        %3449 = vdwg.mxu0
        %3450 = vmatpush.msra.mxu0 %v1064
        %3451 = vmatpush.msra.mxu0 %v1056
        %3452 = vmatpush.msra.mxu0 %v1048
        %3453 = vmatpush.msra.mxu0 %v1040
        %3454 = vmatpush.msra.mxu0 %v1032
        %3455 = vmatpush.msra.mxu0 %v1024
        %3456 = vmatpush.msra.mxu0 %v1016
        %3457 = vmatpush.msra.mxu0 %v1008
        %3458 = vmatpush.msra.mxu0 %v1000
        %3459 = vmatpush.msra.mxu0 %v992
        %3460 = vmatpush.msra.mxu0 %v984
        %3461 = vmatpush.msra.mxu0 %v976
        %3462 = vmatpush.msra.mxu0 %v968
        %3463 = vmatpush.msra.mxu0 %v960
        %3464 = vmatpush.msra.mxu0 %v952
        %3465 = vmatpush.msra.mxu0 %v944
        %3466 = vmatmul.f32.gmra.mxu0 %v2361
        %v3467 = vpop.f32.mrf.mxu0
        %v3468 = vadd.f32 %v3448, %v3467
        %3469 = vdwg.mxu0
        %3470 = vmatpush.msra.mxu0 %v1192
        %3471 = vmatpush.msra.mxu0 %v1184
        %3472 = vmatpush.msra.mxu0 %v1176
        %3473 = vmatpush.msra.mxu0 %v1168
        %3474 = vmatpush.msra.mxu0 %v1160
        %3475 = vmatpush.msra.mxu0 %v1152
        %3476 = vmatpush.msra.mxu0 %v1144
        %3477 = vmatpush.msra.mxu0 %v1136
        %3478 = vmatpush.msra.mxu0 %v1128
        %3479 = vmatpush.msra.mxu0 %v1120
        %3480 = vmatpush.msra.mxu0 %v1112
        %3481 = vmatpush.msra.mxu0 %v1104
        %3482 = vmatpush.msra.mxu0 %v1096
        %3483 = vmatpush.msra.mxu0 %v1088
        %3484 = vmatpush.msra.mxu0 %v1080
        %3485 = vmatpush.msra.mxu0 %v1072
        %3486 = vmatmul.f32.gmra.mxu0 %v2362
        %v3487 = vpop.f32.mrf.mxu0
        %v3488 = vadd.f32 %v3468, %v3487
        %3489 = vdwg.mxu0
        %3490 = vmatpush.msra.mxu0 %v1320
        %3491 = vmatpush.msra.mxu0 %v1312
        %3492 = vmatpush.msra.mxu0 %v1304
        %3493 = vmatpush.msra.mxu0 %v1296
        %3494 = vmatpush.msra.mxu0 %v1288
        %3495 = vmatpush.msra.mxu0 %v1280
        %3496 = vmatpush.msra.mxu0 %v1272
        %3497 = vmatpush.msra.mxu0 %v1264
        %3498 = vmatpush.msra.mxu0 %v1256
        %3499 = vmatpush.msra.mxu0 %v1248
        %3500 = vmatpush.msra.mxu0 %v1240
        %3501 = vmatpush.msra.mxu0 %v1232
        %3502 = vmatpush.msra.mxu0 %v1224
        %3503 = vmatpush.msra.mxu0 %v1216
        %3504 = vmatpush.msra.mxu0 %v1208
        %3505 = vmatpush.msra.mxu0 %v1200
        %3506 = vmatmul.f32.gmra.mxu0 %v2363
        %v3507 = vpop.f32.mrf.mxu0
        %v3508 = vadd.f32 %v3488, %v3507
        %3509 = vdwg.mxu0
        %3510 = vmatpush.msra.mxu0 %v1448
        %3511 = vmatpush.msra.mxu0 %v1440
        %3512 = vmatpush.msra.mxu0 %v1432
        %3513 = vmatpush.msra.mxu0 %v1424
        %3514 = vmatpush.msra.mxu0 %v1416
        %3515 = vmatpush.msra.mxu0 %v1408
        %3516 = vmatpush.msra.mxu0 %v1400
        %3517 = vmatpush.msra.mxu0 %v1392
        %3518 = vmatpush.msra.mxu0 %v1384
        %3519 = vmatpush.msra.mxu0 %v1376
        %3520 = vmatpush.msra.mxu0 %v1368
        %3521 = vmatpush.msra.mxu0 %v1360
        %3522 = vmatpush.msra.mxu0 %v1352
        %3523 = vmatpush.msra.mxu0 %v1344
        %3524 = vmatpush.msra.mxu0 %v1336
        %3525 = vmatpush.msra.mxu0 %v1328
        %3526 = vmatmul.f32.gmra.mxu0 %v2366
        %v3527 = vpop.f32.mrf.mxu0
        %v3528 = vadd.f32 %v3508, %v3527
        %3529 = vdwg.mxu0
        %3530 = vmatpush.msra.mxu0 %v1576
        %3531 = vmatpush.msra.mxu0 %v1568
        %3532 = vmatpush.msra.mxu0 %v1560
        %3533 = vmatpush.msra.mxu0 %v1552
        %3534 = vmatpush.msra.mxu0 %v1544
        %3535 = vmatpush.msra.mxu0 %v1536
        %3536 = vmatpush.msra.mxu0 %v1528
        %3537 = vmatpush.msra.mxu0 %v1520
        %3538 = vmatpush.msra.mxu0 %v1512
        %3539 = vmatpush.msra.mxu0 %v1504
        %3540 = vmatpush.msra.mxu0 %v1496
        %3541 = vmatpush.msra.mxu0 %v1488
        %3542 = vmatpush.msra.mxu0 %v1480
        %3543 = vmatpush.msra.mxu0 %v1472
        %3544 = vmatpush.msra.mxu0 %v1464
        %3545 = vmatpush.msra.mxu0 %v1456
        %3546 = vmatmul.f32.gmra.mxu0 %v2367
        %v3547 = vpop.f32.mrf.mxu0
        %v3548 = vadd.f32 %v3528, %v3547
        %3549 = vdwg.mxu0
        %3550 = vmatpush.msra.mxu0 %v1704
        %3551 = vmatpush.msra.mxu0 %v1696
        %3552 = vmatpush.msra.mxu0 %v1688
        %3553 = vmatpush.msra.mxu0 %v1680
        %3554 = vmatpush.msra.mxu0 %v1672
        %3555 = vmatpush.msra.mxu0 %v1664
        %3556 = vmatpush.msra.mxu0 %v1656
        %3557 = vmatpush.msra.mxu0 %v1648
        %3558 = vmatpush.msra.mxu0 %v1640
        %3559 = vmatpush.msra.mxu0 %v1632
        %3560 = vmatpush.msra.mxu0 %v1624
        %3561 = vmatpush.msra.mxu0 %v1616
        %3562 = vmatpush.msra.mxu0 %v1608
        %3563 = vmatpush.msra.mxu0 %v1600
        %3564 = vmatpush.msra.mxu0 %v1592
        %3565 = vmatpush.msra.mxu0 %v1584
        %3566 = vmatmul.f32.gmra.mxu0 %v2368
        %v3567 = vpop.f32.mrf.mxu0
        %v3568 = vadd.f32 %v3548, %v3567
        %3569 = vdwg.mxu0
        %3570 = vmatpush.msra.mxu0 %v1832
        %3571 = vmatpush.msra.mxu0 %v1824
        %3572 = vmatpush.msra.mxu0 %v1816
        %3573 = vmatpush.msra.mxu0 %v1808
        %3574 = vmatpush.msra.mxu0 %v1800
        %3575 = vmatpush.msra.mxu0 %v1792
        %3576 = vmatpush.msra.mxu0 %v1784
        %3577 = vmatpush.msra.mxu0 %v1776
        %3578 = vmatpush.msra.mxu0 %v1768
        %3579 = vmatpush.msra.mxu0 %v1760
        %3580 = vmatpush.msra.mxu0 %v1752
        %3581 = vmatpush.msra.mxu0 %v1744
        %3582 = vmatpush.msra.mxu0 %v1736
        %3583 = vmatpush.msra.mxu0 %v1728
        %3584 = vmatpush.msra.mxu0 %v1720
        %3585 = vmatpush.msra.mxu0 %v1712
        %3586 = vmatmul.f32.gmra.mxu0 %v2369
        %v3587 = vpop.f32.mrf.mxu0
        %v3588 = vadd.f32 %v3568, %v3587
        %3589 = vdwg.mxu0
        %3590 = vmatpush.msra.mxu0 %v1960
        %3591 = vmatpush.msra.mxu0 %v1952
        %3592 = vmatpush.msra.mxu0 %v1944
        %3593 = vmatpush.msra.mxu0 %v1936
        %3594 = vmatpush.msra.mxu0 %v1928
        %3595 = vmatpush.msra.mxu0 %v1920
        %3596 = vmatpush.msra.mxu0 %v1912
        %3597 = vmatpush.msra.mxu0 %v1904
        %3598 = vmatpush.msra.mxu0 %v1896
        %3599 = vmatpush.msra.mxu0 %v1888
        %3600 = vmatpush.msra.mxu0 %v1880
        %3601 = vmatpush.msra.mxu0 %v1872
        %3602 = vmatpush.msra.mxu0 %v1864
        %3603 = vmatpush.msra.mxu0 %v1856
        %3604 = vmatpush.msra.mxu0 %v1848
        %3605 = vmatpush.msra.mxu0 %v1840
        %3606 = vmatmul.f32.gmra.mxu0 %v2370
        %v3607 = vpop.f32.mrf.mxu0
        %v3608 = vadd.f32 %v3588, %v3607
        %3609 = vdwg.mxu0
        %3610 = vmatpush.msra.mxu0 %v2088
        %3611 = vmatpush.msra.mxu0 %v2080
        %3612 = vmatpush.msra.mxu0 %v2072
        %3613 = vmatpush.msra.mxu0 %v2064
        %3614 = vmatpush.msra.mxu0 %v2056
        %3615 = vmatpush.msra.mxu0 %v2048
        %3616 = vmatpush.msra.mxu0 %v2040
        %3617 = vmatpush.msra.mxu0 %v2032
        %3618 = vmatpush.msra.mxu0 %v2024
        %3619 = vmatpush.msra.mxu0 %v2016
        %3620 = vmatpush.msra.mxu0 %v2008
        %3621 = vmatpush.msra.mxu0 %v2000
        %3622 = vmatpush.msra.mxu0 %v1992
        %3623 = vmatpush.msra.mxu0 %v1984
        %3624 = vmatpush.msra.mxu0 %v1976
        %3625 = vmatpush.msra.mxu0 %v1968
        %3626 = vmatmul.f32.gmra.mxu0 %v2371
        %v3627 = vpop.f32.mrf.mxu0
        %v3628 = vadd.f32 %v3608, %v3627
        %3629 = vdwg.mxu0
        %3630 = vmatpush.msra.mxu0 %v2216
        %3631 = vmatpush.msra.mxu0 %v2208
        %3632 = vmatpush.msra.mxu0 %v2200
        %3633 = vmatpush.msra.mxu0 %v2192
        %3634 = vmatpush.msra.mxu0 %v2184
        %3635 = vmatpush.msra.mxu0 %v2176
        %3636 = vmatpush.msra.mxu0 %v2168
        %3637 = vmatpush.msra.mxu0 %v2160
        %3638 = vmatpush.msra.mxu0 %v2152
        %3639 = vmatpush.msra.mxu0 %v2144
        %3640 = vmatpush.msra.mxu0 %v2136
        %3641 = vmatpush.msra.mxu0 %v2128
        %3642 = vmatpush.msra.mxu0 %v2120
        %3643 = vmatpush.msra.mxu0 %v2112
        %3644 = vmatpush.msra.mxu0 %v2104
        %3645 = vmatpush.msra.mxu0 %v2096
        %3646 = vmatmul.f32.gmra.mxu0 %v2372
        %v3647 = vpop.f32.mrf.mxu0
        %v3648 = vadd.f32 %v3628, %v3647
        %3649 = vdwg.mxu0
        %3650 = vmatpush.msra.mxu0 %v2344
        %3651 = vmatpush.msra.mxu0 %v2336
        %3652 = vmatpush.msra.mxu0 %v2328
        %3653 = vmatpush.msra.mxu0 %v2320
        %3654 = vmatpush.msra.mxu0 %v2312
        %3655 = vmatpush.msra.mxu0 %v2304
        %3656 = vmatpush.msra.mxu0 %v2296
        %3657 = vmatpush.msra.mxu0 %v2288
        %3658 = vmatpush.msra.mxu0 %v2280
        %3659 = vmatpush.msra.mxu0 %v2272
        %3660 = vmatpush.msra.mxu0 %v2264
        %3661 = vmatpush.msra.mxu0 %v2256
        %3662 = vmatpush.msra.mxu0 %v2248
        %3663 = vmatpush.msra.mxu0 %v2240
        %3664 = vmatpush.msra.mxu0 %v2232
        %3665 = vmatpush.msra.mxu0 %v2224
        %3666 = vmatmul.f32.gmra.mxu0 %v2373
        %v3667 = vpop.f32.mrf.mxu0
        %v3668 = vadd.f32 %v3648, %v3667
        %3669 = vdwg.mxu0
        %3670 = vmatpush.msra.mxu0 %v425
        %3671 = vmatpush.msra.mxu0 %v417
        %3672 = vmatpush.msra.mxu0 %v409
        %3673 = vmatpush.msra.mxu0 %v401
        %3674 = vmatpush.msra.mxu0 %v393
        %3675 = vmatpush.msra.mxu0 %v385
        %3676 = vmatpush.msra.mxu0 %v377
        %3677 = vmatpush.msra.mxu0 %v369
        %3678 = vmatpush.msra.mxu0 %v361
        %3679 = vmatpush.msra.mxu0 %v353
        %3680 = vmatpush.msra.mxu0 %v345
        %3681 = vmatpush.msra.mxu0 %v337
        %3682 = vmatpush.msra.mxu0 %v329
        %3683 = vmatpush.msra.mxu0 %v321
        %3684 = vmatpush.msra.mxu0 %v313
        %3685 = vmatpush.msra.mxu0 %v305
        %3686 = vmatmul.f32.gmra.mxu0 %v2356
        %v3687 = vpop.f32.mrf.mxu0
        %v3688 = vadd.f32 0.0, %v3687
        %3689 = vdwg.mxu0
        %3690 = vmatpush.msra.mxu0 %v553
        %3691 = vmatpush.msra.mxu0 %v545
        %3692 = vmatpush.msra.mxu0 %v537
        %3693 = vmatpush.msra.mxu0 %v529
        %3694 = vmatpush.msra.mxu0 %v521
        %3695 = vmatpush.msra.mxu0 %v513
        %3696 = vmatpush.msra.mxu0 %v505
        %3697 = vmatpush.msra.mxu0 %v497
        %3698 = vmatpush.msra.mxu0 %v489
        %3699 = vmatpush.msra.mxu0 %v481
        %3700 = vmatpush.msra.mxu0 %v473
        %3701 = vmatpush.msra.mxu0 %v465
        %3702 = vmatpush.msra.mxu0 %v457
        %3703 = vmatpush.msra.mxu0 %v449
        %3704 = vmatpush.msra.mxu0 %v441
        %3705 = vmatpush.msra.mxu0 %v433
        %3706 = vmatmul.f32.gmra.mxu0 %v2357
        %v3707 = vpop.f32.mrf.mxu0
        %v3708 = vadd.f32 %v3688, %v3707
        %3709 = vdwg.mxu0
        %3710 = vmatpush.msra.mxu0 %v681
        %3711 = vmatpush.msra.mxu0 %v673
        %3712 = vmatpush.msra.mxu0 %v665
        %3713 = vmatpush.msra.mxu0 %v657
        %3714 = vmatpush.msra.mxu0 %v649
        %3715 = vmatpush.msra.mxu0 %v641
        %3716 = vmatpush.msra.mxu0 %v633
        %3717 = vmatpush.msra.mxu0 %v625
        %3718 = vmatpush.msra.mxu0 %v617
        %3719 = vmatpush.msra.mxu0 %v609
        %3720 = vmatpush.msra.mxu0 %v601
        %3721 = vmatpush.msra.mxu0 %v593
        %3722 = vmatpush.msra.mxu0 %v585
        %3723 = vmatpush.msra.mxu0 %v577
        %3724 = vmatpush.msra.mxu0 %v569
        %3725 = vmatpush.msra.mxu0 %v561
        %3726 = vmatmul.f32.gmra.mxu0 %v2358
        %v3727 = vpop.f32.mrf.mxu0
        %v3728 = vadd.f32 %v3708, %v3727
        %3729 = vdwg.mxu0
        %3730 = vmatpush.msra.mxu0 %v809
        %3731 = vmatpush.msra.mxu0 %v801
        %3732 = vmatpush.msra.mxu0 %v793
        %3733 = vmatpush.msra.mxu0 %v785
        %3734 = vmatpush.msra.mxu0 %v777
        %3735 = vmatpush.msra.mxu0 %v769
        %3736 = vmatpush.msra.mxu0 %v761
        %3737 = vmatpush.msra.mxu0 %v753
        %3738 = vmatpush.msra.mxu0 %v745
        %3739 = vmatpush.msra.mxu0 %v737
        %3740 = vmatpush.msra.mxu0 %v729
        %3741 = vmatpush.msra.mxu0 %v721
        %3742 = vmatpush.msra.mxu0 %v713
        %3743 = vmatpush.msra.mxu0 %v705
        %3744 = vmatpush.msra.mxu0 %v697
        %3745 = vmatpush.msra.mxu0 %v689
        %3746 = vmatmul.f32.gmra.mxu0 %v2359
        %v3747 = vpop.f32.mrf.mxu0
        %v3748 = vadd.f32 %v3728, %v3747
        %3749 = vdwg.mxu0
        %3750 = vmatpush.msra.mxu0 %v937
        %3751 = vmatpush.msra.mxu0 %v929
        %3752 = vmatpush.msra.mxu0 %v921
        %3753 = vmatpush.msra.mxu0 %v913
        %3754 = vmatpush.msra.mxu0 %v905
        %3755 = vmatpush.msra.mxu0 %v897
        %3756 = vmatpush.msra.mxu0 %v889
        %3757 = vmatpush.msra.mxu0 %v881
        %3758 = vmatpush.msra.mxu0 %v873
        %3759 = vmatpush.msra.mxu0 %v865
        %3760 = vmatpush.msra.mxu0 %v857
        %3761 = vmatpush.msra.mxu0 %v849
        %3762 = vmatpush.msra.mxu0 %v841
        %3763 = vmatpush.msra.mxu0 %v833
        %3764 = vmatpush.msra.mxu0 %v825
        %3765 = vmatpush.msra.mxu0 %v817
        %3766 = vmatmul.f32.gmra.mxu0 %v2360
        %v3767 = vpop.f32.mrf.mxu0
        %v3768 = vadd.f32 %v3748, %v3767
        %3769 = vdwg.mxu0
        %3770 = vmatpush.msra.mxu0 %v1065
        %3771 = vmatpush.msra.mxu0 %v1057
        %3772 = vmatpush.msra.mxu0 %v1049
        %3773 = vmatpush.msra.mxu0 %v1041
        %3774 = vmatpush.msra.mxu0 %v1033
        %3775 = vmatpush.msra.mxu0 %v1025
        %3776 = vmatpush.msra.mxu0 %v1017
        %3777 = vmatpush.msra.mxu0 %v1009
        %3778 = vmatpush.msra.mxu0 %v1001
        %3779 = vmatpush.msra.mxu0 %v993
        %3780 = vmatpush.msra.mxu0 %v985
        %3781 = vmatpush.msra.mxu0 %v977
        %3782 = vmatpush.msra.mxu0 %v969
        %3783 = vmatpush.msra.mxu0 %v961
        %3784 = vmatpush.msra.mxu0 %v953
        %3785 = vmatpush.msra.mxu0 %v945
        %3786 = vmatmul.f32.gmra.mxu0 %v2361
        %v3787 = vpop.f32.mrf.mxu0
        %v3788 = vadd.f32 %v3768, %v3787
        %3789 = vdwg.mxu0
        %3790 = vmatpush.msra.mxu0 %v1193
        %3791 = vmatpush.msra.mxu0 %v1185
        %3792 = vmatpush.msra.mxu0 %v1177
        %3793 = vmatpush.msra.mxu0 %v1169
        %3794 = vmatpush.msra.mxu0 %v1161
        %3795 = vmatpush.msra.mxu0 %v1153
        %3796 = vmatpush.msra.mxu0 %v1145
        %3797 = vmatpush.msra.mxu0 %v1137
        %3798 = vmatpush.msra.mxu0 %v1129
        %3799 = vmatpush.msra.mxu0 %v1121
        %3800 = vmatpush.msra.mxu0 %v1113
        %3801 = vmatpush.msra.mxu0 %v1105
        %3802 = vmatpush.msra.mxu0 %v1097
        %3803 = vmatpush.msra.mxu0 %v1089
        %3804 = vmatpush.msra.mxu0 %v1081
        %3805 = vmatpush.msra.mxu0 %v1073
        %3806 = vmatmul.f32.gmra.mxu0 %v2362
        %v3807 = vpop.f32.mrf.mxu0
        %v3808 = vadd.f32 %v3788, %v3807
        %3809 = vdwg.mxu0
        %3810 = vmatpush.msra.mxu0 %v1321
        %3811 = vmatpush.msra.mxu0 %v1313
        %3812 = vmatpush.msra.mxu0 %v1305
        %3813 = vmatpush.msra.mxu0 %v1297
        %3814 = vmatpush.msra.mxu0 %v1289
        %3815 = vmatpush.msra.mxu0 %v1281
        %3816 = vmatpush.msra.mxu0 %v1273
        %3817 = vmatpush.msra.mxu0 %v1265
        %3818 = vmatpush.msra.mxu0 %v1257
        %3819 = vmatpush.msra.mxu0 %v1249
        %3820 = vmatpush.msra.mxu0 %v1241
        %3821 = vmatpush.msra.mxu0 %v1233
        %3822 = vmatpush.msra.mxu0 %v1225
        %3823 = vmatpush.msra.mxu0 %v1217
        %3824 = vmatpush.msra.mxu0 %v1209
        %3825 = vmatpush.msra.mxu0 %v1201
        %3826 = vmatmul.f32.gmra.mxu0 %v2363
        %v3827 = vpop.f32.mrf.mxu0
        %v3828 = vadd.f32 %v3808, %v3827
        %3829 = vdwg.mxu0
        %3830 = vmatpush.msra.mxu0 %v1449
        %3831 = vmatpush.msra.mxu0 %v1441
        %3832 = vmatpush.msra.mxu0 %v1433
        %3833 = vmatpush.msra.mxu0 %v1425
        %3834 = vmatpush.msra.mxu0 %v1417
        %3835 = vmatpush.msra.mxu0 %v1409
        %3836 = vmatpush.msra.mxu0 %v1401
        %3837 = vmatpush.msra.mxu0 %v1393
        %3838 = vmatpush.msra.mxu0 %v1385
        %3839 = vmatpush.msra.mxu0 %v1377
        %3840 = vmatpush.msra.mxu0 %v1369
        %3841 = vmatpush.msra.mxu0 %v1361
        %3842 = vmatpush.msra.mxu0 %v1353
        %3843 = vmatpush.msra.mxu0 %v1345
        %3844 = vmatpush.msra.mxu0 %v1337
        %3845 = vmatpush.msra.mxu0 %v1329
        %3846 = vmatmul.f32.gmra.mxu0 %v2366
        %v3847 = vpop.f32.mrf.mxu0
        %v3848 = vadd.f32 %v3828, %v3847
        %3849 = vdwg.mxu0
        %3850 = vmatpush.msra.mxu0 %v1577
        %3851 = vmatpush.msra.mxu0 %v1569
        %3852 = vmatpush.msra.mxu0 %v1561
        %3853 = vmatpush.msra.mxu0 %v1553
        %3854 = vmatpush.msra.mxu0 %v1545
        %3855 = vmatpush.msra.mxu0 %v1537
        %3856 = vmatpush.msra.mxu0 %v1529
        %3857 = vmatpush.msra.mxu0 %v1521
        %3858 = vmatpush.msra.mxu0 %v1513
        %3859 = vmatpush.msra.mxu0 %v1505
        %3860 = vmatpush.msra.mxu0 %v1497
        %3861 = vmatpush.msra.mxu0 %v1489
        %3862 = vmatpush.msra.mxu0 %v1481
        %3863 = vmatpush.msra.mxu0 %v1473
        %3864 = vmatpush.msra.mxu0 %v1465
        %3865 = vmatpush.msra.mxu0 %v1457
        %3866 = vmatmul.f32.gmra.mxu0 %v2367
        %v3867 = vpop.f32.mrf.mxu0
        %v3868 = vadd.f32 %v3848, %v3867
        %3869 = vdwg.mxu0
        %3870 = vmatpush.msra.mxu0 %v1705
        %3871 = vmatpush.msra.mxu0 %v1697
        %3872 = vmatpush.msra.mxu0 %v1689
        %3873 = vmatpush.msra.mxu0 %v1681
        %3874 = vmatpush.msra.mxu0 %v1673
        %3875 = vmatpush.msra.mxu0 %v1665
        %3876 = vmatpush.msra.mxu0 %v1657
        %3877 = vmatpush.msra.mxu0 %v1649
        %3878 = vmatpush.msra.mxu0 %v1641
        %3879 = vmatpush.msra.mxu0 %v1633
        %3880 = vmatpush.msra.mxu0 %v1625
        %3881 = vmatpush.msra.mxu0 %v1617
        %3882 = vmatpush.msra.mxu0 %v1609
        %3883 = vmatpush.msra.mxu0 %v1601
        %3884 = vmatpush.msra.mxu0 %v1593
        %3885 = vmatpush.msra.mxu0 %v1585
        %3886 = vmatmul.f32.gmra.mxu0 %v2368
        %v3887 = vpop.f32.mrf.mxu0
        %v3888 = vadd.f32 %v3868, %v3887
        %3889 = vdwg.mxu0
        %3890 = vmatpush.msra.mxu0 %v1833
        %3891 = vmatpush.msra.mxu0 %v1825
        %3892 = vmatpush.msra.mxu0 %v1817
        %3893 = vmatpush.msra.mxu0 %v1809
        %3894 = vmatpush.msra.mxu0 %v1801
        %3895 = vmatpush.msra.mxu0 %v1793
        %3896 = vmatpush.msra.mxu0 %v1785
        %3897 = vmatpush.msra.mxu0 %v1777
        %3898 = vmatpush.msra.mxu0 %v1769
        %3899 = vmatpush.msra.mxu0 %v1761
        %3900 = vmatpush.msra.mxu0 %v1753
        %3901 = vmatpush.msra.mxu0 %v1745
        %3902 = vmatpush.msra.mxu0 %v1737
        %3903 = vmatpush.msra.mxu0 %v1729
        %3904 = vmatpush.msra.mxu0 %v1721
        %3905 = vmatpush.msra.mxu0 %v1713
        %3906 = vmatmul.f32.gmra.mxu0 %v2369
        %v3907 = vpop.f32.mrf.mxu0
        %v3908 = vadd.f32 %v3888, %v3907
        %3909 = vdwg.mxu0
        %3910 = vmatpush.msra.mxu0 %v1961
        %3911 = vmatpush.msra.mxu0 %v1953
        %3912 = vmatpush.msra.mxu0 %v1945
        %3913 = vmatpush.msra.mxu0 %v1937
        %3914 = vmatpush.msra.mxu0 %v1929
        %3915 = vmatpush.msra.mxu0 %v1921
        %3916 = vmatpush.msra.mxu0 %v1913
        %3917 = vmatpush.msra.mxu0 %v1905
        %3918 = vmatpush.msra.mxu0 %v1897
        %3919 = vmatpush.msra.mxu0 %v1889
        %3920 = vmatpush.msra.mxu0 %v1881
        %3921 = vmatpush.msra.mxu0 %v1873
        %3922 = vmatpush.msra.mxu0 %v1865
        %3923 = vmatpush.msra.mxu0 %v1857
        %3924 = vmatpush.msra.mxu0 %v1849
        %3925 = vmatpush.msra.mxu0 %v1841
        %3926 = vmatmul.f32.gmra.mxu0 %v2370
        %v3927 = vpop.f32.mrf.mxu0
        %v3928 = vadd.f32 %v3908, %v3927
        %3929 = vdwg.mxu0
        %3930 = vmatpush.msra.mxu0 %v2089
        %3931 = vmatpush.msra.mxu0 %v2081
        %3932 = vmatpush.msra.mxu0 %v2073
        %3933 = vmatpush.msra.mxu0 %v2065
        %3934 = vmatpush.msra.mxu0 %v2057
        %3935 = vmatpush.msra.mxu0 %v2049
        %3936 = vmatpush.msra.mxu0 %v2041
        %3937 = vmatpush.msra.mxu0 %v2033
        %3938 = vmatpush.msra.mxu0 %v2025
        %3939 = vmatpush.msra.mxu0 %v2017
        %3940 = vmatpush.msra.mxu0 %v2009
        %3941 = vmatpush.msra.mxu0 %v2001
        %3942 = vmatpush.msra.mxu0 %v1993
        %3943 = vmatpush.msra.mxu0 %v1985
        %3944 = vmatpush.msra.mxu0 %v1977
        %3945 = vmatpush.msra.mxu0 %v1969
        %3946 = vmatmul.f32.gmra.mxu0 %v2371
        %v3947 = vpop.f32.mrf.mxu0
        %v3948 = vadd.f32 %v3928, %v3947
        %3949 = vdwg.mxu0
        %3950 = vmatpush.msra.mxu0 %v2217
        %3951 = vmatpush.msra.mxu0 %v2209
        %3952 = vmatpush.msra.mxu0 %v2201
        %3953 = vmatpush.msra.mxu0 %v2193
        %3954 = vmatpush.msra.mxu0 %v2185
        %3955 = vmatpush.msra.mxu0 %v2177
        %3956 = vmatpush.msra.mxu0 %v2169
        %3957 = vmatpush.msra.mxu0 %v2161
        %3958 = vmatpush.msra.mxu0 %v2153
        %3959 = vmatpush.msra.mxu0 %v2145
        %3960 = vmatpush.msra.mxu0 %v2137
        %3961 = vmatpush.msra.mxu0 %v2129
        %3962 = vmatpush.msra.mxu0 %v2121
        %3963 = vmatpush.msra.mxu0 %v2113
        %3964 = vmatpush.msra.mxu0 %v2105
        %3965 = vmatpush.msra.mxu0 %v2097
        %3966 = vmatmul.f32.gmra.mxu0 %v2372
        %v3967 = vpop.f32.mrf.mxu0
        %v3968 = vadd.f32 %v3948, %v3967
        %3969 = vdwg.mxu0
        %3970 = vmatpush.msra.mxu0 %v2345
        %3971 = vmatpush.msra.mxu0 %v2337
        %3972 = vmatpush.msra.mxu0 %v2329
        %3973 = vmatpush.msra.mxu0 %v2321
        %3974 = vmatpush.msra.mxu0 %v2313
        %3975 = vmatpush.msra.mxu0 %v2305
        %3976 = vmatpush.msra.mxu0 %v2297
        %3977 = vmatpush.msra.mxu0 %v2289
        %3978 = vmatpush.msra.mxu0 %v2281
        %3979 = vmatpush.msra.mxu0 %v2273
        %3980 = vmatpush.msra.mxu0 %v2265
        %3981 = vmatpush.msra.mxu0 %v2257
        %3982 = vmatpush.msra.mxu0 %v2249
        %3983 = vmatpush.msra.mxu0 %v2241
        %3984 = vmatpush.msra.mxu0 %v2233
        %3985 = vmatpush.msra.mxu0 %v2225
        %3986 = vmatmul.f32.gmra.mxu0 %v2373
        %v3987 = vpop.f32.mrf.mxu0
        %v3988 = vadd.f32 %v3968, %v3987
        %3989 = vdwg.mxu0
        %3990 = vmatpush.msra.mxu0 %v426
        %3991 = vmatpush.msra.mxu0 %v418
        %3992 = vmatpush.msra.mxu0 %v410
        %3993 = vmatpush.msra.mxu0 %v402
        %3994 = vmatpush.msra.mxu0 %v394
        %3995 = vmatpush.msra.mxu0 %v386
        %3996 = vmatpush.msra.mxu0 %v378
        %3997 = vmatpush.msra.mxu0 %v370
        %3998 = vmatpush.msra.mxu0 %v362
        %3999 = vmatpush.msra.mxu0 %v354
        %4000 = vmatpush.msra.mxu0 %v346
        %4001 = vmatpush.msra.mxu0 %v338
        %4002 = vmatpush.msra.mxu0 %v330
        %4003 = vmatpush.msra.mxu0 %v322
        %4004 = vmatpush.msra.mxu0 %v314
        %4005 = vmatpush.msra.mxu0 %v306
        %4006 = vmatmul.f32.gmra.mxu0 %v2356
        %v4007 = vpop.f32.mrf.mxu0
        %v4008 = vadd.f32 0.0, %v4007
        %4009 = vdwg.mxu0
        %4010 = vmatpush.msra.mxu0 %v554
        %4011 = vmatpush.msra.mxu0 %v546
        %4012 = vmatpush.msra.mxu0 %v538
        %4013 = vmatpush.msra.mxu0 %v530
        %4014 = vmatpush.msra.mxu0 %v522
        %4015 = vmatpush.msra.mxu0 %v514
        %4016 = vmatpush.msra.mxu0 %v506
        %4017 = vmatpush.msra.mxu0 %v498
        %4018 = vmatpush.msra.mxu0 %v490
        %4019 = vmatpush.msra.mxu0 %v482
        %4020 = vmatpush.msra.mxu0 %v474
        %4021 = vmatpush.msra.mxu0 %v466
        %4022 = vmatpush.msra.mxu0 %v458
        %4023 = vmatpush.msra.mxu0 %v450
        %4024 = vmatpush.msra.mxu0 %v442
        %4025 = vmatpush.msra.mxu0 %v434
        %4026 = vmatmul.f32.gmra.mxu0 %v2357
        %v4027 = vpop.f32.mrf.mxu0
        %v4028 = vadd.f32 %v4008, %v4027
        %4029 = vdwg.mxu0
        %4030 = vmatpush.msra.mxu0 %v682
        %4031 = vmatpush.msra.mxu0 %v674
        %4032 = vmatpush.msra.mxu0 %v666
        %4033 = vmatpush.msra.mxu0 %v658
        %4034 = vmatpush.msra.mxu0 %v650
        %4035 = vmatpush.msra.mxu0 %v642
        %4036 = vmatpush.msra.mxu0 %v634
        %4037 = vmatpush.msra.mxu0 %v626
        %4038 = vmatpush.msra.mxu0 %v618
        %4039 = vmatpush.msra.mxu0 %v610
        %4040 = vmatpush.msra.mxu0 %v602
        %4041 = vmatpush.msra.mxu0 %v594
        %4042 = vmatpush.msra.mxu0 %v586
        %4043 = vmatpush.msra.mxu0 %v578
        %4044 = vmatpush.msra.mxu0 %v570
        %4045 = vmatpush.msra.mxu0 %v562
        %4046 = vmatmul.f32.gmra.mxu0 %v2358
        %v4047 = vpop.f32.mrf.mxu0
        %v4048 = vadd.f32 %v4028, %v4047
        %4049 = vdwg.mxu0
        %4050 = vmatpush.msra.mxu0 %v810
        %4051 = vmatpush.msra.mxu0 %v802
        %4052 = vmatpush.msra.mxu0 %v794
        %4053 = vmatpush.msra.mxu0 %v786
        %4054 = vmatpush.msra.mxu0 %v778
        %4055 = vmatpush.msra.mxu0 %v770
        %4056 = vmatpush.msra.mxu0 %v762
        %4057 = vmatpush.msra.mxu0 %v754
        %4058 = vmatpush.msra.mxu0 %v746
        %4059 = vmatpush.msra.mxu0 %v738
        %4060 = vmatpush.msra.mxu0 %v730
        %4061 = vmatpush.msra.mxu0 %v722
        %4062 = vmatpush.msra.mxu0 %v714
        %4063 = vmatpush.msra.mxu0 %v706
        %4064 = vmatpush.msra.mxu0 %v698
        %4065 = vmatpush.msra.mxu0 %v690
        %4066 = vmatmul.f32.gmra.mxu0 %v2359
        %v4067 = vpop.f32.mrf.mxu0
        %v4068 = vadd.f32 %v4048, %v4067
        %4069 = vdwg.mxu0
        %4070 = vmatpush.msra.mxu0 %v938
        %4071 = vmatpush.msra.mxu0 %v930
        %4072 = vmatpush.msra.mxu0 %v922
        %4073 = vmatpush.msra.mxu0 %v914
        %4074 = vmatpush.msra.mxu0 %v906
        %4075 = vmatpush.msra.mxu0 %v898
        %4076 = vmatpush.msra.mxu0 %v890
        %4077 = vmatpush.msra.mxu0 %v882
        %4078 = vmatpush.msra.mxu0 %v874
        %4079 = vmatpush.msra.mxu0 %v866
        %4080 = vmatpush.msra.mxu0 %v858
        %4081 = vmatpush.msra.mxu0 %v850
        %4082 = vmatpush.msra.mxu0 %v842
        %4083 = vmatpush.msra.mxu0 %v834
        %4084 = vmatpush.msra.mxu0 %v826
        %4085 = vmatpush.msra.mxu0 %v818
        %4086 = vmatmul.f32.gmra.mxu0 %v2360
        %v4087 = vpop.f32.mrf.mxu0
        %v4088 = vadd.f32 %v4068, %v4087
        %4089 = vdwg.mxu0
        %4090 = vmatpush.msra.mxu0 %v1066
        %4091 = vmatpush.msra.mxu0 %v1058
        %4092 = vmatpush.msra.mxu0 %v1050
        %4093 = vmatpush.msra.mxu0 %v1042
        %4094 = vmatpush.msra.mxu0 %v1034
        %4095 = vmatpush.msra.mxu0 %v1026
        %4096 = vmatpush.msra.mxu0 %v1018
        %4097 = vmatpush.msra.mxu0 %v1010
        %4098 = vmatpush.msra.mxu0 %v1002
        %4099 = vmatpush.msra.mxu0 %v994
        %4100 = vmatpush.msra.mxu0 %v986
        %4101 = vmatpush.msra.mxu0 %v978
        %4102 = vmatpush.msra.mxu0 %v970
        %4103 = vmatpush.msra.mxu0 %v962
        %4104 = vmatpush.msra.mxu0 %v954
        %4105 = vmatpush.msra.mxu0 %v946
        %4106 = vmatmul.f32.gmra.mxu0 %v2361
        %v4107 = vpop.f32.mrf.mxu0
        %v4108 = vadd.f32 %v4088, %v4107
        %4109 = vdwg.mxu0
        %4110 = vmatpush.msra.mxu0 %v1194
        %4111 = vmatpush.msra.mxu0 %v1186
        %4112 = vmatpush.msra.mxu0 %v1178
        %4113 = vmatpush.msra.mxu0 %v1170
        %4114 = vmatpush.msra.mxu0 %v1162
        %4115 = vmatpush.msra.mxu0 %v1154
        %4116 = vmatpush.msra.mxu0 %v1146
        %4117 = vmatpush.msra.mxu0 %v1138
        %4118 = vmatpush.msra.mxu0 %v1130
        %4119 = vmatpush.msra.mxu0 %v1122
        %4120 = vmatpush.msra.mxu0 %v1114
        %4121 = vmatpush.msra.mxu0 %v1106
        %4122 = vmatpush.msra.mxu0 %v1098
        %4123 = vmatpush.msra.mxu0 %v1090
        %4124 = vmatpush.msra.mxu0 %v1082
        %4125 = vmatpush.msra.mxu0 %v1074
        %4126 = vmatmul.f32.gmra.mxu0 %v2362
        %v4127 = vpop.f32.mrf.mxu0
        %v4128 = vadd.f32 %v4108, %v4127
        %4129 = vdwg.mxu0
        %4130 = vmatpush.msra.mxu0 %v1322
        %4131 = vmatpush.msra.mxu0 %v1314
        %4132 = vmatpush.msra.mxu0 %v1306
        %4133 = vmatpush.msra.mxu0 %v1298
        %4134 = vmatpush.msra.mxu0 %v1290
        %4135 = vmatpush.msra.mxu0 %v1282
        %4136 = vmatpush.msra.mxu0 %v1274
        %4137 = vmatpush.msra.mxu0 %v1266
        %4138 = vmatpush.msra.mxu0 %v1258
        %4139 = vmatpush.msra.mxu0 %v1250
        %4140 = vmatpush.msra.mxu0 %v1242
        %4141 = vmatpush.msra.mxu0 %v1234
        %4142 = vmatpush.msra.mxu0 %v1226
        %4143 = vmatpush.msra.mxu0 %v1218
        %4144 = vmatpush.msra.mxu0 %v1210
        %4145 = vmatpush.msra.mxu0 %v1202
        %4146 = vmatmul.f32.gmra.mxu0 %v2363
        %v4147 = vpop.f32.mrf.mxu0
        %v4148 = vadd.f32 %v4128, %v4147
        %4149 = vdwg.mxu0
        %4150 = vmatpush.msra.mxu0 %v1450
        %4151 = vmatpush.msra.mxu0 %v1442
        %4152 = vmatpush.msra.mxu0 %v1434
        %4153 = vmatpush.msra.mxu0 %v1426
        %4154 = vmatpush.msra.mxu0 %v1418
        %4155 = vmatpush.msra.mxu0 %v1410
        %4156 = vmatpush.msra.mxu0 %v1402
        %4157 = vmatpush.msra.mxu0 %v1394
        %4158 = vmatpush.msra.mxu0 %v1386
        %4159 = vmatpush.msra.mxu0 %v1378
        %4160 = vmatpush.msra.mxu0 %v1370
        %4161 = vmatpush.msra.mxu0 %v1362
        %4162 = vmatpush.msra.mxu0 %v1354
        %4163 = vmatpush.msra.mxu0 %v1346
        %4164 = vmatpush.msra.mxu0 %v1338
        %4165 = vmatpush.msra.mxu0 %v1330
        %4166 = vmatmul.f32.gmra.mxu0 %v2366
        %v4167 = vpop.f32.mrf.mxu0
        %v4168 = vadd.f32 %v4148, %v4167
        %4169 = vdwg.mxu0
        %4170 = vmatpush.msra.mxu0 %v1578
        %4171 = vmatpush.msra.mxu0 %v1570
        %4172 = vmatpush.msra.mxu0 %v1562
        %4173 = vmatpush.msra.mxu0 %v1554
        %4174 = vmatpush.msra.mxu0 %v1546
        %4175 = vmatpush.msra.mxu0 %v1538
        %4176 = vmatpush.msra.mxu0 %v1530
        %4177 = vmatpush.msra.mxu0 %v1522
        %4178 = vmatpush.msra.mxu0 %v1514
        %4179 = vmatpush.msra.mxu0 %v1506
        %4180 = vmatpush.msra.mxu0 %v1498
        %4181 = vmatpush.msra.mxu0 %v1490
        %4182 = vmatpush.msra.mxu0 %v1482
        %4183 = vmatpush.msra.mxu0 %v1474
        %4184 = vmatpush.msra.mxu0 %v1466
        %4185 = vmatpush.msra.mxu0 %v1458
        %4186 = vmatmul.f32.gmra.mxu0 %v2367
        %v4187 = vpop.f32.mrf.mxu0
        %v4188 = vadd.f32 %v4168, %v4187
        %4189 = vdwg.mxu0
        %4190 = vmatpush.msra.mxu0 %v1706
        %4191 = vmatpush.msra.mxu0 %v1698
        %4192 = vmatpush.msra.mxu0 %v1690
        %4193 = vmatpush.msra.mxu0 %v1682
        %4194 = vmatpush.msra.mxu0 %v1674
        %4195 = vmatpush.msra.mxu0 %v1666
        %4196 = vmatpush.msra.mxu0 %v1658
        %4197 = vmatpush.msra.mxu0 %v1650
        %4198 = vmatpush.msra.mxu0 %v1642
        %4199 = vmatpush.msra.mxu0 %v1634
        %4200 = vmatpush.msra.mxu0 %v1626
        %4201 = vmatpush.msra.mxu0 %v1618
        %4202 = vmatpush.msra.mxu0 %v1610
        %4203 = vmatpush.msra.mxu0 %v1602
        %4204 = vmatpush.msra.mxu0 %v1594
        %4205 = vmatpush.msra.mxu0 %v1586
        %4206 = vmatmul.f32.gmra.mxu0 %v2368
        %v4207 = vpop.f32.mrf.mxu0
        %v4208 = vadd.f32 %v4188, %v4207
        %4209 = vdwg.mxu0
        %4210 = vmatpush.msra.mxu0 %v1834
        %4211 = vmatpush.msra.mxu0 %v1826
        %4212 = vmatpush.msra.mxu0 %v1818
        %4213 = vmatpush.msra.mxu0 %v1810
        %4214 = vmatpush.msra.mxu0 %v1802
        %4215 = vmatpush.msra.mxu0 %v1794
        %4216 = vmatpush.msra.mxu0 %v1786
        %4217 = vmatpush.msra.mxu0 %v1778
        %4218 = vmatpush.msra.mxu0 %v1770
        %4219 = vmatpush.msra.mxu0 %v1762
        %4220 = vmatpush.msra.mxu0 %v1754
        %4221 = vmatpush.msra.mxu0 %v1746
        %4222 = vmatpush.msra.mxu0 %v1738
        %4223 = vmatpush.msra.mxu0 %v1730
        %4224 = vmatpush.msra.mxu0 %v1722
        %4225 = vmatpush.msra.mxu0 %v1714
        %4226 = vmatmul.f32.gmra.mxu0 %v2369
        %v4227 = vpop.f32.mrf.mxu0
        %v4228 = vadd.f32 %v4208, %v4227
        %4229 = vdwg.mxu0
        %4230 = vmatpush.msra.mxu0 %v1962
        %4231 = vmatpush.msra.mxu0 %v1954
        %4232 = vmatpush.msra.mxu0 %v1946
        %4233 = vmatpush.msra.mxu0 %v1938
        %4234 = vmatpush.msra.mxu0 %v1930
        %4235 = vmatpush.msra.mxu0 %v1922
        %4236 = vmatpush.msra.mxu0 %v1914
        %4237 = vmatpush.msra.mxu0 %v1906
        %4238 = vmatpush.msra.mxu0 %v1898
        %4239 = vmatpush.msra.mxu0 %v1890
        %4240 = vmatpush.msra.mxu0 %v1882
        %4241 = vmatpush.msra.mxu0 %v1874
        %4242 = vmatpush.msra.mxu0 %v1866
        %4243 = vmatpush.msra.mxu0 %v1858
        %4244 = vmatpush.msra.mxu0 %v1850
        %4245 = vmatpush.msra.mxu0 %v1842
        %4246 = vmatmul.f32.gmra.mxu0 %v2370
        %v4247 = vpop.f32.mrf.mxu0
        %v4248 = vadd.f32 %v4228, %v4247
        %4249 = vdwg.mxu0
        %4250 = vmatpush.msra.mxu0 %v2090
        %4251 = vmatpush.msra.mxu0 %v2082
        %4252 = vmatpush.msra.mxu0 %v2074
        %4253 = vmatpush.msra.mxu0 %v2066
        %4254 = vmatpush.msra.mxu0 %v2058
        %4255 = vmatpush.msra.mxu0 %v2050
        %4256 = vmatpush.msra.mxu0 %v2042
        %4257 = vmatpush.msra.mxu0 %v2034
        %4258 = vmatpush.msra.mxu0 %v2026
        %4259 = vmatpush.msra.mxu0 %v2018
        %4260 = vmatpush.msra.mxu0 %v2010
        %4261 = vmatpush.msra.mxu0 %v2002
        %4262 = vmatpush.msra.mxu0 %v1994
        %4263 = vmatpush.msra.mxu0 %v1986
        %4264 = vmatpush.msra.mxu0 %v1978
        %4265 = vmatpush.msra.mxu0 %v1970
        %4266 = vmatmul.f32.gmra.mxu0 %v2371
        %v4267 = vpop.f32.mrf.mxu0
        %v4268 = vadd.f32 %v4248, %v4267
        %4269 = vdwg.mxu0
        %4270 = vmatpush.msra.mxu0 %v2218
        %4271 = vmatpush.msra.mxu0 %v2210
        %4272 = vmatpush.msra.mxu0 %v2202
        %4273 = vmatpush.msra.mxu0 %v2194
        %4274 = vmatpush.msra.mxu0 %v2186
        %4275 = vmatpush.msra.mxu0 %v2178
        %4276 = vmatpush.msra.mxu0 %v2170
        %4277 = vmatpush.msra.mxu0 %v2162
        %4278 = vmatpush.msra.mxu0 %v2154
        %4279 = vmatpush.msra.mxu0 %v2146
        %4280 = vmatpush.msra.mxu0 %v2138
        %4281 = vmatpush.msra.mxu0 %v2130
        %4282 = vmatpush.msra.mxu0 %v2122
        %4283 = vmatpush.msra.mxu0 %v2114
        %4284 = vmatpush.msra.mxu0 %v2106
        %4285 = vmatpush.msra.mxu0 %v2098
        %4286 = vmatmul.f32.gmra.mxu0 %v2372
        %v4287 = vpop.f32.mrf.mxu0
        %v4288 = vadd.f32 %v4268, %v4287
        %4289 = vdwg.mxu0
        %4290 = vmatpush.msra.mxu0 %v2346
        %4291 = vmatpush.msra.mxu0 %v2338
        %4292 = vmatpush.msra.mxu0 %v2330
        %4293 = vmatpush.msra.mxu0 %v2322
        %4294 = vmatpush.msra.mxu0 %v2314
        %4295 = vmatpush.msra.mxu0 %v2306
        %4296 = vmatpush.msra.mxu0 %v2298
        %4297 = vmatpush.msra.mxu0 %v2290
        %4298 = vmatpush.msra.mxu0 %v2282
        %4299 = vmatpush.msra.mxu0 %v2274
        %4300 = vmatpush.msra.mxu0 %v2266
        %4301 = vmatpush.msra.mxu0 %v2258
        %4302 = vmatpush.msra.mxu0 %v2250
        %4303 = vmatpush.msra.mxu0 %v2242
        %4304 = vmatpush.msra.mxu0 %v2234
        %4305 = vmatpush.msra.mxu0 %v2226
        %4306 = vmatmul.f32.gmra.mxu0 %v2373
        %v4307 = vpop.f32.mrf.mxu0
        %v4308 = vadd.f32 %v4288, %v4307
        %4309 = vdwg.mxu0
        %4310 = vmatpush.msra.mxu0 %v427
        %4311 = vmatpush.msra.mxu0 %v419
        %4312 = vmatpush.msra.mxu0 %v411
        %4313 = vmatpush.msra.mxu0 %v403
        %4314 = vmatpush.msra.mxu0 %v395
        %4315 = vmatpush.msra.mxu0 %v387
        %4316 = vmatpush.msra.mxu0 %v379
        %4317 = vmatpush.msra.mxu0 %v371
        %4318 = vmatpush.msra.mxu0 %v363
        %4319 = vmatpush.msra.mxu0 %v355
        %4320 = vmatpush.msra.mxu0 %v347
        %4321 = vmatpush.msra.mxu0 %v339
        %4322 = vmatpush.msra.mxu0 %v331
        %4323 = vmatpush.msra.mxu0 %v323
        %4324 = vmatpush.msra.mxu0 %v315
        %4325 = vmatpush.msra.mxu0 %v307
        %4326 = vmatmul.f32.gmra.mxu0 %v2356
        %v4327 = vpop.f32.mrf.mxu0
        %v4328 = vadd.f32 0.0, %v4327
        %4329 = vdwg.mxu0
        %4330 = vmatpush.msra.mxu0 %v555
        %4331 = vmatpush.msra.mxu0 %v547
        %4332 = vmatpush.msra.mxu0 %v539
        %4333 = vmatpush.msra.mxu0 %v531
        %4334 = vmatpush.msra.mxu0 %v523
        %4335 = vmatpush.msra.mxu0 %v515
        %4336 = vmatpush.msra.mxu0 %v507
        %4337 = vmatpush.msra.mxu0 %v499
        %4338 = vmatpush.msra.mxu0 %v491
        %4339 = vmatpush.msra.mxu0 %v483
        %4340 = vmatpush.msra.mxu0 %v475
        %4341 = vmatpush.msra.mxu0 %v467
        %4342 = vmatpush.msra.mxu0 %v459
        %4343 = vmatpush.msra.mxu0 %v451
        %4344 = vmatpush.msra.mxu0 %v443
        %4345 = vmatpush.msra.mxu0 %v435
        %4346 = vmatmul.f32.gmra.mxu0 %v2357
        %v4347 = vpop.f32.mrf.mxu0
        %v4348 = vadd.f32 %v4328, %v4347
        %4349 = vdwg.mxu0
        %4350 = vmatpush.msra.mxu0 %v683
        %4351 = vmatpush.msra.mxu0 %v675
        %4352 = vmatpush.msra.mxu0 %v667
        %4353 = vmatpush.msra.mxu0 %v659
        %4354 = vmatpush.msra.mxu0 %v651
        %4355 = vmatpush.msra.mxu0 %v643
        %4356 = vmatpush.msra.mxu0 %v635
        %4357 = vmatpush.msra.mxu0 %v627
        %4358 = vmatpush.msra.mxu0 %v619
        %4359 = vmatpush.msra.mxu0 %v611
        %4360 = vmatpush.msra.mxu0 %v603
        %4361 = vmatpush.msra.mxu0 %v595
        %4362 = vmatpush.msra.mxu0 %v587
        %4363 = vmatpush.msra.mxu0 %v579
        %4364 = vmatpush.msra.mxu0 %v571
        %4365 = vmatpush.msra.mxu0 %v563
        %4366 = vmatmul.f32.gmra.mxu0 %v2358
        %v4367 = vpop.f32.mrf.mxu0
        %v4368 = vadd.f32 %v4348, %v4367
        %4369 = vdwg.mxu0
        %4370 = vmatpush.msra.mxu0 %v811
        %4371 = vmatpush.msra.mxu0 %v803
        %4372 = vmatpush.msra.mxu0 %v795
        %4373 = vmatpush.msra.mxu0 %v787
        %4374 = vmatpush.msra.mxu0 %v779
        %4375 = vmatpush.msra.mxu0 %v771
        %4376 = vmatpush.msra.mxu0 %v763
        %4377 = vmatpush.msra.mxu0 %v755
        %4378 = vmatpush.msra.mxu0 %v747
        %4379 = vmatpush.msra.mxu0 %v739
        %4380 = vmatpush.msra.mxu0 %v731
        %4381 = vmatpush.msra.mxu0 %v723
        %4382 = vmatpush.msra.mxu0 %v715
        %4383 = vmatpush.msra.mxu0 %v707
        %4384 = vmatpush.msra.mxu0 %v699
        %4385 = vmatpush.msra.mxu0 %v691
        %4386 = vmatmul.f32.gmra.mxu0 %v2359
        %v4387 = vpop.f32.mrf.mxu0
        %v4388 = vadd.f32 %v4368, %v4387
        %4389 = vdwg.mxu0
        %4390 = vmatpush.msra.mxu0 %v939
        %4391 = vmatpush.msra.mxu0 %v931
        %4392 = vmatpush.msra.mxu0 %v923
        %4393 = vmatpush.msra.mxu0 %v915
        %4394 = vmatpush.msra.mxu0 %v907
        %4395 = vmatpush.msra.mxu0 %v899
        %4396 = vmatpush.msra.mxu0 %v891
        %4397 = vmatpush.msra.mxu0 %v883
        %4398 = vmatpush.msra.mxu0 %v875
        %4399 = vmatpush.msra.mxu0 %v867
        %4400 = vmatpush.msra.mxu0 %v859
        %4401 = vmatpush.msra.mxu0 %v851
        %4402 = vmatpush.msra.mxu0 %v843
        %4403 = vmatpush.msra.mxu0 %v835
        %4404 = vmatpush.msra.mxu0 %v827
        %4405 = vmatpush.msra.mxu0 %v819
        %4406 = vmatmul.f32.gmra.mxu0 %v2360
        %v4407 = vpop.f32.mrf.mxu0
        %v4408 = vadd.f32 %v4388, %v4407
        %4409 = vdwg.mxu0
        %4410 = vmatpush.msra.mxu0 %v1067
        %4411 = vmatpush.msra.mxu0 %v1059
        %4412 = vmatpush.msra.mxu0 %v1051
        %4413 = vmatpush.msra.mxu0 %v1043
        %4414 = vmatpush.msra.mxu0 %v1035
        %4415 = vmatpush.msra.mxu0 %v1027
        %4416 = vmatpush.msra.mxu0 %v1019
        %4417 = vmatpush.msra.mxu0 %v1011
        %4418 = vmatpush.msra.mxu0 %v1003
        %4419 = vmatpush.msra.mxu0 %v995
        %4420 = vmatpush.msra.mxu0 %v987
        %4421 = vmatpush.msra.mxu0 %v979
        %4422 = vmatpush.msra.mxu0 %v971
        %4423 = vmatpush.msra.mxu0 %v963
        %4424 = vmatpush.msra.mxu0 %v955
        %4425 = vmatpush.msra.mxu0 %v947
        %4426 = vmatmul.f32.gmra.mxu0 %v2361
        %v4427 = vpop.f32.mrf.mxu0
        %v4428 = vadd.f32 %v4408, %v4427
        %4429 = vdwg.mxu0
        %4430 = vmatpush.msra.mxu0 %v1195
        %4431 = vmatpush.msra.mxu0 %v1187
        %4432 = vmatpush.msra.mxu0 %v1179
        %4433 = vmatpush.msra.mxu0 %v1171
        %4434 = vmatpush.msra.mxu0 %v1163
        %4435 = vmatpush.msra.mxu0 %v1155
        %4436 = vmatpush.msra.mxu0 %v1147
        %4437 = vmatpush.msra.mxu0 %v1139
        %4438 = vmatpush.msra.mxu0 %v1131
        %4439 = vmatpush.msra.mxu0 %v1123
        %4440 = vmatpush.msra.mxu0 %v1115
        %4441 = vmatpush.msra.mxu0 %v1107
        %4442 = vmatpush.msra.mxu0 %v1099
        %4443 = vmatpush.msra.mxu0 %v1091
        %4444 = vmatpush.msra.mxu0 %v1083
        %4445 = vmatpush.msra.mxu0 %v1075
        %4446 = vmatmul.f32.gmra.mxu0 %v2362
        %v4447 = vpop.f32.mrf.mxu0
        %v4448 = vadd.f32 %v4428, %v4447
        %4449 = vdwg.mxu0
        %4450 = vmatpush.msra.mxu0 %v1323
        %4451 = vmatpush.msra.mxu0 %v1315
        %4452 = vmatpush.msra.mxu0 %v1307
        %4453 = vmatpush.msra.mxu0 %v1299
        %4454 = vmatpush.msra.mxu0 %v1291
        %4455 = vmatpush.msra.mxu0 %v1283
        %4456 = vmatpush.msra.mxu0 %v1275
        %4457 = vmatpush.msra.mxu0 %v1267
        %4458 = vmatpush.msra.mxu0 %v1259
        %4459 = vmatpush.msra.mxu0 %v1251
        %4460 = vmatpush.msra.mxu0 %v1243
        %4461 = vmatpush.msra.mxu0 %v1235
        %4462 = vmatpush.msra.mxu0 %v1227
        %4463 = vmatpush.msra.mxu0 %v1219
        %4464 = vmatpush.msra.mxu0 %v1211
        %4465 = vmatpush.msra.mxu0 %v1203
        %4466 = vmatmul.f32.gmra.mxu0 %v2363
        %v4467 = vpop.f32.mrf.mxu0
        %v4468 = vadd.f32 %v4448, %v4467
        %4469 = vdwg.mxu0
        %4470 = vmatpush.msra.mxu0 %v1451
        %4471 = vmatpush.msra.mxu0 %v1443
        %4472 = vmatpush.msra.mxu0 %v1435
        %4473 = vmatpush.msra.mxu0 %v1427
        %4474 = vmatpush.msra.mxu0 %v1419
        %4475 = vmatpush.msra.mxu0 %v1411
        %4476 = vmatpush.msra.mxu0 %v1403
        %4477 = vmatpush.msra.mxu0 %v1395
        %4478 = vmatpush.msra.mxu0 %v1387
        %4479 = vmatpush.msra.mxu0 %v1379
        %4480 = vmatpush.msra.mxu0 %v1371
        %4481 = vmatpush.msra.mxu0 %v1363
        %4482 = vmatpush.msra.mxu0 %v1355
        %4483 = vmatpush.msra.mxu0 %v1347
        %4484 = vmatpush.msra.mxu0 %v1339
        %4485 = vmatpush.msra.mxu0 %v1331
        %4486 = vmatmul.f32.gmra.mxu0 %v2366
        %v4487 = vpop.f32.mrf.mxu0
        %v4488 = vadd.f32 %v4468, %v4487
        %4489 = vdwg.mxu0
        %4490 = vmatpush.msra.mxu0 %v1579
        %4491 = vmatpush.msra.mxu0 %v1571
        %4492 = vmatpush.msra.mxu0 %v1563
        %4493 = vmatpush.msra.mxu0 %v1555
        %4494 = vmatpush.msra.mxu0 %v1547
        %4495 = vmatpush.msra.mxu0 %v1539
        %4496 = vmatpush.msra.mxu0 %v1531
        %4497 = vmatpush.msra.mxu0 %v1523
        %4498 = vmatpush.msra.mxu0 %v1515
        %4499 = vmatpush.msra.mxu0 %v1507
        %4500 = vmatpush.msra.mxu0 %v1499
        %4501 = vmatpush.msra.mxu0 %v1491
        %4502 = vmatpush.msra.mxu0 %v1483
        %4503 = vmatpush.msra.mxu0 %v1475
        %4504 = vmatpush.msra.mxu0 %v1467
        %4505 = vmatpush.msra.mxu0 %v1459
        %4506 = vmatmul.f32.gmra.mxu0 %v2367
        %v4507 = vpop.f32.mrf.mxu0
        %v4508 = vadd.f32 %v4488, %v4507
        %4509 = vdwg.mxu0
        %4510 = vmatpush.msra.mxu0 %v1707
        %4511 = vmatpush.msra.mxu0 %v1699
        %4512 = vmatpush.msra.mxu0 %v1691
        %4513 = vmatpush.msra.mxu0 %v1683
        %4514 = vmatpush.msra.mxu0 %v1675
        %4515 = vmatpush.msra.mxu0 %v1667
        %4516 = vmatpush.msra.mxu0 %v1659
        %4517 = vmatpush.msra.mxu0 %v1651
        %4518 = vmatpush.msra.mxu0 %v1643
        %4519 = vmatpush.msra.mxu0 %v1635
        %4520 = vmatpush.msra.mxu0 %v1627
        %4521 = vmatpush.msra.mxu0 %v1619
        %4522 = vmatpush.msra.mxu0 %v1611
        %4523 = vmatpush.msra.mxu0 %v1603
        %4524 = vmatpush.msra.mxu0 %v1595
        %4525 = vmatpush.msra.mxu0 %v1587
        %4526 = vmatmul.f32.gmra.mxu0 %v2368
        %v4527 = vpop.f32.mrf.mxu0
        %v4528 = vadd.f32 %v4508, %v4527
        %4529 = vdwg.mxu0
        %4530 = vmatpush.msra.mxu0 %v1835
        %4531 = vmatpush.msra.mxu0 %v1827
        %4532 = vmatpush.msra.mxu0 %v1819
        %4533 = vmatpush.msra.mxu0 %v1811
        %4534 = vmatpush.msra.mxu0 %v1803
        %4535 = vmatpush.msra.mxu0 %v1795
        %4536 = vmatpush.msra.mxu0 %v1787
        %4537 = vmatpush.msra.mxu0 %v1779
        %4538 = vmatpush.msra.mxu0 %v1771
        %4539 = vmatpush.msra.mxu0 %v1763
        %4540 = vmatpush.msra.mxu0 %v1755
        %4541 = vmatpush.msra.mxu0 %v1747
        %4542 = vmatpush.msra.mxu0 %v1739
        %4543 = vmatpush.msra.mxu0 %v1731
        %4544 = vmatpush.msra.mxu0 %v1723
        %4545 = vmatpush.msra.mxu0 %v1715
        %4546 = vmatmul.f32.gmra.mxu0 %v2369
        %v4547 = vpop.f32.mrf.mxu0
        %v4548 = vadd.f32 %v4528, %v4547
        %4549 = vdwg.mxu0
        %4550 = vmatpush.msra.mxu0 %v1963
        %4551 = vmatpush.msra.mxu0 %v1955
        %4552 = vmatpush.msra.mxu0 %v1947
        %4553 = vmatpush.msra.mxu0 %v1939
        %4554 = vmatpush.msra.mxu0 %v1931
        %4555 = vmatpush.msra.mxu0 %v1923
        %4556 = vmatpush.msra.mxu0 %v1915
        %4557 = vmatpush.msra.mxu0 %v1907
        %4558 = vmatpush.msra.mxu0 %v1899
        %4559 = vmatpush.msra.mxu0 %v1891
        %4560 = vmatpush.msra.mxu0 %v1883
        %4561 = vmatpush.msra.mxu0 %v1875
        %4562 = vmatpush.msra.mxu0 %v1867
        %4563 = vmatpush.msra.mxu0 %v1859
        %4564 = vmatpush.msra.mxu0 %v1851
        %4565 = vmatpush.msra.mxu0 %v1843
        %4566 = vmatmul.f32.gmra.mxu0 %v2370
        %v4567 = vpop.f32.mrf.mxu0
        %v4568 = vadd.f32 %v4548, %v4567
        %4569 = vdwg.mxu0
        %4570 = vmatpush.msra.mxu0 %v2091
        %4571 = vmatpush.msra.mxu0 %v2083
        %4572 = vmatpush.msra.mxu0 %v2075
        %4573 = vmatpush.msra.mxu0 %v2067
        %4574 = vmatpush.msra.mxu0 %v2059
        %4575 = vmatpush.msra.mxu0 %v2051
        %4576 = vmatpush.msra.mxu0 %v2043
        %4577 = vmatpush.msra.mxu0 %v2035
        %4578 = vmatpush.msra.mxu0 %v2027
        %4579 = vmatpush.msra.mxu0 %v2019
        %4580 = vmatpush.msra.mxu0 %v2011
        %4581 = vmatpush.msra.mxu0 %v2003
        %4582 = vmatpush.msra.mxu0 %v1995
        %4583 = vmatpush.msra.mxu0 %v1987
        %4584 = vmatpush.msra.mxu0 %v1979
        %4585 = vmatpush.msra.mxu0 %v1971
        %4586 = vmatmul.f32.gmra.mxu0 %v2371
        %v4587 = vpop.f32.mrf.mxu0
        %v4588 = vadd.f32 %v4568, %v4587
        %4589 = vdwg.mxu0
        %4590 = vmatpush.msra.mxu0 %v2219
        %4591 = vmatpush.msra.mxu0 %v2211
        %4592 = vmatpush.msra.mxu0 %v2203
        %4593 = vmatpush.msra.mxu0 %v2195
        %4594 = vmatpush.msra.mxu0 %v2187
        %4595 = vmatpush.msra.mxu0 %v2179
        %4596 = vmatpush.msra.mxu0 %v2171
        %4597 = vmatpush.msra.mxu0 %v2163
        %4598 = vmatpush.msra.mxu0 %v2155
        %4599 = vmatpush.msra.mxu0 %v2147
        %4600 = vmatpush.msra.mxu0 %v2139
        %4601 = vmatpush.msra.mxu0 %v2131
        %4602 = vmatpush.msra.mxu0 %v2123
        %4603 = vmatpush.msra.mxu0 %v2115
        %4604 = vmatpush.msra.mxu0 %v2107
        %4605 = vmatpush.msra.mxu0 %v2099
        %4606 = vmatmul.f32.gmra.mxu0 %v2372
        %v4607 = vpop.f32.mrf.mxu0
        %v4608 = vadd.f32 %v4588, %v4607
        %4609 = vdwg.mxu0
        %4610 = vmatpush.msra.mxu0 %v2347
        %4611 = vmatpush.msra.mxu0 %v2339
        %4612 = vmatpush.msra.mxu0 %v2331
        %4613 = vmatpush.msra.mxu0 %v2323
        %4614 = vmatpush.msra.mxu0 %v2315
        %4615 = vmatpush.msra.mxu0 %v2307
        %4616 = vmatpush.msra.mxu0 %v2299
        %4617 = vmatpush.msra.mxu0 %v2291
        %4618 = vmatpush.msra.mxu0 %v2283
        %4619 = vmatpush.msra.mxu0 %v2275
        %4620 = vmatpush.msra.mxu0 %v2267
        %4621 = vmatpush.msra.mxu0 %v2259
        %4622 = vmatpush.msra.mxu0 %v2251
        %4623 = vmatpush.msra.mxu0 %v2243
        %4624 = vmatpush.msra.mxu0 %v2235
        %4625 = vmatpush.msra.mxu0 %v2227
        %4626 = vmatmul.f32.gmra.mxu0 %v2373
        %v4627 = vpop.f32.mrf.mxu0
        %v4628 = vadd.f32 %v4608, %v4627
        %4629 = vdwg.mxu0
        %4630 = vmatpush.msra.mxu0 %v428
        %4631 = vmatpush.msra.mxu0 %v420
        %4632 = vmatpush.msra.mxu0 %v412
        %4633 = vmatpush.msra.mxu0 %v404
        %4634 = vmatpush.msra.mxu0 %v396
        %4635 = vmatpush.msra.mxu0 %v388
        %4636 = vmatpush.msra.mxu0 %v380
        %4637 = vmatpush.msra.mxu0 %v372
        %4638 = vmatpush.msra.mxu0 %v364
        %4639 = vmatpush.msra.mxu0 %v356
        %4640 = vmatpush.msra.mxu0 %v348
        %4641 = vmatpush.msra.mxu0 %v340
        %4642 = vmatpush.msra.mxu0 %v332
        %4643 = vmatpush.msra.mxu0 %v324
        %4644 = vmatpush.msra.mxu0 %v316
        %4645 = vmatpush.msra.mxu0 %v308
        %4646 = vmatmul.f32.gmra.mxu0 %v2356
        %v4647 = vpop.f32.mrf.mxu0
        %v4648 = vadd.f32 0.0, %v4647
        %4649 = vdwg.mxu0
        %4650 = vmatpush.msra.mxu0 %v556
        %4651 = vmatpush.msra.mxu0 %v548
        %4652 = vmatpush.msra.mxu0 %v540
        %4653 = vmatpush.msra.mxu0 %v532
        %4654 = vmatpush.msra.mxu0 %v524
        %4655 = vmatpush.msra.mxu0 %v516
        %4656 = vmatpush.msra.mxu0 %v508
        %4657 = vmatpush.msra.mxu0 %v500
        %4658 = vmatpush.msra.mxu0 %v492
        %4659 = vmatpush.msra.mxu0 %v484
        %4660 = vmatpush.msra.mxu0 %v476
        %4661 = vmatpush.msra.mxu0 %v468
        %4662 = vmatpush.msra.mxu0 %v460
        %4663 = vmatpush.msra.mxu0 %v452
        %4664 = vmatpush.msra.mxu0 %v444
        %4665 = vmatpush.msra.mxu0 %v436
        %4666 = vmatmul.f32.gmra.mxu0 %v2357
        %v4667 = vpop.f32.mrf.mxu0
        %v4668 = vadd.f32 %v4648, %v4667
        %4669 = vdwg.mxu0
        %4670 = vmatpush.msra.mxu0 %v684
        %4671 = vmatpush.msra.mxu0 %v676
        %4672 = vmatpush.msra.mxu0 %v668
        %4673 = vmatpush.msra.mxu0 %v660
        %4674 = vmatpush.msra.mxu0 %v652
        %4675 = vmatpush.msra.mxu0 %v644
        %4676 = vmatpush.msra.mxu0 %v636
        %4677 = vmatpush.msra.mxu0 %v628
        %4678 = vmatpush.msra.mxu0 %v620
        %4679 = vmatpush.msra.mxu0 %v612
        %4680 = vmatpush.msra.mxu0 %v604
        %4681 = vmatpush.msra.mxu0 %v596
        %4682 = vmatpush.msra.mxu0 %v588
        %4683 = vmatpush.msra.mxu0 %v580
        %4684 = vmatpush.msra.mxu0 %v572
        %4685 = vmatpush.msra.mxu0 %v564
        %4686 = vmatmul.f32.gmra.mxu0 %v2358
        %v4687 = vpop.f32.mrf.mxu0
        %v4688 = vadd.f32 %v4668, %v4687
        %4689 = vdwg.mxu0
        %4690 = vmatpush.msra.mxu0 %v812
        %4691 = vmatpush.msra.mxu0 %v804
        %4692 = vmatpush.msra.mxu0 %v796
        %4693 = vmatpush.msra.mxu0 %v788
        %4694 = vmatpush.msra.mxu0 %v780
        %4695 = vmatpush.msra.mxu0 %v772
        %4696 = vmatpush.msra.mxu0 %v764
        %4697 = vmatpush.msra.mxu0 %v756
        %4698 = vmatpush.msra.mxu0 %v748
        %4699 = vmatpush.msra.mxu0 %v740
        %4700 = vmatpush.msra.mxu0 %v732
        %4701 = vmatpush.msra.mxu0 %v724
        %4702 = vmatpush.msra.mxu0 %v716
        %4703 = vmatpush.msra.mxu0 %v708
        %4704 = vmatpush.msra.mxu0 %v700
        %4705 = vmatpush.msra.mxu0 %v692
        %4706 = vmatmul.f32.gmra.mxu0 %v2359
        %v4707 = vpop.f32.mrf.mxu0
        %v4708 = vadd.f32 %v4688, %v4707
        %4709 = vdwg.mxu0
        %4710 = vmatpush.msra.mxu0 %v940
        %4711 = vmatpush.msra.mxu0 %v932
        %4712 = vmatpush.msra.mxu0 %v924
        %4713 = vmatpush.msra.mxu0 %v916
        %4714 = vmatpush.msra.mxu0 %v908
        %4715 = vmatpush.msra.mxu0 %v900
        %4716 = vmatpush.msra.mxu0 %v892
        %4717 = vmatpush.msra.mxu0 %v884
        %4718 = vmatpush.msra.mxu0 %v876
        %4719 = vmatpush.msra.mxu0 %v868
        %4720 = vmatpush.msra.mxu0 %v860
        %4721 = vmatpush.msra.mxu0 %v852
        %4722 = vmatpush.msra.mxu0 %v844
        %4723 = vmatpush.msra.mxu0 %v836
        %4724 = vmatpush.msra.mxu0 %v828
        %4725 = vmatpush.msra.mxu0 %v820
        %4726 = vmatmul.f32.gmra.mxu0 %v2360
        %v4727 = vpop.f32.mrf.mxu0
        %v4728 = vadd.f32 %v4708, %v4727
        %4729 = vdwg.mxu0
        %4730 = vmatpush.msra.mxu0 %v1068
        %4731 = vmatpush.msra.mxu0 %v1060
        %4732 = vmatpush.msra.mxu0 %v1052
        %4733 = vmatpush.msra.mxu0 %v1044
        %4734 = vmatpush.msra.mxu0 %v1036
        %4735 = vmatpush.msra.mxu0 %v1028
        %4736 = vmatpush.msra.mxu0 %v1020
        %4737 = vmatpush.msra.mxu0 %v1012
        %4738 = vmatpush.msra.mxu0 %v1004
        %4739 = vmatpush.msra.mxu0 %v996
        %4740 = vmatpush.msra.mxu0 %v988
        %4741 = vmatpush.msra.mxu0 %v980
        %4742 = vmatpush.msra.mxu0 %v972
        %4743 = vmatpush.msra.mxu0 %v964
        %4744 = vmatpush.msra.mxu0 %v956
        %4745 = vmatpush.msra.mxu0 %v948
        %4746 = vmatmul.f32.gmra.mxu0 %v2361
        %v4747 = vpop.f32.mrf.mxu0
        %v4748 = vadd.f32 %v4728, %v4747
        %4749 = vdwg.mxu0
        %4750 = vmatpush.msra.mxu0 %v1196
        %4751 = vmatpush.msra.mxu0 %v1188
        %4752 = vmatpush.msra.mxu0 %v1180
        %4753 = vmatpush.msra.mxu0 %v1172
        %4754 = vmatpush.msra.mxu0 %v1164
        %4755 = vmatpush.msra.mxu0 %v1156
        %4756 = vmatpush.msra.mxu0 %v1148
        %4757 = vmatpush.msra.mxu0 %v1140
        %4758 = vmatpush.msra.mxu0 %v1132
        %4759 = vmatpush.msra.mxu0 %v1124
        %4760 = vmatpush.msra.mxu0 %v1116
        %4761 = vmatpush.msra.mxu0 %v1108
        %4762 = vmatpush.msra.mxu0 %v1100
        %4763 = vmatpush.msra.mxu0 %v1092
        %4764 = vmatpush.msra.mxu0 %v1084
        %4765 = vmatpush.msra.mxu0 %v1076
        %4766 = vmatmul.f32.gmra.mxu0 %v2362
        %v4767 = vpop.f32.mrf.mxu0
        %v4768 = vadd.f32 %v4748, %v4767
        %4769 = vdwg.mxu0
        %4770 = vmatpush.msra.mxu0 %v1324
        %4771 = vmatpush.msra.mxu0 %v1316
        %4772 = vmatpush.msra.mxu0 %v1308
        %4773 = vmatpush.msra.mxu0 %v1300
        %4774 = vmatpush.msra.mxu0 %v1292
        %4775 = vmatpush.msra.mxu0 %v1284
        %4776 = vmatpush.msra.mxu0 %v1276
        %4777 = vmatpush.msra.mxu0 %v1268
        %4778 = vmatpush.msra.mxu0 %v1260
        %4779 = vmatpush.msra.mxu0 %v1252
        %4780 = vmatpush.msra.mxu0 %v1244
        %4781 = vmatpush.msra.mxu0 %v1236
        %4782 = vmatpush.msra.mxu0 %v1228
        %4783 = vmatpush.msra.mxu0 %v1220
        %4784 = vmatpush.msra.mxu0 %v1212
        %4785 = vmatpush.msra.mxu0 %v1204
        %4786 = vmatmul.f32.gmra.mxu0 %v2363
        %v4787 = vpop.f32.mrf.mxu0
        %v4788 = vadd.f32 %v4768, %v4787
        %4789 = vdwg.mxu0
        %4790 = vmatpush.msra.mxu0 %v1452
        %4791 = vmatpush.msra.mxu0 %v1444
        %4792 = vmatpush.msra.mxu0 %v1436
        %4793 = vmatpush.msra.mxu0 %v1428
        %4794 = vmatpush.msra.mxu0 %v1420
        %4795 = vmatpush.msra.mxu0 %v1412
        %4796 = vmatpush.msra.mxu0 %v1404
        %4797 = vmatpush.msra.mxu0 %v1396
        %4798 = vmatpush.msra.mxu0 %v1388
        %4799 = vmatpush.msra.mxu0 %v1380
        %4800 = vmatpush.msra.mxu0 %v1372
        %4801 = vmatpush.msra.mxu0 %v1364
        %4802 = vmatpush.msra.mxu0 %v1356
        %4803 = vmatpush.msra.mxu0 %v1348
        %4804 = vmatpush.msra.mxu0 %v1340
        %4805 = vmatpush.msra.mxu0 %v1332
        %4806 = vmatmul.f32.gmra.mxu0 %v2366
        %v4807 = vpop.f32.mrf.mxu0
        %v4808 = vadd.f32 %v4788, %v4807
        %4809 = vdwg.mxu0
        %4810 = vmatpush.msra.mxu0 %v1580
        %4811 = vmatpush.msra.mxu0 %v1572
        %4812 = vmatpush.msra.mxu0 %v1564
        %4813 = vmatpush.msra.mxu0 %v1556
        %4814 = vmatpush.msra.mxu0 %v1548
        %4815 = vmatpush.msra.mxu0 %v1540
        %4816 = vmatpush.msra.mxu0 %v1532
        %4817 = vmatpush.msra.mxu0 %v1524
        %4818 = vmatpush.msra.mxu0 %v1516
        %4819 = vmatpush.msra.mxu0 %v1508
        %4820 = vmatpush.msra.mxu0 %v1500
        %4821 = vmatpush.msra.mxu0 %v1492
        %4822 = vmatpush.msra.mxu0 %v1484
        %4823 = vmatpush.msra.mxu0 %v1476
        %4824 = vmatpush.msra.mxu0 %v1468
        %4825 = vmatpush.msra.mxu0 %v1460
        %4826 = vmatmul.f32.gmra.mxu0 %v2367
        %v4827 = vpop.f32.mrf.mxu0
        %v4828 = vadd.f32 %v4808, %v4827
        %4829 = vdwg.mxu0
        %4830 = vmatpush.msra.mxu0 %v1708
        %4831 = vmatpush.msra.mxu0 %v1700
        %4832 = vmatpush.msra.mxu0 %v1692
        %4833 = vmatpush.msra.mxu0 %v1684
        %4834 = vmatpush.msra.mxu0 %v1676
        %4835 = vmatpush.msra.mxu0 %v1668
        %4836 = vmatpush.msra.mxu0 %v1660
        %4837 = vmatpush.msra.mxu0 %v1652
        %4838 = vmatpush.msra.mxu0 %v1644
        %4839 = vmatpush.msra.mxu0 %v1636
        %4840 = vmatpush.msra.mxu0 %v1628
        %4841 = vmatpush.msra.mxu0 %v1620
        %4842 = vmatpush.msra.mxu0 %v1612
        %4843 = vmatpush.msra.mxu0 %v1604
        %4844 = vmatpush.msra.mxu0 %v1596
        %4845 = vmatpush.msra.mxu0 %v1588
        %4846 = vmatmul.f32.gmra.mxu0 %v2368
        %v4847 = vpop.f32.mrf.mxu0
        %v4848 = vadd.f32 %v4828, %v4847
        %4849 = vdwg.mxu0
        %4850 = vmatpush.msra.mxu0 %v1836
        %4851 = vmatpush.msra.mxu0 %v1828
        %4852 = vmatpush.msra.mxu0 %v1820
        %4853 = vmatpush.msra.mxu0 %v1812
        %4854 = vmatpush.msra.mxu0 %v1804
        %4855 = vmatpush.msra.mxu0 %v1796
        %4856 = vmatpush.msra.mxu0 %v1788
        %4857 = vmatpush.msra.mxu0 %v1780
        %4858 = vmatpush.msra.mxu0 %v1772
        %4859 = vmatpush.msra.mxu0 %v1764
        %4860 = vmatpush.msra.mxu0 %v1756
        %4861 = vmatpush.msra.mxu0 %v1748
        %4862 = vmatpush.msra.mxu0 %v1740
        %4863 = vmatpush.msra.mxu0 %v1732
        %4864 = vmatpush.msra.mxu0 %v1724
        %4865 = vmatpush.msra.mxu0 %v1716
        %4866 = vmatmul.f32.gmra.mxu0 %v2369
        %v4867 = vpop.f32.mrf.mxu0
        %v4868 = vadd.f32 %v4848, %v4867
        %4869 = vdwg.mxu0
        %4870 = vmatpush.msra.mxu0 %v1964
        %4871 = vmatpush.msra.mxu0 %v1956
        %4872 = vmatpush.msra.mxu0 %v1948
        %4873 = vmatpush.msra.mxu0 %v1940
        %4874 = vmatpush.msra.mxu0 %v1932
        %4875 = vmatpush.msra.mxu0 %v1924
        %4876 = vmatpush.msra.mxu0 %v1916
        %4877 = vmatpush.msra.mxu0 %v1908
        %4878 = vmatpush.msra.mxu0 %v1900
        %4879 = vmatpush.msra.mxu0 %v1892
        %4880 = vmatpush.msra.mxu0 %v1884
        %4881 = vmatpush.msra.mxu0 %v1876
        %4882 = vmatpush.msra.mxu0 %v1868
        %4883 = vmatpush.msra.mxu0 %v1860
        %4884 = vmatpush.msra.mxu0 %v1852
        %4885 = vmatpush.msra.mxu0 %v1844
        %4886 = vmatmul.f32.gmra.mxu0 %v2370
        %v4887 = vpop.f32.mrf.mxu0
        %v4888 = vadd.f32 %v4868, %v4887
        %4889 = vdwg.mxu0
        %4890 = vmatpush.msra.mxu0 %v2092
        %4891 = vmatpush.msra.mxu0 %v2084
        %4892 = vmatpush.msra.mxu0 %v2076
        %4893 = vmatpush.msra.mxu0 %v2068
        %4894 = vmatpush.msra.mxu0 %v2060
        %4895 = vmatpush.msra.mxu0 %v2052
        %4896 = vmatpush.msra.mxu0 %v2044
        %4897 = vmatpush.msra.mxu0 %v2036
        %4898 = vmatpush.msra.mxu0 %v2028
        %4899 = vmatpush.msra.mxu0 %v2020
        %4900 = vmatpush.msra.mxu0 %v2012
        %4901 = vmatpush.msra.mxu0 %v2004
        %4902 = vmatpush.msra.mxu0 %v1996
        %4903 = vmatpush.msra.mxu0 %v1988
        %4904 = vmatpush.msra.mxu0 %v1980
        %4905 = vmatpush.msra.mxu0 %v1972
        %4906 = vmatmul.f32.gmra.mxu0 %v2371
        %v4907 = vpop.f32.mrf.mxu0
        %v4908 = vadd.f32 %v4888, %v4907
        %4909 = vdwg.mxu0
        %4910 = vmatpush.msra.mxu0 %v2220
        %4911 = vmatpush.msra.mxu0 %v2212
        %4912 = vmatpush.msra.mxu0 %v2204
        %4913 = vmatpush.msra.mxu0 %v2196
        %4914 = vmatpush.msra.mxu0 %v2188
        %4915 = vmatpush.msra.mxu0 %v2180
        %4916 = vmatpush.msra.mxu0 %v2172
        %4917 = vmatpush.msra.mxu0 %v2164
        %4918 = vmatpush.msra.mxu0 %v2156
        %4919 = vmatpush.msra.mxu0 %v2148
        %4920 = vmatpush.msra.mxu0 %v2140
        %4921 = vmatpush.msra.mxu0 %v2132
        %4922 = vmatpush.msra.mxu0 %v2124
        %4923 = vmatpush.msra.mxu0 %v2116
        %4924 = vmatpush.msra.mxu0 %v2108
        %4925 = vmatpush.msra.mxu0 %v2100
        %4926 = vmatmul.f32.gmra.mxu0 %v2372
        %v4927 = vpop.f32.mrf.mxu0
        %v4928 = vadd.f32 %v4908, %v4927
        %4929 = vdwg.mxu0
        %4930 = vmatpush.msra.mxu0 %v2348
        %4931 = vmatpush.msra.mxu0 %v2340
        %4932 = vmatpush.msra.mxu0 %v2332
        %4933 = vmatpush.msra.mxu0 %v2324
        %4934 = vmatpush.msra.mxu0 %v2316
        %4935 = vmatpush.msra.mxu0 %v2308
        %4936 = vmatpush.msra.mxu0 %v2300
        %4937 = vmatpush.msra.mxu0 %v2292
        %4938 = vmatpush.msra.mxu0 %v2284
        %4939 = vmatpush.msra.mxu0 %v2276
        %4940 = vmatpush.msra.mxu0 %v2268
        %4941 = vmatpush.msra.mxu0 %v2260
        %4942 = vmatpush.msra.mxu0 %v2252
        %4943 = vmatpush.msra.mxu0 %v2244
        %4944 = vmatpush.msra.mxu0 %v2236
        %4945 = vmatpush.msra.mxu0 %v2228
        %4946 = vmatmul.f32.gmra.mxu0 %v2373
        %v4947 = vpop.f32.mrf.mxu0
        %v4948 = vadd.f32 %v4928, %v4947
        %4949 = vdwg.mxu0
        %v4958 = vrot.slane %v3028, 6
        %v4959 = vrot.slane %v3348, 4
        %v4960 = vrot.slane %v3668, 2
        %v4961 = vrot.slane %v4308, 6
        %v4962 = vrot.slane %v4628, 4
        %v4963 = vrot.slane %v4948, 2
        %vm4964 = vcmask 1041408
        %v4965 = vsel %vm4964, %v2708, %v4958
        %vm4966 = vcmask 1045508
        %v4967 = vsel %vm4966, %v4959, %v4960
        %vm4968 = vcmask 1043456
        %v4969 = vsel %vm4968, %v4965, %v4967
        %v4970 = vsel %vm4964, %v3988, %v4961
        %v4971 = vsel %vm4966, %v4962, %v4963
        %v4972 = vsel %vm4968, %v4970, %v4971
        %v4975 = vadd.f32 %v295, %v4969
        %v4976 = vadd.f32 %v296, %v4972
        %4977 = vst [vmem:[%s283] sm:$0xff] %v4975
        %4978 = vst [vmem:[%s283 + $0x8] sm:$0xff] %v4976
        %p4979 = scmp.eq.s32.totalorder %s28, 1
        // Predicated region
        $region49: #{tpu_custom_call.1} parent=31 // pred_check
          %p4980 = pneg %p4979
        $region50: #{tpu_custom_call.1} parent=31 // pred_check_branch
          %4982 = sbr.rel (%p4980) target = $region52
        $region51: #{tpu_custom_call.1} parent=31 // pred_region
          %v4983 = vld [vmem:[%s283] sm:$0xff]
          %v4984 = vld [vmem:[%s283 + $0x8] sm:$0xff]
          %v4985 = vld [vmem:[%s250] sm:$0xff]
          %v4987 = vperm.slane %v4985, 0
          %v4988 = vperm.slane %v4985, 1
          %v4989 = vperm.slane %v4985, 2
          %v4990 = vperm.slane %v4985, 3
          %v4991 = vperm.slane %v4985, 4
          %v4992 = vperm.slane %v4985, 5
          %v4993 = vperm.slane %v4985, 6
          %v4994 = vperm.slane %v4985, 7
          %v4995 = vrot.slane %v4988, 6
          %v4996 = vrot.slane %v4989, 4
          %v4997 = vrot.slane %v4990, 2
          %v4998 = vrot.slane %v4992, 6
          %v4999 = vrot.slane %v4993, 4
          %v5000 = vrot.slane %v4994, 2
          %v5001 = vsel %vm4964, %v4987, %v4995
          %v5002 = vsel %vm4966, %v4996, %v4997
          %v5003 = vsel %vm4968, %v5001, %v5002
          %v5004 = vsel %vm4964, %v4991, %v4998
          %v5005 = vsel %vm4966, %v4999, %v5000
          %v5006 = vsel %vm4968, %v5004, %v5005
          %v5009 = vadd.f32 %v4983, %v5003
          %v5010 = vadd.f32 %v4984, %v5006
          %v5011 = vmax.f32 %v5009, 0.0
          %v5012 = vmax.f32 %v5010, 0.0
          %5013 = vst [vmem:[%s283] sm:$0xff] %v5011
          %5014 = vst [vmem:[%s283 + $0x8] sm:$0xff] %v5012
        $region52: #{tpu_custom_call.1} parent=31 // pred_fallthru
          _
        %s5015 = sand.u32 %s123, 1
        %s5016 = scalar_lea.sflag [#allocation4], %s5015
        %s5017 = sand.u32 %s123, 1
        %s5018 = smul.addr %s5017, 16
        %s5019 = scalar_lea.vmem [#allocation8], %s5018
        // Predicated region
        $region53: #{tpu_custom_call.1} parent=31 // pred_check
          %p5020 = pneg %p133
        $region54: #{tpu_custom_call.1} parent=31 // pred_check_branch
          %5022 = sbr.rel (%p5020) target = $region56
        $region55: #{tpu_custom_call.1} parent=31 // pred_region
          %s5023 = smul.u32 8, %s27
          %5025 = vsyncadd %s5016, 0
          %s5026 = smul.addr %s5023, 2
          %s5027 = scalar_lea.hbm %s3, %s5026
          %s5029 = sshll.u32 %s5019, 4
          %s5030 = int_to_ptr.vmem [resolvable:$true] %s5029
          %s5031 = sshll.u32 %s5027, 4
          %s5032 = int_to_ptr.hbm [resolvable:$true] %s5031
          %5034 = dma.vmem_to_hbm [thread:$0]  %s5030, 256, %s5032, %s5016
        $region56: #{tpu_custom_call.1} parent=31 // pred_fallthru
          _
      $region32: #{tpu_custom_call.1} parent=5 // pred_fallthru
        _
      %p5035 = scmp.le.s32.totalorder 2, %s18
      // Predicated region
      $region57: #{tpu_custom_call.1} parent=5 // pred_check
        %p5036 = pneg %p5035
      $region58: #{tpu_custom_call.1} parent=5 // pred_check_branch
        %5038 = sbr.rel (%p5036) target = $region60
      $region59: #{tpu_custom_call.1} parent=5 // pred_region
        %s5039 = ssub.s32 %s18, 2
        // Predicated region
        $region61: #{tpu_custom_call.1} parent=59 // pred_check
          %p5040 = pneg %p139
        $region62: #{tpu_custom_call.1} parent=59 // pred_check_branch
          %5042 = sbr.rel (%p5040) target = $region64
        $region63: #{tpu_custom_call.1} parent=59 // pred_region
          %s5043 = sand.u32 %s124, 1
          %s5044 = scalar_lea.sflag [#allocation4], %s5043
          %s5045 = sand.u32 %s124, 1
          %s5046 = smul.addr %s5045, 16
          %s5047 = scalar_lea.vmem [#allocation8], %s5046
          %5049 = dma.done %s5044, 256
        $region64: #{tpu_custom_call.1} parent=59 // pred_fallthru
          _
      $region60: #{tpu_custom_call.1} parent=5 // pred_fallthru
        _
    $region6: #{tpu_custom_call.1} parent=1 // loop_footer
      %s22 = sadd.s32 1, %s18
    $region7: #{tpu_custom_call.1} parent=1 // loop_footer_branch
      %17 = sbr.rel target = $region3
    $region8: #{tpu_custom_call.1} parent=1 // loop_exit
      _
    %5050 = vsyncpa [#allocation3], 1
    %s5051 = scalar_lea.sflag [#allocation3], 1
    %5052 = vsyncpa %s5051, 1
    %5053 = vsyncpa [#allocation6], 1
    %s5054 = scalar_lea.sflag [#allocation6], 1
    %5055 = vsyncpa %s5054, 1
    %5056 = vsyncpa [#allocation4], 1
    %s5057 = scalar_lea.sflag [#allocation4], 1
    %5058 = vsyncpa %s5057, 1

</llo_original>
